<compile_context>
chip_gen: v6e
topology: v6e:2x2x1
jax: 0.10.0
libtpu: 0.0.40
codegen_flags: <defaults>
</compile_context>

<pallas_src>
import math
import functools

import jax
import jax.numpy as jnp
from jax.experimental import pallas as pl
from jax.experimental.pallas import tpu as pltpu


# ----------------------------------------------------------------------------
# Fused kernel: slow-attention + ReLU, fast-attention + ReLU, fusion MLP
# ----------------------------------------------------------------------------
def _fused_attention_fusion_kernel(
        num_heads,
        # data (batch folded into the row axis) + block-diagonal attention masks
        x_ref, skv_ref, fkv_ref, smask_ref, fmask_ref,
        # fused query projection for both branches (scale folded in)
        wq_ref, bq_ref,
        # slow branch: fused [K|V] projection, out-projection
        s_wkv_ref, s_bkv_ref, s_wo_ref, s_bo_ref,
        # fast branch
        f_wkv_ref, f_bkv_ref, f_wo_ref, f_bo_ref,
        # fusion MLP (W1^T pre-split into its fast / slow halves)
        w1f_ref, w1s_ref, b1_ref, w2_ref, b2_ref,
        # output
        o_ref):
    H = num_heads
    E = x_ref.shape[-1]
    hd = E // H
    cdt = wq_ref.dtype                  # MXU operand dtype (f32 here; narrower at prod scale)

    # Fused query projection for BOTH branches: one wide (BT,E)@(E,2E) matmul.
    x = x_ref[...].astype(cdt)                                            # (BT, E)
    q_all = (jnp.dot(x, wq_ref[...], preferred_element_type=jnp.float32)
             + bq_ref[...])                                               # (BT, 2E); 1/sqrt(hd) folded
    q_slow, q_fast = q_all[:, :E], q_all[:, E:]

    def attn_relu(q2d, kv_ref, mask_ref, wkv_ref, bkv_ref, wo_ref, bo_ref):
        kv = kv_ref[...].astype(cdt)                                      # (BS, D)
        # Fused [K|V] projection: one wide (BS,D)@(D,2E) matmul.
        kvp = (jnp.dot(kv, wkv_ref[...], preferred_element_type=jnp.float32)
               + bkv_ref[...])                                            # (BS, 2E)
        k2d = kvp[:, :E].astype(cdt)
        v2d = kvp[:, E:].astype(cdt)
        qc = q2d.astype(cdt)
        mask = mask_ref[...]                                              # (BT, BS) additive, f32

        # Per-head scores / softmax / PV. Tiny at these shapes; everything stays 2D.
        ctx_heads = []
        for h in range(H):                                                # static unroll
            lo = h * hd
            qh = qc[:, lo:lo + hd]                                        # (BT, hd)
            kh = k2d[:, lo:lo + hd]                                       # (BS, hd)
            vh = v2d[:, lo:lo + hd]                                       # (BS, hd)
            # Contract the last axis of both operands (no explicit kh.T).
            s = jax.lax.dot_general(qh, kh, (((1,), (1,)), ((), ())),
                                    preferred_element_type=jnp.float32)   # (BT, BS)
            s = s + mask                                                  # keep attention per-batch
            s = s - jnp.max(s, axis=-1, keepdims=True)
            p = jnp.exp(s)
            p = p / jnp.sum(p, axis=-1, keepdims=True)                    # exact softmax
            ctx_heads.append(jnp.dot(p.astype(cdt), vh,
                                     preferred_element_type=jnp.float32).astype(cdt))

        # concat over heads + out-projection == ONE wide (BT,E)@(E,E) matmul.
        ctx = jnp.concatenate(ctx_heads, axis=1)                          # (BT, E), head-major
        out = (jnp.dot(ctx, wo_ref[...], preferred_element_type=jnp.float32)
               + bo_ref[...])                                             # (BT, E)
        return jnp.maximum(out, 0.0).astype(cdt)                          # ReLU

    slow_out = attn_relu(q_slow, skv_ref, smask_ref, s_wkv_ref, s_bkv_ref, s_wo_ref, s_bo_ref)
    fast_out = attn_relu(q_fast, fkv_ref, fmask_ref, f_wkv_ref, f_bkv_ref, f_wo_ref, f_bo_ref)

    # MLP on cat([fast, slow], -1) without materializing the concat: W1^T split in wrapper.
    hmid = (jnp.dot(fast_out, w1f_ref[...], preferred_element_type=jnp.float32)
            + jnp.dot(slow_out, w1s_ref[...], preferred_element_type=jnp.float32)
            + b1_ref[...])
    hmid = jnp.maximum(hmid, 0.0).astype(cdt)
    y = jnp.dot(hmid, w2_ref[...], preferred_element_type=jnp.float32) + b2_ref[...]
    o_ref[...] = jnp.maximum(y, 0.0).astype(o_ref.dtype)


# ----------------------------------------------------------------------------
# Wrapper: one pallas_call, single grid step, everything VMEM-resident
# ----------------------------------------------------------------------------
def _block_diag_mask(B, T, S, dtype=jnp.float32):
    """Additive mask so row b*T+t only attends to columns b*S+s of the same batch b."""
    rb = jnp.repeat(jnp.arange(B), T)
    cb = jnp.repeat(jnp.arange(B), S)
    return jnp.where(rb[:, None] == cb[None, :], 0.0, -1e30).astype(dtype)


def attention_fusion_forward(frame_features, slow_result, fast_result, params, num_heads):
    B, T, E = frame_features.shape
    S_s, D_s = slow_result.shape[1], slow_result.shape[2]
    S_f, D_f = fast_result.shape[1], fast_result.shape[2]
    out_dim = params["mlp"][3].shape[1]                 # w2 is (2F, 2F)

    # Fold the batch into the row (M) axis: free row-major reshapes outside the kernel.
    x2d = frame_features.reshape(B * T, E)
    s2d = slow_result.reshape(B * S_s, D_s)
    f2d = fast_result.reshape(B * S_f, D_f)
    smask = _block_diag_mask(B, T, S_s)
    fmask = _block_diag_mask(B, T, S_f)

    operands = [x2d, s2d, f2d, smask, fmask,
                params["wq"], params["bq"],
                *params["slow"], *params["fast"], *params["mlp"]]

    def full_block(a):                                  # whole array resident in VMEM
        nd = a.ndim
        return pl.BlockSpec(a.shape, lambda i, _n=nd: (0,) * _n)

    kernel = functools.partial(_fused_attention_fusion_kernel, num_heads)

    out2d = pl.pallas_call(
        kernel,
        out_shape=jax.ShapeDtypeStruct((B * T, out_dim), frame_features.dtype),
        grid=(1,),                                      # single step: no serial-grid overhead
        in_specs=[full_block(a) for a in operands],
        out_specs=pl.BlockSpec((B * T, out_dim), lambda i: (0, 0)),
        compiler_params=pltpu.CompilerParams(
            dimension_semantics=("arbitrary",)),
    )(*operands)
    return out2d.reshape(B, T, out_dim)


# ----------------------------------------------------------------------------
# Parameter preparation (pure-JAX glue, done once outside the kernel)
# ----------------------------------------------------------------------------
def prepare_attention_params(raw, num_heads, param_dtype=jnp.float32):
    """Torch-layout MHA weights -> 2D, pre-transposed, scale-folded kernel layout."""
    E = raw["wq"].shape[0]
    hd = E // num_heads
    scale = 1.0 / math.sqrt(hd)
    bq, bk, bv = raw["b_in"][:E], raw["b_in"][E:2 * E], raw["b_in"][2 * E:]
    wq_t = (raw["wq"].T * scale).astype(param_dtype)                       # (E, E)
    bq_t = (bq * scale).astype(jnp.float32)                                # (E,)
    wkv = jnp.concatenate([raw["wk"].T, raw["wv"].T], axis=1).astype(param_dtype)   # (D, 2E)
    bkv = jnp.concatenate([bk, bv]).reshape(1, 2 * E).astype(jnp.float32)
    wo = raw["wo"].T.astype(param_dtype)                                   # (E, E)
    bo = raw["bo"].reshape(1, E).astype(jnp.float32)
    return wq_t, bq_t, wkv, bkv, wo, bo


def prepare_mlp_params(w1, b1, w2, b2, frame_dim, param_dtype=jnp.float32):
    w1_t = w1.T                                          # (2E, 2F); rows = [fast | slow]
    return (w1_t[:frame_dim].astype(param_dtype),        # multiplies fast_out
            w1_t[frame_dim:].astype(param_dtype),        # multiplies slow_out
            b1.reshape(1, -1).astype(jnp.float32),
            w2.T.astype(param_dtype),
            b2.reshape(1, -1).astype(jnp.float32))


def build_attention_fusion_params(raw_slow, raw_fast, w1, b1, w2, b2,
                                  num_heads, frame_dim, param_dtype=jnp.float32):
    s_wq, s_bq, s_wkv, s_bkv, s_wo, s_bo = prepare_attention_params(raw_slow, num_heads, param_dtype)
    f_wq, f_bq, f_wkv, f_bkv, f_wo, f_bo = prepare_attention_params(raw_fast, num_heads, param_dtype)
    # Fuse the two branches' query projections: x @ [Wq_slow | Wq_fast]  (E, 2E).
    wq_both = jnp.concatenate([s_wq, f_wq], axis=1)
    bq_both = jnp.concatenate([s_bq, f_bq]).reshape(1, 2 * frame_dim)
    return {
        "wq": wq_both,
        "bq": bq_both,
        "slow": (s_wkv, s_bkv, s_wo, s_bo),
        "fast": (f_wkv, f_bkv, f_wo, f_bo),
        "mlp": prepare_mlp_params(w1, b1, w2, b2, frame_dim, param_dtype),
    }


# ----------------------------------------------------------------------------
# Pure-JAX reference (correctness check) — built from the raw torch-layout weights
# ----------------------------------------------------------------------------
def _make_attn_raw(key, E, D):
    k = jax.random.split(key, 5)
    return {
        "wq": jax.random.normal(k[0], (E, E), jnp.float32) / math.sqrt(E),   # q_proj_weight
        "wk": jax.random.normal(k[1], (E, D), jnp.float32) / math.sqrt(D),   # k_proj_weight
        "wv": jax.random.normal(k[2], (E, D), jnp.float32) / math.sqrt(D),   # v_proj_weight
        "b_in": 0.01 * jax.random.normal(k[3], (3 * E,), jnp.float32),       # in_proj_bias
        "wo": jax.random.normal(k[4], (E, E), jnp.float32) / math.sqrt(E),   # out_proj.weight
        "bo": jnp.zeros((E,), jnp.float32),                                  # out_proj.bias
    }


def _mha_relu_ref(q, kv, raw, H):
    B, T, E = q.shape
    S = kv.shape[1]
    hd = E // H
    bq, bk, bv = raw["b_in"][:E], raw["b_in"][E:2 * E], raw["b_in"][2 * E:]
    qp = q @ raw["wq"].T + bq
    kp = kv @ raw["wk"].T + bk
    vp = kv @ raw["wv"].T + bv
    qh = qp.reshape(B, T, H, hd).transpose(0, 2, 1, 3)
    kh = kp.reshape(B, S, H, hd).transpose(0, 2, 1, 3)
    vh = vp.reshape(B, S, H, hd).transpose(0, 2, 1, 3)
    s = jnp.einsum("bhtd,bhsd->bhts", qh, kh) / math.sqrt(hd)
    p = jax.nn.softmax(s, axis=-1)
    o = jnp.einsum("bhts,bhsd->bhtd", p, vh).transpose(0, 2, 1, 3).reshape(B, T, E)
    return jax.nn.relu(o @ raw["wo"].T + raw["bo"])


def _forward_ref(frame, slow_kv, fast_kv, raw_slow, raw_fast, w1, b1, w2, b2, H):
    slow_out = _mha_relu_ref(frame, slow_kv, raw_slow, H)
    fast_out = _mha_relu_ref(frame, fast_kv, raw_fast, H)
    x = jnp.concatenate([fast_out, slow_out], axis=-1)
    h = jax.nn.relu(x @ w1.T + b1)
    return jax.nn.relu(h @ w2.T + b2)


if __name__ == "__main__":
    # Small shapes consistent with the module (frame_feature_dim scaled 2048 -> 256).
    B, T, S = 2, 8, 8
    E = 256            # frame_feature_dim (scaled from 2048)
    H = 8              # num_heads -> head_dim = 32
    D_SLOW = 128       # slow_feature_dim
    D_FAST = 256       # fast_feature_dim
    FUSION = 128       # fusion_dim; MLP: 2E -> 2*FUSION -> 2*FUSION

    root = jax.random.PRNGKey(0)
    k_in, k_slow, k_fast, k_ps, k_pf, k_w1, k_w2 = jax.random.split(root, 7)

    frame_features = jax.random.normal(k_in, (B, T, E), jnp.float32)
    slow_result = jax.random.normal(k_slow, (B, S, D_SLOW), jnp.float32)
    fast_result = jax.random.normal(k_fast, (B, S, D_FAST), jnp.float32)

    raw_slow = _make_attn_raw(k_ps, E, D_SLOW)
    raw_fast = _make_attn_raw(k_pf, E, D_FAST)

    # MLP weights in torch Linear layout (out, in).
    w1 = jax.random.normal(k_w1, (2 * FUSION, 2 * E), jnp.float32) * math.sqrt(2.0 / (2 * E))
    b1 = jnp.zeros((2 * FUSION,), jnp.float32)
    w2 = jax.random.normal(k_w2, (2 * FUSION, 2 * FUSION), jnp.float32) * math.sqrt(2.0 / (2 * FUSION))
    b2 = jnp.zeros((2 * FUSION,), jnp.float32)

    # param_dtype=jnp.bfloat16 (int8/fp8) is the intended setting at production scale;
    # f32 here so the check against the f32 reference is tight.
    params = build_attention_fusion_params(raw_slow, raw_fast, w1, b1, w2, b2,
                                           num_heads=H, frame_dim=E,
                                           param_dtype=jnp.float32)

    out = attention_fusion_forward(frame_features, slow_result, fast_result, params, H)
    out = jax.block_until_ready(out)

    ref = _forward_ref(frame_features, slow_result, fast_result,
                       raw_slow, raw_fast, w1, b1, w2, b2, H)
    assert out.shape == (B, T, 2 * FUSION), out.shape
    err = float(jnp.max(jnp.abs(out - ref)))
    assert err < 1e-3, err          # exact softmax now; only f32 accumulation-order noise

    print("KERNEL_OK")
</pallas_src>

<mosaic_0001>
module attributes {stable_mosaic.version = 11 : i64} {
  func.func @_fused_attention_fusion_kernel(%arg0: i32, %arg1: memref<16x256xf32, #tpu.memory_space<vmem>>, %arg2: memref<16x128xf32, #tpu.memory_space<vmem>>, %arg3: memref<16x256xf32, #tpu.memory_space<vmem>>, %arg4: memref<16x16xf32, #tpu.memory_space<vmem>>, %arg5: memref<16x16xf32, #tpu.memory_space<vmem>>, %arg6: memref<256x512xf32, #tpu.memory_space<vmem>>, %arg7: memref<1x512xf32, #tpu.memory_space<vmem>>, %arg8: memref<128x512xf32, #tpu.memory_space<vmem>>, %arg9: memref<1x512xf32, #tpu.memory_space<vmem>>, %arg10: memref<256x256xf32, #tpu.memory_space<vmem>>, %arg11: memref<1x256xf32, #tpu.memory_space<vmem>>, %arg12: memref<256x512xf32, #tpu.memory_space<vmem>>, %arg13: memref<1x512xf32, #tpu.memory_space<vmem>>, %arg14: memref<256x256xf32, #tpu.memory_space<vmem>>, %arg15: memref<1x256xf32, #tpu.memory_space<vmem>>, %arg16: memref<256x256xf32, #tpu.memory_space<vmem>>, %arg17: memref<256x256xf32, #tpu.memory_space<vmem>>, %arg18: memref<1x256xf32, #tpu.memory_space<vmem>>, %arg19: memref<256x256xf32, #tpu.memory_space<vmem>>, %arg20: memref<1x256xf32, #tpu.memory_space<vmem>>, %arg21: memref<16x256xf32, #tpu.memory_space<vmem>>) attributes {dimension_semantics = [#tpu.dimension_semantics<arbitrary>], iteration_bounds = array<i64: 1>, scalar_prefetch = 0 : i64, scratch_operands = 0 : i64, tpu.core_type = #tpu.core_type<tc>, window_params = [{pipeline_mode = #tpu.pipeline_mode<synchronous>, transform_indices = @transform_0, window_bounds = array<i64: 16, 256>}, {pipeline_mode = #tpu.pipeline_mode<synchronous>, transform_indices = @transform_1, window_bounds = array<i64: 16, 128>}, {pipeline_mode = #tpu.pipeline_mode<synchronous>, transform_indices = @transform_2, window_bounds = array<i64: 16, 256>}, {pipeline_mode = #tpu.pipeline_mode<synchronous>, transform_indices = @transform_3, window_bounds = array<i64: 16, 16>}, {pipeline_mode = #tpu.pipeline_mode<synchronous>, transform_indices = @transform_4, window_bounds = array<i64: 16, 16>}, {pipeline_mode = #tpu.pipeline_mode<synchronous>, transform_indices = @transform_5, window_bounds = array<i64: 256, 512>}, {pipeline_mode = #tpu.pipeline_mode<synchronous>, transform_indices = @transform_6, window_bounds = array<i64: 1, 512>}, {pipeline_mode = #tpu.pipeline_mode<synchronous>, transform_indices = @transform_7, window_bounds = array<i64: 128, 512>}, {pipeline_mode = #tpu.pipeline_mode<synchronous>, transform_indices = @transform_8, window_bounds = array<i64: 1, 512>}, {pipeline_mode = #tpu.pipeline_mode<synchronous>, transform_indices = @transform_9, window_bounds = array<i64: 256, 256>}, {pipeline_mode = #tpu.pipeline_mode<synchronous>, transform_indices = @transform_10, window_bounds = array<i64: 1, 256>}, {pipeline_mode = #tpu.pipeline_mode<synchronous>, transform_indices = @transform_11, window_bounds = array<i64: 256, 512>}, {pipeline_mode = #tpu.pipeline_mode<synchronous>, transform_indices = @transform_12, window_bounds = array<i64: 1, 512>}, {pipeline_mode = #tpu.pipeline_mode<synchronous>, transform_indices = @transform_13, window_bounds = array<i64: 256, 256>}, {pipeline_mode = #tpu.pipeline_mode<synchronous>, transform_indices = @transform_14, window_bounds = array<i64: 1, 256>}, {pipeline_mode = #tpu.pipeline_mode<synchronous>, transform_indices = @transform_15, window_bounds = array<i64: 256, 256>}, {pipeline_mode = #tpu.pipeline_mode<synchronous>, transform_indices = @transform_16, window_bounds = array<i64: 256, 256>}, {pipeline_mode = #tpu.pipeline_mode<synchronous>, transform_indices = @transform_17, window_bounds = array<i64: 1, 256>}, {pipeline_mode = #tpu.pipeline_mode<synchronous>, transform_indices = @transform_18, window_bounds = array<i64: 256, 256>}, {pipeline_mode = #tpu.pipeline_mode<synchronous>, transform_indices = @transform_19, window_bounds = array<i64: 1, 256>}, {pipeline_mode = #tpu.pipeline_mode<synchronous>, transform_indices = @transform_20, window_bounds = array<i64: 16, 256>}]} {
    %c0 = arith.constant 0 : index
    %c0_0 = arith.constant 0 : index
    %0 = vector.load %arg1[%c0, %c0_0] : memref<16x256xf32, #tpu.memory_space<vmem>>, vector<16x256xf32>
    %c0_1 = arith.constant 0 : index
    %c0_2 = arith.constant 0 : index
    %1 = vector.load %arg6[%c0_1, %c0_2] : memref<256x512xf32, #tpu.memory_space<vmem>>, vector<256x512xf32>
    %cst = arith.constant dense<0.000000e+00> : vector<16x512xf32>
    %2 = tpu.matmul %0, %1, %cst {dimension_numbers = #tpu.dot_dimension_numbers<[1], [0], [0], [1], [0, 0, 1, 1], [], []>} : vector<16x256xf32>, vector<256x512xf32>, vector<16x512xf32> -> vector<16x512xf32>
    %c0_3 = arith.constant 0 : index
    %c0_4 = arith.constant 0 : index
    %3 = vector.load %arg7[%c0_3, %c0_4] : memref<1x512xf32, #tpu.memory_space<vmem>>, vector<1x512xf32>
    %4 = vector.broadcast %3 : vector<1x512xf32> to vector<16x512xf32>
    %5 = arith.addf %2, %4 : vector<16x512xf32>
    %6 = vector.extract_strided_slice %5 {offsets = [0, 0], sizes = [16, 256], strides = [1, 1]} : vector<16x512xf32> to vector<16x256xf32>
    %7 = vector.extract_strided_slice %5 {offsets = [0, 256], sizes = [16, 256], strides = [1, 1]} : vector<16x512xf32> to vector<16x256xf32>
    %c0_5 = arith.constant 0 : index
    %c0_6 = arith.constant 0 : index
    %8 = vector.load %arg2[%c0_5, %c0_6] : memref<16x128xf32, #tpu.memory_space<vmem>>, vector<16x128xf32>
    %c0_7 = arith.constant 0 : index
    %c0_8 = arith.constant 0 : index
    %9 = vector.load %arg8[%c0_7, %c0_8] : memref<128x512xf32, #tpu.memory_space<vmem>>, vector<128x512xf32>
    %cst_9 = arith.constant dense<0.000000e+00> : vector<16x512xf32>
    %10 = tpu.matmul %8, %9, %cst_9 {dimension_numbers = #tpu.dot_dimension_numbers<[1], [0], [0], [1], [0, 0, 1, 1], [], []>} : vector<16x128xf32>, vector<128x512xf32>, vector<16x512xf32> -> vector<16x512xf32>
    %c0_10 = arith.constant 0 : index
    %c0_11 = arith.constant 0 : index
    %11 = vector.load %arg9[%c0_10, %c0_11] : memref<1x512xf32, #tpu.memory_space<vmem>>, vector<1x512xf32>
    %12 = vector.broadcast %11 : vector<1x512xf32> to vector<16x512xf32>
    %13 = arith.addf %10, %12 : vector<16x512xf32>
    %14 = vector.extract_strided_slice %13 {offsets = [0, 0], sizes = [16, 256], strides = [1, 1]} : vector<16x512xf32> to vector<16x256xf32>
    %15 = vector.extract_strided_slice %13 {offsets = [0, 256], sizes = [16, 256], strides = [1, 1]} : vector<16x512xf32> to vector<16x256xf32>
    %c0_12 = arith.constant 0 : index
    %c0_13 = arith.constant 0 : index
    %16 = vector.load %arg4[%c0_12, %c0_13] : memref<16x16xf32, #tpu.memory_space<vmem>>, vector<16x16xf32>
    %17 = vector.extract_strided_slice %6 {offsets = [0, 0], sizes = [16, 32], strides = [1, 1]} : vector<16x256xf32> to vector<16x32xf32>
    %18 = vector.extract_strided_slice %14 {offsets = [0, 0], sizes = [16, 32], strides = [1, 1]} : vector<16x256xf32> to vector<16x32xf32>
    %19 = vector.extract_strided_slice %15 {offsets = [0, 0], sizes = [16, 32], strides = [1, 1]} : vector<16x256xf32> to vector<16x32xf32>
    %cst_14 = arith.constant dense<0.000000e+00> : vector<16x16xf32>
    %20 = tpu.matmul %17, %18, %cst_14 {dimension_numbers = #tpu.dot_dimension_numbers<[1], [1], [0], [0], [0, 0, 1, 0], [], []>} : vector<16x32xf32>, vector<16x32xf32>, vector<16x16xf32> -> vector<16x16xf32>
    %21 = arith.addf %20, %16 : vector<16x16xf32>
    %cst_15 = arith.constant dense<0xFF800000> : vector<16xf32>
    %22 = vector.multi_reduction <maximumf>, %21, %cst_15 [1] : vector<16x16xf32> to vector<16xf32>
    %23 = vector.shape_cast %22 : vector<16xf32> to vector<16x1xf32>
    %24 = vector.broadcast %23 : vector<16x1xf32> to vector<16x16xf32>
    %25 = arith.subf %21, %24 : vector<16x16xf32>
    %26 = math.exp %25 : vector<16x16xf32>
    %cst_16 = arith.constant dense<0.000000e+00> : vector<16xf32>
    %27 = vector.multi_reduction <add>, %26, %cst_16 [1] : vector<16x16xf32> to vector<16xf32>
    %28 = vector.shape_cast %27 : vector<16xf32> to vector<16x1xf32>
    %29 = vector.broadcast %28 : vector<16x1xf32> to vector<16x16xf32>
    %30 = arith.divf %26, %29 : vector<16x16xf32>
    %cst_17 = arith.constant dense<0.000000e+00> : vector<16x32xf32>
    %31 = tpu.matmul %30, %19, %cst_17 {dimension_numbers = #tpu.dot_dimension_numbers<[1], [0], [0], [1], [0, 0, 1, 1], [], []>} : vector<16x16xf32>, vector<16x32xf32>, vector<16x32xf32> -> vector<16x32xf32>
    %32 = vector.extract_strided_slice %6 {offsets = [0, 32], sizes = [16, 32], strides = [1, 1]} : vector<16x256xf32> to vector<16x32xf32>
    %33 = vector.extract_strided_slice %14 {offsets = [0, 32], sizes = [16, 32], strides = [1, 1]} : vector<16x256xf32> to vector<16x32xf32>
    %34 = vector.extract_strided_slice %15 {offsets = [0, 32], sizes = [16, 32], strides = [1, 1]} : vector<16x256xf32> to vector<16x32xf32>
    %cst_18 = arith.constant dense<0.000000e+00> : vector<16x16xf32>
    %35 = tpu.matmul %32, %33, %cst_18 {dimension_numbers = #tpu.dot_dimension_numbers<[1], [1], [0], [0], [0, 0, 1, 0], [], []>} : vector<16x32xf32>, vector<16x32xf32>, vector<16x16xf32> -> vector<16x16xf32>
    %36 = arith.addf %35, %16 : vector<16x16xf32>
    %cst_19 = arith.constant dense<0xFF800000> : vector<16xf32>
    %37 = vector.multi_reduction <maximumf>, %36, %cst_19 [1] : vector<16x16xf32> to vector<16xf32>
    %38 = vector.shape_cast %37 : vector<16xf32> to vector<16x1xf32>
    %39 = vector.broadcast %38 : vector<16x1xf32> to vector<16x16xf32>
    %40 = arith.subf %36, %39 : vector<16x16xf32>
    %41 = math.exp %40 : vector<16x16xf32>
    %cst_20 = arith.constant dense<0.000000e+00> : vector<16xf32>
    %42 = vector.multi_reduction <add>, %41, %cst_20 [1] : vector<16x16xf32> to vector<16xf32>
    %43 = vector.shape_cast %42 : vector<16xf32> to vector<16x1xf32>
    %44 = vector.broadcast %43 : vector<16x1xf32> to vector<16x16xf32>
    %45 = arith.divf %41, %44 : vector<16x16xf32>
    %cst_21 = arith.constant dense<0.000000e+00> : vector<16x32xf32>
    %46 = tpu.matmul %45, %34, %cst_21 {dimension_numbers = #tpu.dot_dimension_numbers<[1], [0], [0], [1], [0, 0, 1, 1], [], []>} : vector<16x16xf32>, vector<16x32xf32>, vector<16x32xf32> -> vector<16x32xf32>
    %47 = vector.extract_strided_slice %6 {offsets = [0, 64], sizes = [16, 32], strides = [1, 1]} : vector<16x256xf32> to vector<16x32xf32>
    %48 = vector.extract_strided_slice %14 {offsets = [0, 64], sizes = [16, 32], strides = [1, 1]} : vector<16x256xf32> to vector<16x32xf32>
    %49 = vector.extract_strided_slice %15 {offsets = [0, 64], sizes = [16, 32], strides = [1, 1]} : vector<16x256xf32> to vector<16x32xf32>
    %cst_22 = arith.constant dense<0.000000e+00> : vector<16x16xf32>
    %50 = tpu.matmul %47, %48, %cst_22 {dimension_numbers = #tpu.dot_dimension_numbers<[1], [1], [0], [0], [0, 0, 1, 0], [], []>} : vector<16x32xf32>, vector<16x32xf32>, vector<16x16xf32> -> vector<16x16xf32>
    %51 = arith.addf %50, %16 : vector<16x16xf32>
    %cst_23 = arith.constant dense<0xFF800000> : vector<16xf32>
    %52 = vector.multi_reduction <maximumf>, %51, %cst_23 [1] : vector<16x16xf32> to vector<16xf32>
    %53 = vector.shape_cast %52 : vector<16xf32> to vector<16x1xf32>
    %54 = vector.broadcast %53 : vector<16x1xf32> to vector<16x16xf32>
    %55 = arith.subf %51, %54 : vector<16x16xf32>
    %56 = math.exp %55 : vector<16x16xf32>
    %cst_24 = arith.constant dense<0.000000e+00> : vector<16xf32>
    %57 = vector.multi_reduction <add>, %56, %cst_24 [1] : vector<16x16xf32> to vector<16xf32>
    %58 = vector.shape_cast %57 : vector<16xf32> to vector<16x1xf32>
    %59 = vector.broadcast %58 : vector<16x1xf32> to vector<16x16xf32>
    %60 = arith.divf %56, %59 : vector<16x16xf32>
    %cst_25 = arith.constant dense<0.000000e+00> : vector<16x32xf32>
    %61 = tpu.matmul %60, %49, %cst_25 {dimension_numbers = #tpu.dot_dimension_numbers<[1], [0], [0], [1], [0, 0, 1, 1], [], []>} : vector<16x16xf32>, vector<16x32xf32>, vector<16x32xf32> -> vector<16x32xf32>
    %62 = vector.extract_strided_slice %6 {offsets = [0, 96], sizes = [16, 32], strides = [1, 1]} : vector<16x256xf32> to vector<16x32xf32>
    %63 = vector.extract_strided_slice %14 {offsets = [0, 96], sizes = [16, 32], strides = [1, 1]} : vector<16x256xf32> to vector<16x32xf32>
    %64 = vector.extract_strided_slice %15 {offsets = [0, 96], sizes = [16, 32], strides = [1, 1]} : vector<16x256xf32> to vector<16x32xf32>
    %cst_26 = arith.constant dense<0.000000e+00> : vector<16x16xf32>
    %65 = tpu.matmul %62, %63, %cst_26 {dimension_numbers = #tpu.dot_dimension_numbers<[1], [1], [0], [0], [0, 0, 1, 0], [], []>} : vector<16x32xf32>, vector<16x32xf32>, vector<16x16xf32> -> vector<16x16xf32>
    %66 = arith.addf %65, %16 : vector<16x16xf32>
    %cst_27 = arith.constant dense<0xFF800000> : vector<16xf32>
    %67 = vector.multi_reduction <maximumf>, %66, %cst_27 [1] : vector<16x16xf32> to vector<16xf32>
    %68 = vector.shape_cast %67 : vector<16xf32> to vector<16x1xf32>
    %69 = vector.broadcast %68 : vector<16x1xf32> to vector<16x16xf32>
    %70 = arith.subf %66, %69 : vector<16x16xf32>
    %71 = math.exp %70 : vector<16x16xf32>
    %cst_28 = arith.constant dense<0.000000e+00> : vector<16xf32>
    %72 = vector.multi_reduction <add>, %71, %cst_28 [1] : vector<16x16xf32> to vector<16xf32>
    %73 = vector.shape_cast %72 : vector<16xf32> to vector<16x1xf32>
    %74 = vector.broadcast %73 : vector<16x1xf32> to vector<16x16xf32>
    %75 = arith.divf %71, %74 : vector<16x16xf32>
    %cst_29 = arith.constant dense<0.000000e+00> : vector<16x32xf32>
    %76 = tpu.matmul %75, %64, %cst_29 {dimension_numbers = #tpu.dot_dimension_numbers<[1], [0], [0], [1], [0, 0, 1, 1], [], []>} : vector<16x16xf32>, vector<16x32xf32>, vector<16x32xf32> -> vector<16x32xf32>
    %77 = vector.extract_strided_slice %6 {offsets = [0, 128], sizes = [16, 32], strides = [1, 1]} : vector<16x256xf32> to vector<16x32xf32>
    %78 = vector.extract_strided_slice %14 {offsets = [0, 128], sizes = [16, 32], strides = [1, 1]} : vector<16x256xf32> to vector<16x32xf32>
    %79 = vector.extract_strided_slice %15 {offsets = [0, 128], sizes = [16, 32], strides = [1, 1]} : vector<16x256xf32> to vector<16x32xf32>
    %cst_30 = arith.constant dense<0.000000e+00> : vector<16x16xf32>
    %80 = tpu.matmul %77, %78, %cst_30 {dimension_numbers = #tpu.dot_dimension_numbers<[1], [1], [0], [0], [0, 0, 1, 0], [], []>} : vector<16x32xf32>, vector<16x32xf32>, vector<16x16xf32> -> vector<16x16xf32>
    %81 = arith.addf %80, %16 : vector<16x16xf32>
    %cst_31 = arith.constant dense<0xFF800000> : vector<16xf32>
    %82 = vector.multi_reduction <maximumf>, %81, %cst_31 [1] : vector<16x16xf32> to vector<16xf32>
    %83 = vector.shape_cast %82 : vector<16xf32> to vector<16x1xf32>
    %84 = vector.broadcast %83 : vector<16x1xf32> to vector<16x16xf32>
    %85 = arith.subf %81, %84 : vector<16x16xf32>
    %86 = math.exp %85 : vector<16x16xf32>
    %cst_32 = arith.constant dense<0.000000e+00> : vector<16xf32>
    %87 = vector.multi_reduction <add>, %86, %cst_32 [1] : vector<16x16xf32> to vector<16xf32>
    %88 = vector.shape_cast %87 : vector<16xf32> to vector<16x1xf32>
    %89 = vector.broadcast %88 : vector<16x1xf32> to vector<16x16xf32>
    %90 = arith.divf %86, %89 : vector<16x16xf32>
    %cst_33 = arith.constant dense<0.000000e+00> : vector<16x32xf32>
    %91 = tpu.matmul %90, %79, %cst_33 {dimension_numbers = #tpu.dot_dimension_numbers<[1], [0], [0], [1], [0, 0, 1, 1], [], []>} : vector<16x16xf32>, vector<16x32xf32>, vector<16x32xf32> -> vector<16x32xf32>
    %92 = vector.extract_strided_slice %6 {offsets = [0, 160], sizes = [16, 32], strides = [1, 1]} : vector<16x256xf32> to vector<16x32xf32>
    %93 = vector.extract_strided_slice %14 {offsets = [0, 160], sizes = [16, 32], strides = [1, 1]} : vector<16x256xf32> to vector<16x32xf32>
    %94 = vector.extract_strided_slice %15 {offsets = [0, 160], sizes = [16, 32], strides = [1, 1]} : vector<16x256xf32> to vector<16x32xf32>
    %cst_34 = arith.constant dense<0.000000e+00> : vector<16x16xf32>
    %95 = tpu.matmul %92, %93, %cst_34 {dimension_numbers = #tpu.dot_dimension_numbers<[1], [1], [0], [0], [0, 0, 1, 0], [], []>} : vector<16x32xf32>, vector<16x32xf32>, vector<16x16xf32> -> vector<16x16xf32>
    %96 = arith.addf %95, %16 : vector<16x16xf32>
    %cst_35 = arith.constant dense<0xFF800000> : vector<16xf32>
    %97 = vector.multi_reduction <maximumf>, %96, %cst_35 [1] : vector<16x16xf32> to vector<16xf32>
    %98 = vector.shape_cast %97 : vector<16xf32> to vector<16x1xf32>
    %99 = vector.broadcast %98 : vector<16x1xf32> to vector<16x16xf32>
    %100 = arith.subf %96, %99 : vector<16x16xf32>
    %101 = math.exp %100 : vector<16x16xf32>
    %cst_36 = arith.constant dense<0.000000e+00> : vector<16xf32>
    %102 = vector.multi_reduction <add>, %101, %cst_36 [1] : vector<16x16xf32> to vector<16xf32>
    %103 = vector.shape_cast %102 : vector<16xf32> to vector<16x1xf32>
    %104 = vector.broadcast %103 : vector<16x1xf32> to vector<16x16xf32>
    %105 = arith.divf %101, %104 : vector<16x16xf32>
    %cst_37 = arith.constant dense<0.000000e+00> : vector<16x32xf32>
    %106 = tpu.matmul %105, %94, %cst_37 {dimension_numbers = #tpu.dot_dimension_numbers<[1], [0], [0], [1], [0, 0, 1, 1], [], []>} : vector<16x16xf32>, vector<16x32xf32>, vector<16x32xf32> -> vector<16x32xf32>
    %107 = vector.extract_strided_slice %6 {offsets = [0, 192], sizes = [16, 32], strides = [1, 1]} : vector<16x256xf32> to vector<16x32xf32>
    %108 = vector.extract_strided_slice %14 {offsets = [0, 192], sizes = [16, 32], strides = [1, 1]} : vector<16x256xf32> to vector<16x32xf32>
    %109 = vector.extract_strided_slice %15 {offsets = [0, 192], sizes = [16, 32], strides = [1, 1]} : vector<16x256xf32> to vector<16x32xf32>
    %cst_38 = arith.constant dense<0.000000e+00> : vector<16x16xf32>
    %110 = tpu.matmul %107, %108, %cst_38 {dimension_numbers = #tpu.dot_dimension_numbers<[1], [1], [0], [0], [0, 0, 1, 0], [], []>} : vector<16x32xf32>, vector<16x32xf32>, vector<16x16xf32> -> vector<16x16xf32>
    %111 = arith.addf %110, %16 : vector<16x16xf32>
    %cst_39 = arith.constant dense<0xFF800000> : vector<16xf32>
    %112 = vector.multi_reduction <maximumf>, %111, %cst_39 [1] : vector<16x16xf32> to vector<16xf32>
    %113 = vector.shape_cast %112 : vector<16xf32> to vector<16x1xf32>
    %114 = vector.broadcast %113 : vector<16x1xf32> to vector<16x16xf32>
    %115 = arith.subf %111, %114 : vector<16x16xf32>
    %116 = math.exp %115 : vector<16x16xf32>
    %cst_40 = arith.constant dense<0.000000e+00> : vector<16xf32>
    %117 = vector.multi_reduction <add>, %116, %cst_40 [1] : vector<16x16xf32> to vector<16xf32>
    %118 = vector.shape_cast %117 : vector<16xf32> to vector<16x1xf32>
    %119 = vector.broadcast %118 : vector<16x1xf32> to vector<16x16xf32>
    %120 = arith.divf %116, %119 : vector<16x16xf32>
    %cst_41 = arith.constant dense<0.000000e+00> : vector<16x32xf32>
    %121 = tpu.matmul %120, %109, %cst_41 {dimension_numbers = #tpu.dot_dimension_numbers<[1], [0], [0], [1], [0, 0, 1, 1], [], []>} : vector<16x16xf32>, vector<16x32xf32>, vector<16x32xf32> -> vector<16x32xf32>
    %122 = vector.extract_strided_slice %6 {offsets = [0, 224], sizes = [16, 32], strides = [1, 1]} : vector<16x256xf32> to vector<16x32xf32>
    %123 = vector.extract_strided_slice %14 {offsets = [0, 224], sizes = [16, 32], strides = [1, 1]} : vector<16x256xf32> to vector<16x32xf32>
    %124 = vector.extract_strided_slice %15 {offsets = [0, 224], sizes = [16, 32], strides = [1, 1]} : vector<16x256xf32> to vector<16x32xf32>
    %cst_42 = arith.constant dense<0.000000e+00> : vector<16x16xf32>
    %125 = tpu.matmul %122, %123, %cst_42 {dimension_numbers = #tpu.dot_dimension_numbers<[1], [1], [0], [0], [0, 0, 1, 0], [], []>} : vector<16x32xf32>, vector<16x32xf32>, vector<16x16xf32> -> vector<16x16xf32>
    %126 = arith.addf %125, %16 : vector<16x16xf32>
    %cst_43 = arith.constant dense<0xFF800000> : vector<16xf32>
    %127 = vector.multi_reduction <maximumf>, %126, %cst_43 [1] : vector<16x16xf32> to vector<16xf32>
    %128 = vector.shape_cast %127 : vector<16xf32> to vector<16x1xf32>
    %129 = vector.broadcast %128 : vector<16x1xf32> to vector<16x16xf32>
    %130 = arith.subf %126, %129 : vector<16x16xf32>
    %131 = math.exp %130 : vector<16x16xf32>
    %cst_44 = arith.constant dense<0.000000e+00> : vector<16xf32>
    %132 = vector.multi_reduction <add>, %131, %cst_44 [1] : vector<16x16xf32> to vector<16xf32>
    %133 = vector.shape_cast %132 : vector<16xf32> to vector<16x1xf32>
    %134 = vector.broadcast %133 : vector<16x1xf32> to vector<16x16xf32>
    %135 = arith.divf %131, %134 : vector<16x16xf32>
    %cst_45 = arith.constant dense<0.000000e+00> : vector<16x32xf32>
    %136 = tpu.matmul %135, %124, %cst_45 {dimension_numbers = #tpu.dot_dimension_numbers<[1], [0], [0], [1], [0, 0, 1, 1], [], []>} : vector<16x16xf32>, vector<16x32xf32>, vector<16x32xf32> -> vector<16x32xf32>
    %137 = tpu.concatenate %31, %46, %61, %76, %91, %106, %121, %136 in 1 : vector<16x32xf32>, vector<16x32xf32>, vector<16x32xf32>, vector<16x32xf32>, vector<16x32xf32>, vector<16x32xf32>, vector<16x32xf32>, vector<16x32xf32> -> vector<16x256xf32>
    %c0_46 = arith.constant 0 : index
    %c0_47 = arith.constant 0 : index
    %138 = vector.load %arg10[%c0_46, %c0_47] : memref<256x256xf32, #tpu.memory_space<vmem>>, vector<256x256xf32>
    %cst_48 = arith.constant dense<0.000000e+00> : vector<16x256xf32>
    %139 = tpu.matmul %137, %138, %cst_48 {dimension_numbers = #tpu.dot_dimension_numbers<[1], [0], [0], [1], [0, 0, 1, 1], [], []>} : vector<16x256xf32>, vector<256x256xf32>, vector<16x256xf32> -> vector<16x256xf32>
    %c0_49 = arith.constant 0 : index
    %c0_50 = arith.constant 0 : index
    %140 = vector.load %arg11[%c0_49, %c0_50] : memref<1x256xf32, #tpu.memory_space<vmem>>, vector<1x256xf32>
    %141 = vector.broadcast %140 : vector<1x256xf32> to vector<16x256xf32>
    %142 = arith.addf %139, %141 : vector<16x256xf32>
    %cst_51 = arith.constant 0.000000e+00 : f32
    %143 = vector.broadcast %cst_51 : f32 to vector<16x256xf32>
    %144 = arith.maximumf %142, %143 : vector<16x256xf32>
    %c0_52 = arith.constant 0 : index
    %c0_53 = arith.constant 0 : index
    %145 = vector.load %arg3[%c0_52, %c0_53] : memref<16x256xf32, #tpu.memory_space<vmem>>, vector<16x256xf32>
    %c0_54 = arith.constant 0 : index
    %c0_55 = arith.constant 0 : index
    %146 = vector.load %arg12[%c0_54, %c0_55] : memref<256x512xf32, #tpu.memory_space<vmem>>, vector<256x512xf32>
    %cst_56 = arith.constant dense<0.000000e+00> : vector<16x512xf32>
    %147 = tpu.matmul %145, %146, %cst_56 {dimension_numbers = #tpu.dot_dimension_numbers<[1], [0], [0], [1], [0, 0, 1, 1], [], []>} : vector<16x256xf32>, vector<256x512xf32>, vector<16x512xf32> -> vector<16x512xf32>
    %c0_57 = arith.constant 0 : index
    %c0_58 = arith.constant 0 : index
    %148 = vector.load %arg13[%c0_57, %c0_58] : memref<1x512xf32, #tpu.memory_space<vmem>>, vector<1x512xf32>
    %149 = vector.broadcast %148 : vector<1x512xf32> to vector<16x512xf32>
    %150 = arith.addf %147, %149 : vector<16x512xf32>
    %151 = vector.extract_strided_slice %150 {offsets = [0, 0], sizes = [16, 256], strides = [1, 1]} : vector<16x512xf32> to vector<16x256xf32>
    %152 = vector.extract_strided_slice %150 {offsets = [0, 256], sizes = [16, 256], strides = [1, 1]} : vector<16x512xf32> to vector<16x256xf32>
    %c0_59 = arith.constant 0 : index
    %c0_60 = arith.constant 0 : index
    %153 = vector.load %arg5[%c0_59, %c0_60] : memref<16x16xf32, #tpu.memory_space<vmem>>, vector<16x16xf32>
    %154 = vector.extract_strided_slice %7 {offsets = [0, 0], sizes = [16, 32], strides = [1, 1]} : vector<16x256xf32> to vector<16x32xf32>
    %155 = vector.extract_strided_slice %151 {offsets = [0, 0], sizes = [16, 32], strides = [1, 1]} : vector<16x256xf32> to vector<16x32xf32>
    %156 = vector.extract_strided_slice %152 {offsets = [0, 0], sizes = [16, 32], strides = [1, 1]} : vector<16x256xf32> to vector<16x32xf32>
    %cst_61 = arith.constant dense<0.000000e+00> : vector<16x16xf32>
    %157 = tpu.matmul %154, %155, %cst_61 {dimension_numbers = #tpu.dot_dimension_numbers<[1], [1], [0], [0], [0, 0, 1, 0], [], []>} : vector<16x32xf32>, vector<16x32xf32>, vector<16x16xf32> -> vector<16x16xf32>
    %158 = arith.addf %157, %153 : vector<16x16xf32>
    %cst_62 = arith.constant dense<0xFF800000> : vector<16xf32>
    %159 = vector.multi_reduction <maximumf>, %158, %cst_62 [1] : vector<16x16xf32> to vector<16xf32>
    %160 = vector.shape_cast %159 : vector<16xf32> to vector<16x1xf32>
    %161 = vector.broadcast %160 : vector<16x1xf32> to vector<16x16xf32>
    %162 = arith.subf %158, %161 : vector<16x16xf32>
    %163 = math.exp %162 : vector<16x16xf32>
    %cst_63 = arith.constant dense<0.000000e+00> : vector<16xf32>
    %164 = vector.multi_reduction <add>, %163, %cst_63 [1] : vector<16x16xf32> to vector<16xf32>
    %165 = vector.shape_cast %164 : vector<16xf32> to vector<16x1xf32>
    %166 = vector.broadcast %165 : vector<16x1xf32> to vector<16x16xf32>
    %167 = arith.divf %163, %166 : vector<16x16xf32>
    %cst_64 = arith.constant dense<0.000000e+00> : vector<16x32xf32>
    %168 = tpu.matmul %167, %156, %cst_64 {dimension_numbers = #tpu.dot_dimension_numbers<[1], [0], [0], [1], [0, 0, 1, 1], [], []>} : vector<16x16xf32>, vector<16x32xf32>, vector<16x32xf32> -> vector<16x32xf32>
    %169 = vector.extract_strided_slice %7 {offsets = [0, 32], sizes = [16, 32], strides = [1, 1]} : vector<16x256xf32> to vector<16x32xf32>
    %170 = vector.extract_strided_slice %151 {offsets = [0, 32], sizes = [16, 32], strides = [1, 1]} : vector<16x256xf32> to vector<16x32xf32>
    %171 = vector.extract_strided_slice %152 {offsets = [0, 32], sizes = [16, 32], strides = [1, 1]} : vector<16x256xf32> to vector<16x32xf32>
    %cst_65 = arith.constant dense<0.000000e+00> : vector<16x16xf32>
    %172 = tpu.matmul %169, %170, %cst_65 {dimension_numbers = #tpu.dot_dimension_numbers<[1], [1], [0], [0], [0, 0, 1, 0], [], []>} : vector<16x32xf32>, vector<16x32xf32>, vector<16x16xf32> -> vector<16x16xf32>
    %173 = arith.addf %172, %153 : vector<16x16xf32>
    %cst_66 = arith.constant dense<0xFF800000> : vector<16xf32>
    %174 = vector.multi_reduction <maximumf>, %173, %cst_66 [1] : vector<16x16xf32> to vector<16xf32>
    %175 = vector.shape_cast %174 : vector<16xf32> to vector<16x1xf32>
    %176 = vector.broadcast %175 : vector<16x1xf32> to vector<16x16xf32>
    %177 = arith.subf %173, %176 : vector<16x16xf32>
    %178 = math.exp %177 : vector<16x16xf32>
    %cst_67 = arith.constant dense<0.000000e+00> : vector<16xf32>
    %179 = vector.multi_reduction <add>, %178, %cst_67 [1] : vector<16x16xf32> to vector<16xf32>
    %180 = vector.shape_cast %179 : vector<16xf32> to vector<16x1xf32>
    %181 = vector.broadcast %180 : vector<16x1xf32> to vector<16x16xf32>
    %182 = arith.divf %178, %181 : vector<16x16xf32>
    %cst_68 = arith.constant dense<0.000000e+00> : vector<16x32xf32>
    %183 = tpu.matmul %182, %171, %cst_68 {dimension_numbers = #tpu.dot_dimension_numbers<[1], [0], [0], [1], [0, 0, 1, 1], [], []>} : vector<16x16xf32>, vector<16x32xf32>, vector<16x32xf32> -> vector<16x32xf32>
    %184 = vector.extract_strided_slice %7 {offsets = [0, 64], sizes = [16, 32], strides = [1, 1]} : vector<16x256xf32> to vector<16x32xf32>
    %185 = vector.extract_strided_slice %151 {offsets = [0, 64], sizes = [16, 32], strides = [1, 1]} : vector<16x256xf32> to vector<16x32xf32>
    %186 = vector.extract_strided_slice %152 {offsets = [0, 64], sizes = [16, 32], strides = [1, 1]} : vector<16x256xf32> to vector<16x32xf32>
    %cst_69 = arith.constant dense<0.000000e+00> : vector<16x16xf32>
    %187 = tpu.matmul %184, %185, %cst_69 {dimension_numbers = #tpu.dot_dimension_numbers<[1], [1], [0], [0], [0, 0, 1, 0], [], []>} : vector<16x32xf32>, vector<16x32xf32>, vector<16x16xf32> -> vector<16x16xf32>
    %188 = arith.addf %187, %153 : vector<16x16xf32>
    %cst_70 = arith.constant dense<0xFF800000> : vector<16xf32>
    %189 = vector.multi_reduction <maximumf>, %188, %cst_70 [1] : vector<16x16xf32> to vector<16xf32>
    %190 = vector.shape_cast %189 : vector<16xf32> to vector<16x1xf32>
    %191 = vector.broadcast %190 : vector<16x1xf32> to vector<16x16xf32>
    %192 = arith.subf %188, %191 : vector<16x16xf32>
    %193 = math.exp %192 : vector<16x16xf32>
    %cst_71 = arith.constant dense<0.000000e+00> : vector<16xf32>
    %194 = vector.multi_reduction <add>, %193, %cst_71 [1] : vector<16x16xf32> to vector<16xf32>
    %195 = vector.shape_cast %194 : vector<16xf32> to vector<16x1xf32>
    %196 = vector.broadcast %195 : vector<16x1xf32> to vector<16x16xf32>
    %197 = arith.divf %193, %196 : vector<16x16xf32>
    %cst_72 = arith.constant dense<0.000000e+00> : vector<16x32xf32>
    %198 = tpu.matmul %197, %186, %cst_72 {dimension_numbers = #tpu.dot_dimension_numbers<[1], [0], [0], [1], [0, 0, 1, 1], [], []>} : vector<16x16xf32>, vector<16x32xf32>, vector<16x32xf32> -> vector<16x32xf32>
    %199 = vector.extract_strided_slice %7 {offsets = [0, 96], sizes = [16, 32], strides = [1, 1]} : vector<16x256xf32> to vector<16x32xf32>
    %200 = vector.extract_strided_slice %151 {offsets = [0, 96], sizes = [16, 32], strides = [1, 1]} : vector<16x256xf32> to vector<16x32xf32>
    %201 = vector.extract_strided_slice %152 {offsets = [0, 96], sizes = [16, 32], strides = [1, 1]} : vector<16x256xf32> to vector<16x32xf32>
    %cst_73 = arith.constant dense<0.000000e+00> : vector<16x16xf32>
    %202 = tpu.matmul %199, %200, %cst_73 {dimension_numbers = #tpu.dot_dimension_numbers<[1], [1], [0], [0], [0, 0, 1, 0], [], []>} : vector<16x32xf32>, vector<16x32xf32>, vector<16x16xf32> -> vector<16x16xf32>
    %203 = arith.addf %202, %153 : vector<16x16xf32>
    %cst_74 = arith.constant dense<0xFF800000> : vector<16xf32>
    %204 = vector.multi_reduction <maximumf>, %203, %cst_74 [1] : vector<16x16xf32> to vector<16xf32>
    %205 = vector.shape_cast %204 : vector<16xf32> to vector<16x1xf32>
    %206 = vector.broadcast %205 : vector<16x1xf32> to vector<16x16xf32>
    %207 = arith.subf %203, %206 : vector<16x16xf32>
    %208 = math.exp %207 : vector<16x16xf32>
    %cst_75 = arith.constant dense<0.000000e+00> : vector<16xf32>
    %209 = vector.multi_reduction <add>, %208, %cst_75 [1] : vector<16x16xf32> to vector<16xf32>
    %210 = vector.shape_cast %209 : vector<16xf32> to vector<16x1xf32>
    %211 = vector.broadcast %210 : vector<16x1xf32> to vector<16x16xf32>
    %212 = arith.divf %208, %211 : vector<16x16xf32>
    %cst_76 = arith.constant dense<0.000000e+00> : vector<16x32xf32>
    %213 = tpu.matmul %212, %201, %cst_76 {dimension_numbers = #tpu.dot_dimension_numbers<[1], [0], [0], [1], [0, 0, 1, 1], [], []>} : vector<16x16xf32>, vector<16x32xf32>, vector<16x32xf32> -> vector<16x32xf32>
    %214 = vector.extract_strided_slice %7 {offsets = [0, 128], sizes = [16, 32], strides = [1, 1]} : vector<16x256xf32> to vector<16x32xf32>
    %215 = vector.extract_strided_slice %151 {offsets = [0, 128], sizes = [16, 32], strides = [1, 1]} : vector<16x256xf32> to vector<16x32xf32>
    %216 = vector.extract_strided_slice %152 {offsets = [0, 128], sizes = [16, 32], strides = [1, 1]} : vector<16x256xf32> to vector<16x32xf32>
    %cst_77 = arith.constant dense<0.000000e+00> : vector<16x16xf32>
    %217 = tpu.matmul %214, %215, %cst_77 {dimension_numbers = #tpu.dot_dimension_numbers<[1], [1], [0], [0], [0, 0, 1, 0], [], []>} : vector<16x32xf32>, vector<16x32xf32>, vector<16x16xf32> -> vector<16x16xf32>
    %218 = arith.addf %217, %153 : vector<16x16xf32>
    %cst_78 = arith.constant dense<0xFF800000> : vector<16xf32>
    %219 = vector.multi_reduction <maximumf>, %218, %cst_78 [1] : vector<16x16xf32> to vector<16xf32>
    %220 = vector.shape_cast %219 : vector<16xf32> to vector<16x1xf32>
    %221 = vector.broadcast %220 : vector<16x1xf32> to vector<16x16xf32>
    %222 = arith.subf %218, %221 : vector<16x16xf32>
    %223 = math.exp %222 : vector<16x16xf32>
    %cst_79 = arith.constant dense<0.000000e+00> : vector<16xf32>
    %224 = vector.multi_reduction <add>, %223, %cst_79 [1] : vector<16x16xf32> to vector<16xf32>
    %225 = vector.shape_cast %224 : vector<16xf32> to vector<16x1xf32>
    %226 = vector.broadcast %225 : vector<16x1xf32> to vector<16x16xf32>
    %227 = arith.divf %223, %226 : vector<16x16xf32>
    %cst_80 = arith.constant dense<0.000000e+00> : vector<16x32xf32>
    %228 = tpu.matmul %227, %216, %cst_80 {dimension_numbers = #tpu.dot_dimension_numbers<[1], [0], [0], [1], [0, 0, 1, 1], [], []>} : vector<16x16xf32>, vector<16x32xf32>, vector<16x32xf32> -> vector<16x32xf32>
    %229 = vector.extract_strided_slice %7 {offsets = [0, 160], sizes = [16, 32], strides = [1, 1]} : vector<16x256xf32> to vector<16x32xf32>
    %230 = vector.extract_strided_slice %151 {offsets = [0, 160], sizes = [16, 32], strides = [1, 1]} : vector<16x256xf32> to vector<16x32xf32>
    %231 = vector.extract_strided_slice %152 {offsets = [0, 160], sizes = [16, 32], strides = [1, 1]} : vector<16x256xf32> to vector<16x32xf32>
    %cst_81 = arith.constant dense<0.000000e+00> : vector<16x16xf32>
    %232 = tpu.matmul %229, %230, %cst_81 {dimension_numbers = #tpu.dot_dimension_numbers<[1], [1], [0], [0], [0, 0, 1, 0], [], []>} : vector<16x32xf32>, vector<16x32xf32>, vector<16x16xf32> -> vector<16x16xf32>
    %233 = arith.addf %232, %153 : vector<16x16xf32>
    %cst_82 = arith.constant dense<0xFF800000> : vector<16xf32>
    %234 = vector.multi_reduction <maximumf>, %233, %cst_82 [1] : vector<16x16xf32> to vector<16xf32>
    %235 = vector.shape_cast %234 : vector<16xf32> to vector<16x1xf32>
    %236 = vector.broadcast %235 : vector<16x1xf32> to vector<16x16xf32>
    %237 = arith.subf %233, %236 : vector<16x16xf32>
    %238 = math.exp %237 : vector<16x16xf32>
    %cst_83 = arith.constant dense<0.000000e+00> : vector<16xf32>
    %239 = vector.multi_reduction <add>, %238, %cst_83 [1] : vector<16x16xf32> to vector<16xf32>
    %240 = vector.shape_cast %239 : vector<16xf32> to vector<16x1xf32>
    %241 = vector.broadcast %240 : vector<16x1xf32> to vector<16x16xf32>
    %242 = arith.divf %238, %241 : vector<16x16xf32>
    %cst_84 = arith.constant dense<0.000000e+00> : vector<16x32xf32>
    %243 = tpu.matmul %242, %231, %cst_84 {dimension_numbers = #tpu.dot_dimension_numbers<[1], [0], [0], [1], [0, 0, 1, 1], [], []>} : vector<16x16xf32>, vector<16x32xf32>, vector<16x32xf32> -> vector<16x32xf32>
    %244 = vector.extract_strided_slice %7 {offsets = [0, 192], sizes = [16, 32], strides = [1, 1]} : vector<16x256xf32> to vector<16x32xf32>
    %245 = vector.extract_strided_slice %151 {offsets = [0, 192], sizes = [16, 32], strides = [1, 1]} : vector<16x256xf32> to vector<16x32xf32>
    %246 = vector.extract_strided_slice %152 {offsets = [0, 192], sizes = [16, 32], strides = [1, 1]} : vector<16x256xf32> to vector<16x32xf32>
    %cst_85 = arith.constant dense<0.000000e+00> : vector<16x16xf32>
    %247 = tpu.matmul %244, %245, %cst_85 {dimension_numbers = #tpu.dot_dimension_numbers<[1], [1], [0], [0], [0, 0, 1, 0], [], []>} : vector<16x32xf32>, vector<16x32xf32>, vector<16x16xf32> -> vector<16x16xf32>
    %248 = arith.addf %247, %153 : vector<16x16xf32>
    %cst_86 = arith.constant dense<0xFF800000> : vector<16xf32>
    %249 = vector.multi_reduction <maximumf>, %248, %cst_86 [1] : vector<16x16xf32> to vector<16xf32>
    %250 = vector.shape_cast %249 : vector<16xf32> to vector<16x1xf32>
    %251 = vector.broadcast %250 : vector<16x1xf32> to vector<16x16xf32>
    %252 = arith.subf %248, %251 : vector<16x16xf32>
    %253 = math.exp %252 : vector<16x16xf32>
    %cst_87 = arith.constant dense<0.000000e+00> : vector<16xf32>
    %254 = vector.multi_reduction <add>, %253, %cst_87 [1] : vector<16x16xf32> to vector<16xf32>
    %255 = vector.shape_cast %254 : vector<16xf32> to vector<16x1xf32>
    %256 = vector.broadcast %255 : vector<16x1xf32> to vector<16x16xf32>
    %257 = arith.divf %253, %256 : vector<16x16xf32>
    %cst_88 = arith.constant dense<0.000000e+00> : vector<16x32xf32>
    %258 = tpu.matmul %257, %246, %cst_88 {dimension_numbers = #tpu.dot_dimension_numbers<[1], [0], [0], [1], [0, 0, 1, 1], [], []>} : vector<16x16xf32>, vector<16x32xf32>, vector<16x32xf32> -> vector<16x32xf32>
    %259 = vector.extract_strided_slice %7 {offsets = [0, 224], sizes = [16, 32], strides = [1, 1]} : vector<16x256xf32> to vector<16x32xf32>
    %260 = vector.extract_strided_slice %151 {offsets = [0, 224], sizes = [16, 32], strides = [1, 1]} : vector<16x256xf32> to vector<16x32xf32>
    %261 = vector.extract_strided_slice %152 {offsets = [0, 224], sizes = [16, 32], strides = [1, 1]} : vector<16x256xf32> to vector<16x32xf32>
    %cst_89 = arith.constant dense<0.000000e+00> : vector<16x16xf32>
    %262 = tpu.matmul %259, %260, %cst_89 {dimension_numbers = #tpu.dot_dimension_numbers<[1], [1], [0], [0], [0, 0, 1, 0], [], []>} : vector<16x32xf32>, vector<16x32xf32>, vector<16x16xf32> -> vector<16x16xf32>
    %263 = arith.addf %262, %153 : vector<16x16xf32>
    %cst_90 = arith.constant dense<0xFF800000> : vector<16xf32>
    %264 = vector.multi_reduction <maximumf>, %263, %cst_90 [1] : vector<16x16xf32> to vector<16xf32>
    %265 = vector.shape_cast %264 : vector<16xf32> to vector<16x1xf32>
    %266 = vector.broadcast %265 : vector<16x1xf32> to vector<16x16xf32>
    %267 = arith.subf %263, %266 : vector<16x16xf32>
    %268 = math.exp %267 : vector<16x16xf32>
    %cst_91 = arith.constant dense<0.000000e+00> : vector<16xf32>
    %269 = vector.multi_reduction <add>, %268, %cst_91 [1] : vector<16x16xf32> to vector<16xf32>
    %270 = vector.shape_cast %269 : vector<16xf32> to vector<16x1xf32>
    %271 = vector.broadcast %270 : vector<16x1xf32> to vector<16x16xf32>
    %272 = arith.divf %268, %271 : vector<16x16xf32>
    %cst_92 = arith.constant dense<0.000000e+00> : vector<16x32xf32>
    %273 = tpu.matmul %272, %261, %cst_92 {dimension_numbers = #tpu.dot_dimension_numbers<[1], [0], [0], [1], [0, 0, 1, 1], [], []>} : vector<16x16xf32>, vector<16x32xf32>, vector<16x32xf32> -> vector<16x32xf32>
    %274 = tpu.concatenate %168, %183, %198, %213, %228, %243, %258, %273 in 1 : vector<16x32xf32>, vector<16x32xf32>, vector<16x32xf32>, vector<16x32xf32>, vector<16x32xf32>, vector<16x32xf32>, vector<16x32xf32>, vector<16x32xf32> -> vector<16x256xf32>
    %c0_93 = arith.constant 0 : index
    %c0_94 = arith.constant 0 : index
    %275 = vector.load %arg14[%c0_93, %c0_94] : memref<256x256xf32, #tpu.memory_space<vmem>>, vector<256x256xf32>
    %cst_95 = arith.constant dense<0.000000e+00> : vector<16x256xf32>
    %276 = tpu.matmul %274, %275, %cst_95 {dimension_numbers = #tpu.dot_dimension_numbers<[1], [0], [0], [1], [0, 0, 1, 1], [], []>} : vector<16x256xf32>, vector<256x256xf32>, vector<16x256xf32> -> vector<16x256xf32>
    %c0_96 = arith.constant 0 : index
    %c0_97 = arith.constant 0 : index
    %277 = vector.load %arg15[%c0_96, %c0_97] : memref<1x256xf32, #tpu.memory_space<vmem>>, vector<1x256xf32>
    %278 = vector.broadcast %277 : vector<1x256xf32> to vector<16x256xf32>
    %279 = arith.addf %276, %278 : vector<16x256xf32>
    %cst_98 = arith.constant 0.000000e+00 : f32
    %280 = vector.broadcast %cst_98 : f32 to vector<16x256xf32>
    %281 = arith.maximumf %279, %280 : vector<16x256xf32>
    %c0_99 = arith.constant 0 : index
    %c0_100 = arith.constant 0 : index
    %282 = vector.load %arg16[%c0_99, %c0_100] : memref<256x256xf32, #tpu.memory_space<vmem>>, vector<256x256xf32>
    %cst_101 = arith.constant dense<0.000000e+00> : vector<16x256xf32>
    %283 = tpu.matmul %281, %282, %cst_101 {dimension_numbers = #tpu.dot_dimension_numbers<[1], [0], [0], [1], [0, 0, 1, 1], [], []>} : vector<16x256xf32>, vector<256x256xf32>, vector<16x256xf32> -> vector<16x256xf32>
    %c0_102 = arith.constant 0 : index
    %c0_103 = arith.constant 0 : index
    %284 = vector.load %arg17[%c0_102, %c0_103] : memref<256x256xf32, #tpu.memory_space<vmem>>, vector<256x256xf32>
    %cst_104 = arith.constant dense<0.000000e+00> : vector<16x256xf32>
    %285 = tpu.matmul %144, %284, %cst_104 {dimension_numbers = #tpu.dot_dimension_numbers<[1], [0], [0], [1], [0, 0, 1, 1], [], []>} : vector<16x256xf32>, vector<256x256xf32>, vector<16x256xf32> -> vector<16x256xf32>
    %286 = arith.addf %283, %285 : vector<16x256xf32>
    %c0_105 = arith.constant 0 : index
    %c0_106 = arith.constant 0 : index
    %287 = vector.load %arg18[%c0_105, %c0_106] : memref<1x256xf32, #tpu.memory_space<vmem>>, vector<1x256xf32>
    %288 = vector.broadcast %287 : vector<1x256xf32> to vector<16x256xf32>
    %289 = arith.addf %286, %288 : vector<16x256xf32>
    %cst_107 = arith.constant 0.000000e+00 : f32
    %290 = vector.broadcast %cst_107 : f32 to vector<16x256xf32>
    %291 = arith.maximumf %289, %290 : vector<16x256xf32>
    %c0_108 = arith.constant 0 : index
    %c0_109 = arith.constant 0 : index
    %292 = vector.load %arg19[%c0_108, %c0_109] : memref<256x256xf32, #tpu.memory_space<vmem>>, vector<256x256xf32>
    %cst_110 = arith.constant dense<0.000000e+00> : vector<16x256xf32>
    %293 = tpu.matmul %291, %292, %cst_110 {dimension_numbers = #tpu.dot_dimension_numbers<[1], [0], [0], [1], [0, 0, 1, 1], [], []>} : vector<16x256xf32>, vector<256x256xf32>, vector<16x256xf32> -> vector<16x256xf32>
    %c0_111 = arith.constant 0 : index
    %c0_112 = arith.constant 0 : index
    %294 = vector.load %arg20[%c0_111, %c0_112] : memref<1x256xf32, #tpu.memory_space<vmem>>, vector<1x256xf32>
    %295 = vector.broadcast %294 : vector<1x256xf32> to vector<16x256xf32>
    %296 = arith.addf %293, %295 : vector<16x256xf32>
    %cst_113 = arith.constant 0.000000e+00 : f32
    %297 = vector.broadcast %cst_113 : f32 to vector<16x256xf32>
    %298 = arith.maximumf %296, %297 : vector<16x256xf32>
    %c0_114 = arith.constant 0 : index
    %c0_115 = arith.constant 0 : index
    %299 = vector.load %arg21[%c0_114, %c0_115] : memref<16x256xf32, #tpu.memory_space<vmem>>, vector<16x256xf32>
    tpu.vector_store %arg21[%c0_114, %c0_115], %298 {strides = array<i32>} : memref<16x256xf32, #tpu.memory_space<vmem>>, vector<16x256xf32>,
    return
  }
  func.func @transform_0(%arg0: i32) -> (i32, i32) {
    %c0_i32 = arith.constant 0 : i32
    %c0_i32_0 = arith.constant 0 : i32
    %c0_i32_1 = arith.constant 0 : i32
    return %c0_i32, %c0_i32_0 : i32, i32
  }
  func.func @transform_1(%arg0: i32) -> (i32, i32) {
    %c0_i32 = arith.constant 0 : i32
    %c0_i32_0 = arith.constant 0 : i32
    %c0_i32_1 = arith.constant 0 : i32
    return %c0_i32, %c0_i32_0 : i32, i32
  }
  func.func @transform_2(%arg0: i32) -> (i32, i32) {
    %c0_i32 = arith.constant 0 : i32
    %c0_i32_0 = arith.constant 0 : i32
    %c0_i32_1 = arith.constant 0 : i32
    return %c0_i32, %c0_i32_0 : i32, i32
  }
  func.func @transform_3(%arg0: i32) -> (i32, i32) {
    %c0_i32 = arith.constant 0 : i32
    %c0_i32_0 = arith.constant 0 : i32
    %c0_i32_1 = arith.constant 0 : i32
    return %c0_i32, %c0_i32_0 : i32, i32
  }
  func.func @transform_4(%arg0: i32) -> (i32, i32) {
    %c0_i32 = arith.constant 0 : i32
    %c0_i32_0 = arith.constant 0 : i32
    %c0_i32_1 = arith.constant 0 : i32
    return %c0_i32, %c0_i32_0 : i32, i32
  }
  func.func @transform_5(%arg0: i32) -> (i32, i32) {
    %c0_i32 = arith.constant 0 : i32
    %c0_i32_0 = arith.constant 0 : i32
    %c0_i32_1 = arith.constant 0 : i32
    return %c0_i32, %c0_i32_0 : i32, i32
  }
  func.func @transform_6(%arg0: i32) -> (i32, i32) {
    %c0_i32 = arith.constant 0 : i32
    %c0_i32_0 = arith.constant 0 : i32
    %c0_i32_1 = arith.constant 0 : i32
    return %c0_i32, %c0_i32_0 : i32, i32
  }
  func.func @transform_7(%arg0: i32) -> (i32, i32) {
    %c0_i32 = arith.constant 0 : i32
    %c0_i32_0 = arith.constant 0 : i32
    %c0_i32_1 = arith.constant 0 : i32
    return %c0_i32, %c0_i32_0 : i32, i32
  }
  func.func @transform_8(%arg0: i32) -> (i32, i32) {
    %c0_i32 = arith.constant 0 : i32
    %c0_i32_0 = arith.constant 0 : i32
    %c0_i32_1 = arith.constant 0 : i32
    return %c0_i32, %c0_i32_0 : i32, i32
  }
  func.func @transform_9(%arg0: i32) -> (i32, i32) {
    %c0_i32 = arith.constant 0 : i32
    %c0_i32_0 = arith.constant 0 : i32
    %c0_i32_1 = arith.constant 0 : i32
    return %c0_i32, %c0_i32_0 : i32, i32
  }
  func.func @transform_10(%arg0: i32) -> (i32, i32) {
    %c0_i32 = arith.constant 0 : i32
    %c0_i32_0 = arith.constant 0 : i32
    %c0_i32_1 = arith.constant 0 : i32
    return %c0_i32, %c0_i32_0 : i32, i32
  }
  func.func @transform_11(%arg0: i32) -> (i32, i32) {
    %c0_i32 = arith.constant 0 : i32
    %c0_i32_0 = arith.constant 0 : i32
    %c0_i32_1 = arith.constant 0 : i32
    return %c0_i32, %c0_i32_0 : i32, i32
  }
  func.func @transform_12(%arg0: i32) -> (i32, i32) {
    %c0_i32 = arith.constant 0 : i32
    %c0_i32_0 = arith.constant 0 : i32
    %c0_i32_1 = arith.constant 0 : i32
    return %c0_i32, %c0_i32_0 : i32, i32
  }
  func.func @transform_13(%arg0: i32) -> (i32, i32) {
    %c0_i32 = arith.constant 0 : i32
    %c0_i32_0 = arith.constant 0 : i32
    %c0_i32_1 = arith.constant 0 : i32
    return %c0_i32, %c0_i32_0 : i32, i32
  }
  func.func @transform_14(%arg0: i32) -> (i32, i32) {
    %c0_i32 = arith.constant 0 : i32
    %c0_i32_0 = arith.constant 0 : i32
    %c0_i32_1 = arith.constant 0 : i32
    return %c0_i32, %c0_i32_0 : i32, i32
  }
  func.func @transform_15(%arg0: i32) -> (i32, i32) {
    %c0_i32 = arith.constant 0 : i32
    %c0_i32_0 = arith.constant 0 : i32
    %c0_i32_1 = arith.constant 0 : i32
    return %c0_i32, %c0_i32_0 : i32, i32
  }
  func.func @transform_16(%arg0: i32) -> (i32, i32) {
    %c0_i32 = arith.constant 0 : i32
    %c0_i32_0 = arith.constant 0 : i32
    %c0_i32_1 = arith.constant 0 : i32
    return %c0_i32, %c0_i32_0 : i32, i32
  }
  func.func @transform_17(%arg0: i32) -> (i32, i32) {
    %c0_i32 = arith.constant 0 : i32
    %c0_i32_0 = arith.constant 0 : i32
    %c0_i32_1 = arith.constant 0 : i32
    return %c0_i32, %c0_i32_0 : i32, i32
  }
  func.func @transform_18(%arg0: i32) -> (i32, i32) {
    %c0_i32 = arith.constant 0 : i32
    %c0_i32_0 = arith.constant 0 : i32
    %c0_i32_1 = arith.constant 0 : i32
    return %c0_i32, %c0_i32_0 : i32, i32
  }
  func.func @transform_19(%arg0: i32) -> (i32, i32) {
    %c0_i32 = arith.constant 0 : i32
    %c0_i32_0 = arith.constant 0 : i32
    %c0_i32_1 = arith.constant 0 : i32
    return %c0_i32, %c0_i32_0 : i32, i32
  }
  func.func @transform_20(%arg0: i32) -> (i32, i32) {
    %c0_i32 = arith.constant 0 : i32
    %c0_i32_0 = arith.constant 0 : i32
    %c0_i32_1 = arith.constant 0 : i32
    return %c0_i32, %c0_i32_0 : i32, i32
  }
}

</mosaic_0001>

<llo_original>
// kernel: tpu_custom_call.1
$region0: #{tpu_custom_call.1}
  #allocation0 [shape = 'u32[]', space=smem, size = 0x4, offset = 0x4, fixed_abs, tag = 'smem constant byte address 0x4 - core index']
  #allocation1 [shape = 'u32[144,128]{1,0:T(1,128)}', space=vmem, size = 0x12000, scoped, tag = 'internal scratch']
  %s0 = inlined_call_operand.hbm [shape: f32[16,256], index: 0, kind: input, shape index: {}]
  %s1 = inlined_call_operand.hbm [shape: f32[16,128], index: 1, kind: input, shape index: {}]
  %s2 = inlined_call_operand.hbm [shape: f32[16,256], index: 2, kind: input, shape index: {}]
  %s3 = inlined_call_operand.hbm [shape: f32[16,16], index: 3, kind: input, shape index: {}]
  %s4 = inlined_call_operand.hbm [shape: f32[16,16], index: 4, kind: input, shape index: {}]
  %s5 = inlined_call_operand.hbm [shape: f32[256,512], index: 5, kind: input, shape index: {}]
  %s6 = inlined_call_operand.vmem [shape: f32[1,512], index: 6, kind: input, shape index: {}]
  %s7 = inlined_call_operand.hbm [shape: f32[128,512], index: 7, kind: input, shape index: {}]
  %s8 = inlined_call_operand.vmem [shape: f32[1,512], index: 8, kind: input, shape index: {}]
  %s9 = inlined_call_operand.hbm [shape: f32[256,256], index: 9, kind: input, shape index: {}]
  %s10 = inlined_call_operand.vmem [shape: f32[1,256], index: 10, kind: input, shape index: {}]
  %s11 = inlined_call_operand.hbm [shape: f32[256,512], index: 11, kind: input, shape index: {}]
  %s12 = inlined_call_operand.vmem [shape: f32[1,512], index: 12, kind: input, shape index: {}]
  %s13 = inlined_call_operand.hbm [shape: f32[256,256], index: 13, kind: input, shape index: {}]
  %s14 = inlined_call_operand.vmem [shape: f32[1,256], index: 14, kind: input, shape index: {}]
  %s15 = inlined_call_operand.hbm [shape: f32[256,256], index: 15, kind: input, shape index: {}]
  %s16 = inlined_call_operand.hbm [shape: f32[256,256], index: 16, kind: input, shape index: {}]
  %s17 = inlined_call_operand.vmem [shape: f32[1,256], index: 17, kind: input, shape index: {}]
  %s18 = inlined_call_operand.hbm [shape: f32[256,256], index: 18, kind: input, shape index: {}]
  %s19 = inlined_call_operand.vmem [shape: f32[1,256], index: 19, kind: input, shape index: {}]
  %s20 = inlined_call_operand.hbm [shape: f32[16,256], index: 20, kind: output, shape index: {}]
  %s21 = sld [smem:[#allocation0]]
  $region142: #{tpu_custom_call.1} parent=0
    _
  %s23 = ssub.s32 1, %s21
  %s24 = scalar_select 0, %s23, %s21
  $region1: #{tpu_custom_call.1} parent=0
    #allocation2 [shape = 'u8[16384]{0}', space=vmem, size = 0x4000, scoped, tag = 'input window, operand 0, single buffered']
    #allocation3 [shape = 's32[1]{0}', space=sflag, size = 0x4, scoped, tag = 'scoped memory for tpu_custom_call.1']
    #allocation4 [shape = 's32[1]{0}', space=sflag, size = 0x4, scoped, tag = 'scoped memory for tpu_custom_call.1']
    #allocation5 [shape = 'u8[8192]{0}', space=vmem, size = 0x2000, scoped, tag = 'input window, operand 1, single buffered']
    #allocation6 [shape = 's32[1]{0}', space=sflag, size = 0x4, scoped, tag = 'scoped memory for tpu_custom_call.1']
    #allocation7 [shape = 'u8[16384]{0}', space=vmem, size = 0x4000, scoped, tag = 'input window, operand 2, single buffered']
    #allocation8 [shape = 'u8[8192]{0}', space=vmem, size = 0x2000, scoped, tag = 'input window, operand 3, single buffered']
    #allocation9 [shape = 's32[1]{0}', space=sflag, size = 0x4, scoped, tag = 'scoped memory for tpu_custom_call.1']
    #allocation10 [shape = 'u8[8192]{0}', space=vmem, size = 0x2000, scoped, tag = 'input window, operand 4, single buffered']
    #allocation11 [shape = 'u8[524288]{0}', space=vmem, size = 0x80000, scoped, tag = 'input window, operand 5, single buffered']
    #allocation12 [shape = 's32[1]{0}', space=sflag, size = 0x4, scoped, tag = 'scoped memory for tpu_custom_call.1']
    #allocation13 [shape = 'u8[262144]{0}', space=vmem, size = 0x40000, scoped, tag = 'input window, operand 7, single buffered']
    #allocation14 [shape = 'u8[262144]{0}', space=vmem, size = 0x40000, scoped, tag = 'input window, operand 9, single buffered']
    #allocation15 [shape = 's32[1]{0}', space=sflag, size = 0x4, scoped, tag = 'scoped memory for tpu_custom_call.1']
    #allocation16 [shape = 'u8[524288]{0}', space=vmem, size = 0x80000, scoped, tag = 'input window, operand 11, single buffered']
    #allocation17 [shape = 'u8[262144]{0}', space=vmem, size = 0x40000, scoped, tag = 'input window, operand 13, single buffered']
    #allocation18 [shape = 's32[1]{0}', space=sflag, size = 0x4, scoped, tag = 'scoped memory for tpu_custom_call.1']
    #allocation19 [shape = 'u8[262144]{0}', space=vmem, size = 0x40000, scoped, tag = 'input window, operand 15, single buffered']
    #allocation20 [shape = 'u8[262144]{0}', space=vmem, size = 0x40000, scoped, tag = 'input window, operand 16, single buffered']
    #allocation21 [shape = 's32[1]{0}', space=sflag, size = 0x4, scoped, tag = 'scoped memory for tpu_custom_call.1']
    #allocation22 [shape = 'u8[262144]{0}', space=vmem, size = 0x40000, scoped, tag = 'input window, operand 18, single buffered']
    #allocation23 [shape = 'u8[16384]{0}', space=vmem, size = 0x4000, scoped, tag = 'output window, operand 0, single buffered']
    %25 = vsyncpa [#allocation3], 0
    %26 = vsyncpa [#allocation6], 0
    %27 = vsyncpa [#allocation9], 0
    %28 = vsyncpa [#allocation12], 0
    %29 = vsyncpa [#allocation15], 0
    %30 = vsyncpa [#allocation18], 0
    %31 = vsyncpa [#allocation21], 0
    %32 = vsyncpa [#allocation4], 0
    // Predicated region
    $region2: #{tpu_custom_call.1} parent=1 // pred_check
      _
    $region3: #{tpu_custom_call.1} parent=1 // pred_check_branch
      %34 = sbr.rel (0) target = $region5
    $region4: #{tpu_custom_call.1} parent=1 // pred_region
      %s36 = ssub.s32 512, 512
      %37 = vsyncadd [#allocation3], %s36
      %s38 = sshll.u32 [#allocation2], 4
      %s39 = int_to_ptr.vmem [resolvable:$true] %s38
      %44 = dma.hbm_to_vmem [thread:$0]  %s0, 512, %s39, [#allocation3], 256, 256, 16
    $region5: #{tpu_custom_call.1} parent=1 // pred_fallthru
      _
    // Predicated region
    $region6: #{tpu_custom_call.1} parent=1 // pred_check
      _
    $region7: #{tpu_custom_call.1} parent=1 // pred_check_branch
      %46 = sbr.rel (0) target = $region9
    $region8: #{tpu_custom_call.1} parent=1 // pred_region
      %s48 = ssub.s32 256, 256
      %49 = vsyncadd [#allocation6], %s48
      %s50 = sshll.u32 [#allocation5], 4
      %s51 = int_to_ptr.vmem [resolvable:$true] %s50
      %56 = dma.hbm_to_vmem [thread:$0]  %s1, 256, %s51, [#allocation6], 128, 128, 8
    $region9: #{tpu_custom_call.1} parent=1 // pred_fallthru
      _
    // Predicated region
    $region10: #{tpu_custom_call.1} parent=1 // pred_check
      _
    $region11: #{tpu_custom_call.1} parent=1 // pred_check_branch
      %58 = sbr.rel (0) target = $region13
    $region12: #{tpu_custom_call.1} parent=1 // pred_region
      %s60 = ssub.s32 512, 512
      %61 = vsyncadd [#allocation6], %s60
      %s62 = sshll.u32 [#allocation7], 4
      %s63 = int_to_ptr.vmem [resolvable:$true] %s62
      %68 = dma.hbm_to_vmem [thread:$0]  %s2, 512, %s63, [#allocation6], 256, 256, 16
    $region13: #{tpu_custom_call.1} parent=1 // pred_fallthru
      _
    // Predicated region
    $region14: #{tpu_custom_call.1} parent=1 // pred_check
      _
    $region15: #{tpu_custom_call.1} parent=1 // pred_check_branch
      %70 = sbr.rel (0) target = $region17
    $region16: #{tpu_custom_call.1} parent=1 // pred_region
      %s72 = ssub.s32 256, 256
      %73 = vsyncadd [#allocation9], %s72
      %s74 = sshll.u32 [#allocation8], 4
      %s75 = int_to_ptr.vmem [resolvable:$true] %s74
      %80 = dma.hbm_to_vmem [thread:$0]  %s3, 256, %s75, [#allocation9], 128, 128, 8
    $region17: #{tpu_custom_call.1} parent=1 // pred_fallthru
      _
    // Predicated region
    $region18: #{tpu_custom_call.1} parent=1 // pred_check
      _
    $region19: #{tpu_custom_call.1} parent=1 // pred_check_branch
      %82 = sbr.rel (0) target = $region21
    $region20: #{tpu_custom_call.1} parent=1 // pred_region
      %s84 = ssub.s32 256, 256
      %85 = vsyncadd [#allocation9], %s84
      %s86 = sshll.u32 [#allocation10], 4
      %s87 = int_to_ptr.vmem [resolvable:$true] %s86
      %92 = dma.hbm_to_vmem [thread:$0]  %s4, 256, %s87, [#allocation9], 128, 128, 8
    $region21: #{tpu_custom_call.1} parent=1 // pred_fallthru
      _
    // Predicated region
    $region22: #{tpu_custom_call.1} parent=1 // pred_check
      _
    $region23: #{tpu_custom_call.1} parent=1 // pred_check_branch
      %94 = sbr.rel (0) target = $region25
    $region24: #{tpu_custom_call.1} parent=1 // pred_region
      %s96 = ssub.s32 16384, 16384
      %97 = vsyncadd [#allocation12], %s96
      %s98 = sshll.u32 [#allocation11], 4
      %s99 = int_to_ptr.vmem [resolvable:$true] %s98
      %104 = dma.hbm_to_vmem [thread:$0]  %s5, 16384, %s99, [#allocation12], 512, 512, 32
    $region25: #{tpu_custom_call.1} parent=1 // pred_fallthru
      _
    // Predicated region
    $region26: #{tpu_custom_call.1} parent=1 // pred_check
      _
    $region27: #{tpu_custom_call.1} parent=1 // pred_check_branch
      %106 = sbr.rel (0) target = $region29
    $region28: #{tpu_custom_call.1} parent=1 // pred_region
      _
    $region29: #{tpu_custom_call.1} parent=1 // pred_fallthru
      _
    // Predicated region
    $region30: #{tpu_custom_call.1} parent=1 // pred_check
      _
    $region31: #{tpu_custom_call.1} parent=1 // pred_check_branch
      %108 = sbr.rel (0) target = $region33
    $region32: #{tpu_custom_call.1} parent=1 // pred_region
      %s110 = ssub.s32 8192, 8192
      %111 = vsyncadd [#allocation12], %s110
      %s112 = sshll.u32 [#allocation13], 4
      %s113 = int_to_ptr.vmem [resolvable:$true] %s112
      %118 = dma.hbm_to_vmem [thread:$0]  %s7, 8192, %s113, [#allocation12], 512, 512, 32
    $region33: #{tpu_custom_call.1} parent=1 // pred_fallthru
      _
    // Predicated region
    $region34: #{tpu_custom_call.1} parent=1 // pred_check
      _
    $region35: #{tpu_custom_call.1} parent=1 // pred_check_branch
      %120 = sbr.rel (0) target = $region37
    $region36: #{tpu_custom_call.1} parent=1 // pred_region
      _
    $region37: #{tpu_custom_call.1} parent=1 // pred_fallthru
      _
    // Predicated region
    $region38: #{tpu_custom_call.1} parent=1 // pred_check
      _
    $region39: #{tpu_custom_call.1} parent=1 // pred_check_branch
      %122 = sbr.rel (0) target = $region41
    $region40: #{tpu_custom_call.1} parent=1 // pred_region
      %s124 = ssub.s32 8192, 8192
      %125 = vsyncadd [#allocation15], %s124
      %s126 = sshll.u32 [#allocation14], 4
      %s127 = int_to_ptr.vmem [resolvable:$true] %s126
      %132 = dma.hbm_to_vmem [thread:$0]  %s9, 8192, %s127, [#allocation15], 256, 256, 16
    $region41: #{tpu_custom_call.1} parent=1 // pred_fallthru
      _
    // Predicated region
    $region42: #{tpu_custom_call.1} parent=1 // pred_check
      _
    $region43: #{tpu_custom_call.1} parent=1 // pred_check_branch
      %134 = sbr.rel (0) target = $region45
    $region44: #{tpu_custom_call.1} parent=1 // pred_region
      _
    $region45: #{tpu_custom_call.1} parent=1 // pred_fallthru
      _
    // Predicated region
    $region46: #{tpu_custom_call.1} parent=1 // pred_check
      _
    $region47: #{tpu_custom_call.1} parent=1 // pred_check_branch
      %136 = sbr.rel (0) target = $region49
    $region48: #{tpu_custom_call.1} parent=1 // pred_region
      %s138 = ssub.s32 16384, 16384
      %139 = vsyncadd [#allocation15], %s138
      %s140 = sshll.u32 [#allocation16], 4
      %s141 = int_to_ptr.vmem [resolvable:$true] %s140
      %146 = dma.hbm_to_vmem [thread:$0]  %s11, 16384, %s141, [#allocation15], 512, 512, 32
    $region49: #{tpu_custom_call.1} parent=1 // pred_fallthru
      _
    // Predicated region
    $region50: #{tpu_custom_call.1} parent=1 // pred_check
      _
    $region51: #{tpu_custom_call.1} parent=1 // pred_check_branch
      %148 = sbr.rel (0) target = $region53
    $region52: #{tpu_custom_call.1} parent=1 // pred_region
      _
    $region53: #{tpu_custom_call.1} parent=1 // pred_fallthru
      _
    // Predicated region
    $region54: #{tpu_custom_call.1} parent=1 // pred_check
      _
    $region55: #{tpu_custom_call.1} parent=1 // pred_check_branch
      %150 = sbr.rel (0) target = $region57
    $region56: #{tpu_custom_call.1} parent=1 // pred_region
      %s152 = ssub.s32 8192, 8192
      %153 = vsyncadd [#allocation18], %s152
      %s154 = sshll.u32 [#allocation17], 4
      %s155 = int_to_ptr.vmem [resolvable:$true] %s154
      %160 = dma.hbm_to_vmem [thread:$0]  %s13, 8192, %s155, [#allocation18], 256, 256, 16
    $region57: #{tpu_custom_call.1} parent=1 // pred_fallthru
      _
    // Predicated region
    $region58: #{tpu_custom_call.1} parent=1 // pred_check
      _
    $region59: #{tpu_custom_call.1} parent=1 // pred_check_branch
      %162 = sbr.rel (0) target = $region61
    $region60: #{tpu_custom_call.1} parent=1 // pred_region
      _
    $region61: #{tpu_custom_call.1} parent=1 // pred_fallthru
      _
    // Predicated region
    $region62: #{tpu_custom_call.1} parent=1 // pred_check
      _
    $region63: #{tpu_custom_call.1} parent=1 // pred_check_branch
      %164 = sbr.rel (0) target = $region65
    $region64: #{tpu_custom_call.1} parent=1 // pred_region
      %s166 = ssub.s32 8192, 8192
      %167 = vsyncadd [#allocation18], %s166
      %s168 = sshll.u32 [#allocation19], 4
      %s169 = int_to_ptr.vmem [resolvable:$true] %s168
      %174 = dma.hbm_to_vmem [thread:$0]  %s15, 8192, %s169, [#allocation18], 256, 256, 16
    $region65: #{tpu_custom_call.1} parent=1 // pred_fallthru
      _
    // Predicated region
    $region66: #{tpu_custom_call.1} parent=1 // pred_check
      _
    $region67: #{tpu_custom_call.1} parent=1 // pred_check_branch
      %176 = sbr.rel (0) target = $region69
    $region68: #{tpu_custom_call.1} parent=1 // pred_region
      %s178 = ssub.s32 8192, 8192
      %179 = vsyncadd [#allocation21], %s178
      %s180 = sshll.u32 [#allocation20], 4
      %s181 = int_to_ptr.vmem [resolvable:$true] %s180
      %186 = dma.hbm_to_vmem [thread:$0]  %s16, 8192, %s181, [#allocation21], 256, 256, 16
    $region69: #{tpu_custom_call.1} parent=1 // pred_fallthru
      _
    // Predicated region
    $region70: #{tpu_custom_call.1} parent=1 // pred_check
      _
    $region71: #{tpu_custom_call.1} parent=1 // pred_check_branch
      %188 = sbr.rel (0) target = $region73
    $region72: #{tpu_custom_call.1} parent=1 // pred_region
      _
    $region73: #{tpu_custom_call.1} parent=1 // pred_fallthru
      _
    // Predicated region
    $region74: #{tpu_custom_call.1} parent=1 // pred_check
      _
    $region75: #{tpu_custom_call.1} parent=1 // pred_check_branch
      %190 = sbr.rel (0) target = $region77
    $region76: #{tpu_custom_call.1} parent=1 // pred_region
      %s192 = ssub.s32 8192, 8192
      %193 = vsyncadd [#allocation21], %s192
      %s194 = sshll.u32 [#allocation22], 4
      %s195 = int_to_ptr.vmem [resolvable:$true] %s194
      %200 = dma.hbm_to_vmem [thread:$0]  %s18, 8192, %s195, [#allocation21], 256, 256, 16
    $region77: #{tpu_custom_call.1} parent=1 // pred_fallthru
      _
    // Predicated region
    $region78: #{tpu_custom_call.1} parent=1 // pred_check
      _
    $region79: #{tpu_custom_call.1} parent=1 // pred_check_branch
      %202 = sbr.rel (0) target = $region81
    $region80: #{tpu_custom_call.1} parent=1 // pred_region
      _
    $region81: #{tpu_custom_call.1} parent=1 // pred_fallthru
      _
    // Predicated region
    $region82: #{tpu_custom_call.1} parent=1 // pred_check
      _
    $region83: #{tpu_custom_call.1} parent=1 // pred_check_branch
      %204 = sbr.rel (0) target = $region85
    $region84: #{tpu_custom_call.1} parent=1 // pred_region
      %205 = dma.done [#allocation3], 512
    $region85: #{tpu_custom_call.1} parent=1 // pred_fallthru
      _
    // Predicated region
    $region86: #{tpu_custom_call.1} parent=1 // pred_check
      _
    $region87: #{tpu_custom_call.1} parent=1 // pred_check_branch
      %207 = sbr.rel (0) target = $region89
    $region88: #{tpu_custom_call.1} parent=1 // pred_region
      %208 = dma.done [#allocation6], 256
    $region89: #{tpu_custom_call.1} parent=1 // pred_fallthru
      _
    // Predicated region
    $region90: #{tpu_custom_call.1} parent=1 // pred_check
      _
    $region91: #{tpu_custom_call.1} parent=1 // pred_check_branch
      %210 = sbr.rel (0) target = $region93
    $region92: #{tpu_custom_call.1} parent=1 // pred_region
      %211 = dma.done [#allocation6], 512
    $region93: #{tpu_custom_call.1} parent=1 // pred_fallthru
      _
    // Predicated region
    $region94: #{tpu_custom_call.1} parent=1 // pred_check
      _
    $region95: #{tpu_custom_call.1} parent=1 // pred_check_branch
      %213 = sbr.rel (0) target = $region97
    $region96: #{tpu_custom_call.1} parent=1 // pred_region
      %214 = dma.done [#allocation9], 256
    $region97: #{tpu_custom_call.1} parent=1 // pred_fallthru
      _
    // Predicated region
    $region98: #{tpu_custom_call.1} parent=1 // pred_check
      _
    $region99: #{tpu_custom_call.1} parent=1 // pred_check_branch
      %216 = sbr.rel (0) target = $region101
    $region100: #{tpu_custom_call.1} parent=1 // pred_region
      %217 = dma.done [#allocation9], 256
    $region101: #{tpu_custom_call.1} parent=1 // pred_fallthru
      _
    // Predicated region
    $region102: #{tpu_custom_call.1} parent=1 // pred_check
      _
    $region103: #{tpu_custom_call.1} parent=1 // pred_check_branch
      %219 = sbr.rel (0) target = $region105
    $region104: #{tpu_custom_call.1} parent=1 // pred_region
      %220 = dma.done [#allocation12], 16384
    $region105: #{tpu_custom_call.1} parent=1 // pred_fallthru
      _
    // Predicated region
    $region106: #{tpu_custom_call.1} parent=1 // pred_check
      _
    $region107: #{tpu_custom_call.1} parent=1 // pred_check_branch
      %222 = sbr.rel (0) target = $region109
    $region108: #{tpu_custom_call.1} parent=1 // pred_region
      %223 = dma.done [#allocation12], 8192
    $region109: #{tpu_custom_call.1} parent=1 // pred_fallthru
      _
    // Predicated region
    $region110: #{tpu_custom_call.1} parent=1 // pred_check
      _
    $region111: #{tpu_custom_call.1} parent=1 // pred_check_branch
      %225 = sbr.rel (0) target = $region113
    $region112: #{tpu_custom_call.1} parent=1 // pred_region
      %226 = dma.done [#allocation15], 8192
    $region113: #{tpu_custom_call.1} parent=1 // pred_fallthru
      _
    // Predicated region
    $region114: #{tpu_custom_call.1} parent=1 // pred_check
      _
    $region115: #{tpu_custom_call.1} parent=1 // pred_check_branch
      %228 = sbr.rel (0) target = $region117
    $region116: #{tpu_custom_call.1} parent=1 // pred_region
      %229 = dma.done [#allocation15], 16384
    $region117: #{tpu_custom_call.1} parent=1 // pred_fallthru
      _
    // Predicated region
    $region118: #{tpu_custom_call.1} parent=1 // pred_check
      _
    $region119: #{tpu_custom_call.1} parent=1 // pred_check_branch
      %231 = sbr.rel (0) target = $region121
    $region120: #{tpu_custom_call.1} parent=1 // pred_region
      %232 = dma.done [#allocation18], 8192
    $region121: #{tpu_custom_call.1} parent=1 // pred_fallthru
      _
    // Predicated region
    $region122: #{tpu_custom_call.1} parent=1 // pred_check
      _
    $region123: #{tpu_custom_call.1} parent=1 // pred_check_branch
      %234 = sbr.rel (0) target = $region125
    $region124: #{tpu_custom_call.1} parent=1 // pred_region
      %235 = dma.done [#allocation18], 8192
    $region125: #{tpu_custom_call.1} parent=1 // pred_fallthru
      _
    // Predicated region
    $region126: #{tpu_custom_call.1} parent=1 // pred_check
      _
    $region127: #{tpu_custom_call.1} parent=1 // pred_check_branch
      %237 = sbr.rel (0) target = $region129
    $region128: #{tpu_custom_call.1} parent=1 // pred_region
      %238 = dma.done [#allocation21], 8192
    $region129: #{tpu_custom_call.1} parent=1 // pred_fallthru
      _
    // Predicated region
    $region130: #{tpu_custom_call.1} parent=1 // pred_check
      _
    $region131: #{tpu_custom_call.1} parent=1 // pred_check_branch
      %240 = sbr.rel (0) target = $region133
    $region132: #{tpu_custom_call.1} parent=1 // pred_region
      %241 = dma.done [#allocation21], 8192
    $region133: #{tpu_custom_call.1} parent=1 // pred_fallthru
      _
    %v242 = vld [vmem:[#allocation2] sm:$0xff]
    %v243 = vld [vmem:[#allocation2 + $0x8] sm:$0xff]
    %v244 = vld [vmem:[#allocation2 + $0x10] sm:$0xff]
    %v245 = vld [vmem:[#allocation2 + $0x18] sm:$0xff]
    %v246 = vld [vmem:[#allocation11] sm:$0xff]
    %v247 = vld [vmem:[#allocation11 + $0x8] sm:$0xff]
    %v248 = vld [vmem:[#allocation11 + $0x10] sm:$0xff]
    %v249 = vld [vmem:[#allocation11 + $0x18] sm:$0xff]
    %v250 = vld [vmem:[#allocation11 + $0x20] sm:$0xff]
    %v251 = vld [vmem:[#allocation11 + $0x28] sm:$0xff]
    %v252 = vld [vmem:[#allocation11 + $0x30] sm:$0xff]
    %v253 = vld [vmem:[#allocation11 + $0x38] sm:$0xff]
    %v254 = vld [vmem:[#allocation11 + $0x40] sm:$0xff]
    %v255 = vld [vmem:[#allocation11 + $0x48] sm:$0xff]
    %v256 = vld [vmem:[#allocation11 + $0x50] sm:$0xff]
    %v257 = vld [vmem:[#allocation11 + $0x58] sm:$0xff]
    %v258 = vld [vmem:[#allocation11 + $0x60] sm:$0xff]
    %v259 = vld [vmem:[#allocation11 + $0x68] sm:$0xff]
    %v260 = vld [vmem:[#allocation11 + $0x70] sm:$0xff]
    %v261 = vld [vmem:[#allocation11 + $0x78] sm:$0xff]
    %v262 = vld [vmem:[#allocation11 + $0x80] sm:$0xff]
    %v263 = vld [vmem:[#allocation11 + $0x88] sm:$0xff]
    %v264 = vld [vmem:[#allocation11 + $0x90] sm:$0xff]
    %v265 = vld [vmem:[#allocation11 + $0x98] sm:$0xff]
    %v266 = vld [vmem:[#allocation11 + $0xa0] sm:$0xff]
    %v267 = vld [vmem:[#allocation11 + $0xa8] sm:$0xff]
    %v268 = vld [vmem:[#allocation11 + $0xb0] sm:$0xff]
    %v269 = vld [vmem:[#allocation11 + $0xb8] sm:$0xff]
    %v270 = vld [vmem:[#allocation11 + $0xc0] sm:$0xff]
    %v271 = vld [vmem:[#allocation11 + $0xc8] sm:$0xff]
    %v272 = vld [vmem:[#allocation11 + $0xd0] sm:$0xff]
    %v273 = vld [vmem:[#allocation11 + $0xd8] sm:$0xff]
    %v274 = vld [vmem:[#allocation11 + $0xe0] sm:$0xff]
    %v275 = vld [vmem:[#allocation11 + $0xe8] sm:$0xff]
    %v276 = vld [vmem:[#allocation11 + $0xf0] sm:$0xff]
    %v277 = vld [vmem:[#allocation11 + $0xf8] sm:$0xff]
    %v278 = vld [vmem:[#allocation11 + $0x100] sm:$0xff]
    %v279 = vld [vmem:[#allocation11 + $0x108] sm:$0xff]
    %v280 = vld [vmem:[#allocation11 + $0x110] sm:$0xff]
    %v281 = vld [vmem:[#allocation11 + $0x118] sm:$0xff]
    %v282 = vld [vmem:[#allocation11 + $0x120] sm:$0xff]
    %v283 = vld [vmem:[#allocation11 + $0x128] sm:$0xff]
    %v284 = vld [vmem:[#allocation11 + $0x130] sm:$0xff]
    %v285 = vld [vmem:[#allocation11 + $0x138] sm:$0xff]
    %v286 = vld [vmem:[#allocation11 + $0x140] sm:$0xff]
    %v287 = vld [vmem:[#allocation11 + $0x148] sm:$0xff]
    %v288 = vld [vmem:[#allocation11 + $0x150] sm:$0xff]
    %v289 = vld [vmem:[#allocation11 + $0x158] sm:$0xff]
    %v290 = vld [vmem:[#allocation11 + $0x160] sm:$0xff]
    %v291 = vld [vmem:[#allocation11 + $0x168] sm:$0xff]
    %v292 = vld [vmem:[#allocation11 + $0x170] sm:$0xff]
    %v293 = vld [vmem:[#allocation11 + $0x178] sm:$0xff]
    %v294 = vld [vmem:[#allocation11 + $0x180] sm:$0xff]
    %v295 = vld [vmem:[#allocation11 + $0x188] sm:$0xff]
    %v296 = vld [vmem:[#allocation11 + $0x190] sm:$0xff]
    %v297 = vld [vmem:[#allocation11 + $0x198] sm:$0xff]
    %v298 = vld [vmem:[#allocation11 + $0x1a0] sm:$0xff]
    %v299 = vld [vmem:[#allocation11 + $0x1a8] sm:$0xff]
    %v300 = vld [vmem:[#allocation11 + $0x1b0] sm:$0xff]
    %v301 = vld [vmem:[#allocation11 + $0x1b8] sm:$0xff]
    %v302 = vld [vmem:[#allocation11 + $0x1c0] sm:$0xff]
    %v303 = vld [vmem:[#allocation11 + $0x1c8] sm:$0xff]
    %v304 = vld [vmem:[#allocation11 + $0x1d0] sm:$0xff]
    %v305 = vld [vmem:[#allocation11 + $0x1d8] sm:$0xff]
    %v306 = vld [vmem:[#allocation11 + $0x1e0] sm:$0xff]
    %v307 = vld [vmem:[#allocation11 + $0x1e8] sm:$0xff]
    %v308 = vld [vmem:[#allocation11 + $0x1f0] sm:$0xff]
    %v309 = vld [vmem:[#allocation11 + $0x1f8] sm:$0xff]
    %v310 = vld [vmem:[#allocation11 + $0x200] sm:$0xff]
    %v311 = vld [vmem:[#allocation11 + $0x208] sm:$0xff]
    %v312 = vld [vmem:[#allocation11 + $0x210] sm:$0xff]
    %v313 = vld [vmem:[#allocation11 + $0x218] sm:$0xff]
    %v314 = vld [vmem:[#allocation11 + $0x220] sm:$0xff]
    %v315 = vld [vmem:[#allocation11 + $0x228] sm:$0xff]
    %v316 = vld [vmem:[#allocation11 + $0x230] sm:$0xff]
    %v317 = vld [vmem:[#allocation11 + $0x238] sm:$0xff]
    %v318 = vld [vmem:[#allocation11 + $0x240] sm:$0xff]
    %v319 = vld [vmem:[#allocation11 + $0x248] sm:$0xff]
    %v320 = vld [vmem:[#allocation11 + $0x250] sm:$0xff]
    %v321 = vld [vmem:[#allocation11 + $0x258] sm:$0xff]
    %v322 = vld [vmem:[#allocation11 + $0x260] sm:$0xff]
    %v323 = vld [vmem:[#allocation11 + $0x268] sm:$0xff]
    %v324 = vld [vmem:[#allocation11 + $0x270] sm:$0xff]
    %v325 = vld [vmem:[#allocation11 + $0x278] sm:$0xff]
    %v326 = vld [vmem:[#allocation11 + $0x280] sm:$0xff]
    %v327 = vld [vmem:[#allocation11 + $0x288] sm:$0xff]
    %v328 = vld [vmem:[#allocation11 + $0x290] sm:$0xff]
    %v329 = vld [vmem:[#allocation11 + $0x298] sm:$0xff]
    %v330 = vld [vmem:[#allocation11 + $0x2a0] sm:$0xff]
    %v331 = vld [vmem:[#allocation11 + $0x2a8] sm:$0xff]
    %v332 = vld [vmem:[#allocation11 + $0x2b0] sm:$0xff]
    %v333 = vld [vmem:[#allocation11 + $0x2b8] sm:$0xff]
    %v334 = vld [vmem:[#allocation11 + $0x2c0] sm:$0xff]
    %v335 = vld [vmem:[#allocation11 + $0x2c8] sm:$0xff]
    %v336 = vld [vmem:[#allocation11 + $0x2d0] sm:$0xff]
    %v337 = vld [vmem:[#allocation11 + $0x2d8] sm:$0xff]
    %v338 = vld [vmem:[#allocation11 + $0x2e0] sm:$0xff]
    %v339 = vld [vmem:[#allocation11 + $0x2e8] sm:$0xff]
    %v340 = vld [vmem:[#allocation11 + $0x2f0] sm:$0xff]
    %v341 = vld [vmem:[#allocation11 + $0x2f8] sm:$0xff]
    %v342 = vld [vmem:[#allocation11 + $0x300] sm:$0xff]
    %v343 = vld [vmem:[#allocation11 + $0x308] sm:$0xff]
    %v344 = vld [vmem:[#allocation11 + $0x310] sm:$0xff]
    %v345 = vld [vmem:[#allocation11 + $0x318] sm:$0xff]
    %v346 = vld [vmem:[#allocation11 + $0x320] sm:$0xff]
    %v347 = vld [vmem:[#allocation11 + $0x328] sm:$0xff]
    %v348 = vld [vmem:[#allocation11 + $0x330] sm:$0xff]
    %v349 = vld [vmem:[#allocation11 + $0x338] sm:$0xff]
    %v350 = vld [vmem:[#allocation11 + $0x340] sm:$0xff]
    %v351 = vld [vmem:[#allocation11 + $0x348] sm:$0xff]
    %v352 = vld [vmem:[#allocation11 + $0x350] sm:$0xff]
    %v353 = vld [vmem:[#allocation11 + $0x358] sm:$0xff]
    %v354 = vld [vmem:[#allocation11 + $0x360] sm:$0xff]
    %v355 = vld [vmem:[#allocation11 + $0x368] sm:$0xff]
    %v356 = vld [vmem:[#allocation11 + $0x370] sm:$0xff]
    %v357 = vld [vmem:[#allocation11 + $0x378] sm:$0xff]
    %v358 = vld [vmem:[#allocation11 + $0x380] sm:$0xff]
    %v359 = vld [vmem:[#allocation11 + $0x388] sm:$0xff]
    %v360 = vld [vmem:[#allocation11 + $0x390] sm:$0xff]
    %v361 = vld [vmem:[#allocation11 + $0x398] sm:$0xff]
    %v362 = vld [vmem:[#allocation11 + $0x3a0] sm:$0xff]
    %v363 = vld [vmem:[#allocation11 + $0x3a8] sm:$0xff]
    %v364 = vld [vmem:[#allocation11 + $0x3b0] sm:$0xff]
    %v365 = vld [vmem:[#allocation11 + $0x3b8] sm:$0xff]
    %v366 = vld [vmem:[#allocation11 + $0x3c0] sm:$0xff]
    %v367 = vld [vmem:[#allocation11 + $0x3c8] sm:$0xff]
    %v368 = vld [vmem:[#allocation11 + $0x3d0] sm:$0xff]
    %v369 = vld [vmem:[#allocation11 + $0x3d8] sm:$0xff]
    %v370 = vld [vmem:[#allocation11 + $0x3e0] sm:$0xff]
    %v371 = vld [vmem:[#allocation11 + $0x3e8] sm:$0xff]
    %v372 = vld [vmem:[#allocation11 + $0x3f0] sm:$0xff]
    %v373 = vld [vmem:[#allocation11 + $0x3f8] sm:$0xff]
    %v374 = vld [vmem:[%s6] sm:$0xf]
    %v376 = vlaneseq
    %v377 = vshrl.u32 %v376, 7
    %v378 = vsub.s32 0, %v377
    %v379 = vrot.slane %v374, %v378
    %v380 = vlaneseq
    %v381 = vshrl.u32 %v380, 7
    %v382 = vsub.s32 1, %v381
    %v383 = vrot.slane %v374, %v382
    %v384 = vlaneseq
    %v385 = vshrl.u32 %v384, 7
    %v386 = vsub.s32 2, %v385
    %v387 = vrot.slane %v374, %v386
    %v388 = vlaneseq
    %v389 = vshrl.u32 %v388, 7
    %v390 = vsub.s32 3, %v389
    %v391 = vrot.slane %v374, %v390
    %396 = vmatprep.subr.mxu0 %v307
    %397 = vmatpush1.msra.mxu0 %v306
    %398 = vmatprep.subr.mxu0 %v303
    %399 = vmatpush1.msra.mxu0 %v302
    %400 = vmatprep.subr.mxu0 %v299
    %401 = vmatpush1.msra.mxu0 %v298
    %402 = vmatprep.subr.mxu0 %v295
    %403 = vmatpush1.msra.mxu0 %v294
    %404 = vmatprep.subr.mxu0 %v291
    %405 = vmatpush1.msra.mxu0 %v290
    %406 = vmatprep.subr.mxu0 %v287
    %407 = vmatpush1.msra.mxu0 %v286
    %408 = vmatprep.subr.mxu0 %v283
    %409 = vmatpush1.msra.mxu0 %v282
    %410 = vmatprep.subr.mxu0 %v279
    %411 = vmatpush1.msra.mxu0 %v278
    %412 = vmatprep.subr.mxu0 %v275
    %413 = vmatpush1.msra.mxu0 %v274
    %414 = vmatprep.subr.mxu0 %v271
    %415 = vmatpush1.msra.mxu0 %v270
    %416 = vmatprep.subr.mxu0 %v267
    %417 = vmatpush1.msra.mxu0 %v266
    %418 = vmatprep.subr.mxu0 %v263
    %419 = vmatpush1.msra.mxu0 %v262
    %420 = vmatprep.subr.mxu0 %v259
    %421 = vmatpush1.msra.mxu0 %v258
    %422 = vmatprep.subr.mxu0 %v255
    %423 = vmatpush1.msra.mxu0 %v254
    %424 = vmatprep.subr.mxu0 %v251
    %425 = vmatpush1.msra.mxu0 %v250
    %426 = vmatprep.subr.mxu0 %v247
    %427 = vmatpush1.msra.mxu0 %v246
    %428 = vmatprep.subr.mxu0 %v371
    %429 = vmatpush2.msra.mxu0 %v370
    %430 = vmatprep.subr.mxu0 %v367
    %431 = vmatpush2.msra.mxu0 %v366
    %432 = vmatprep.subr.mxu0 %v363
    %433 = vmatpush2.msra.mxu0 %v362
    %434 = vmatprep.subr.mxu0 %v359
    %435 = vmatpush2.msra.mxu0 %v358
    %436 = vmatprep.subr.mxu0 %v355
    %437 = vmatpush2.msra.mxu0 %v354
    %438 = vmatprep.subr.mxu0 %v351
    %439 = vmatpush2.msra.mxu0 %v350
    %440 = vmatprep.subr.mxu0 %v347
    %441 = vmatpush2.msra.mxu0 %v346
    %442 = vmatprep.subr.mxu0 %v343
    %443 = vmatpush2.msra.mxu0 %v342
    %444 = vmatprep.subr.mxu0 %v339
    %445 = vmatpush2.msra.mxu0 %v338
    %446 = vmatprep.subr.mxu0 %v335
    %447 = vmatpush2.msra.mxu0 %v334
    %448 = vmatprep.subr.mxu0 %v331
    %449 = vmatpush2.msra.mxu0 %v330
    %450 = vmatprep.subr.mxu0 %v327
    %451 = vmatpush2.msra.mxu0 %v326
    %452 = vmatprep.subr.mxu0 %v323
    %453 = vmatpush2.msra.mxu0 %v322
    %454 = vmatprep.subr.mxu0 %v319
    %455 = vmatpush2.msra.mxu0 %v318
    %456 = vmatprep.subr.mxu0 %v315
    %457 = vmatpush2.msra.mxu0 %v314
    %458 = vmatprep.subr.mxu0 %v311
    %459 = vmatpush2.msra.mxu0 %v310
    %460 = vmatprep.mubr.f32.mxu0 %v243
    %461 = vmatmul.mubr.f32.gmra.mxu0 %v242
    %v462 = vpop.f32.mrf.mxu0
    %v463 = vadd.f32 %v379, %v462
    %v464 = vpop.f32.mrf.mxu0
    %v465 = vadd.f32 %v383, %v464
    %466 = vmatprep.mubr.f32.mxu0 %v245
    %467 = vmatmul.mubr.f32.gmra.mxu0 %v244
    %v468 = vpop.f32.mrf.mxu0
    %v469 = vadd.f32 %v379, %v468
    %v470 = vpop.f32.mrf.mxu0
    %v471 = vadd.f32 %v383, %v470
    %472 = vdwg.mxu0
    %473 = vmatprep.subr.mxu0 %v309
    %474 = vmatpush1.msra.mxu0 %v308
    %475 = vmatprep.subr.mxu0 %v305
    %476 = vmatpush1.msra.mxu0 %v304
    %477 = vmatprep.subr.mxu0 %v301
    %478 = vmatpush1.msra.mxu0 %v300
    %479 = vmatprep.subr.mxu0 %v297
    %480 = vmatpush1.msra.mxu0 %v296
    %481 = vmatprep.subr.mxu0 %v293
    %482 = vmatpush1.msra.mxu0 %v292
    %483 = vmatprep.subr.mxu0 %v289
    %484 = vmatpush1.msra.mxu0 %v288
    %485 = vmatprep.subr.mxu0 %v285
    %486 = vmatpush1.msra.mxu0 %v284
    %487 = vmatprep.subr.mxu0 %v281
    %488 = vmatpush1.msra.mxu0 %v280
    %489 = vmatprep.subr.mxu0 %v277
    %490 = vmatpush1.msra.mxu0 %v276
    %491 = vmatprep.subr.mxu0 %v273
    %492 = vmatpush1.msra.mxu0 %v272
    %493 = vmatprep.subr.mxu0 %v269
    %494 = vmatpush1.msra.mxu0 %v268
    %495 = vmatprep.subr.mxu0 %v265
    %496 = vmatpush1.msra.mxu0 %v264
    %497 = vmatprep.subr.mxu0 %v261
    %498 = vmatpush1.msra.mxu0 %v260
    %499 = vmatprep.subr.mxu0 %v257
    %500 = vmatpush1.msra.mxu0 %v256
    %501 = vmatprep.subr.mxu0 %v253
    %502 = vmatpush1.msra.mxu0 %v252
    %503 = vmatprep.subr.mxu0 %v249
    %504 = vmatpush1.msra.mxu0 %v248
    %505 = vmatprep.subr.mxu0 %v373
    %506 = vmatpush2.msra.mxu0 %v372
    %507 = vmatprep.subr.mxu0 %v369
    %508 = vmatpush2.msra.mxu0 %v368
    %509 = vmatprep.subr.mxu0 %v365
    %510 = vmatpush2.msra.mxu0 %v364
    %511 = vmatprep.subr.mxu0 %v361
    %512 = vmatpush2.msra.mxu0 %v360
    %513 = vmatprep.subr.mxu0 %v357
    %514 = vmatpush2.msra.mxu0 %v356
    %515 = vmatprep.subr.mxu0 %v353
    %516 = vmatpush2.msra.mxu0 %v352
    %517 = vmatprep.subr.mxu0 %v349
    %518 = vmatpush2.msra.mxu0 %v348
    %519 = vmatprep.subr.mxu0 %v345
    %520 = vmatpush2.msra.mxu0 %v344
    %521 = vmatprep.subr.mxu0 %v341
    %522 = vmatpush2.msra.mxu0 %v340
    %523 = vmatprep.subr.mxu0 %v337
    %524 = vmatpush2.msra.mxu0 %v336
    %525 = vmatprep.subr.mxu0 %v333
    %526 = vmatpush2.msra.mxu0 %v332
    %527 = vmatprep.subr.mxu0 %v329
    %528 = vmatpush2.msra.mxu0 %v328
    %529 = vmatprep.subr.mxu0 %v325
    %530 = vmatpush2.msra.mxu0 %v324
    %531 = vmatprep.subr.mxu0 %v321
    %532 = vmatpush2.msra.mxu0 %v320
    %533 = vmatprep.subr.mxu0 %v317
    %534 = vmatpush2.msra.mxu0 %v316
    %535 = vmatprep.subr.mxu0 %v313
    %536 = vmatpush2.msra.mxu0 %v312
    %537 = vmatprep.mubr.f32.mxu0 %v243
    %538 = vmatmul.mubr.f32.gmra.mxu0 %v242
    %v539 = vpop.f32.mrf.mxu0
    %v540 = vadd.f32 %v387, %v539
    %v541 = vpop.f32.mrf.mxu0
    %v542 = vadd.f32 %v391, %v541
    %543 = vmatprep.mubr.f32.mxu0 %v245
    %544 = vmatmul.mubr.f32.gmra.mxu0 %v244
    %v545 = vpop.f32.mrf.mxu0
    %v546 = vadd.f32 %v387, %v545
    %v547 = vpop.f32.mrf.mxu0
    %v548 = vadd.f32 %v391, %v547
    %549 = vdwg.mxu0
    %v550 = vld [vmem:[#allocation5] sm:$0xff]
    %v551 = vld [vmem:[#allocation5 + $0x8] sm:$0xff]
    %v552 = vld [vmem:[#allocation13] sm:$0xff]
    %v553 = vld [vmem:[#allocation13 + $0x8] sm:$0xff]
    %v554 = vld [vmem:[#allocation13 + $0x10] sm:$0xff]
    %v555 = vld [vmem:[#allocation13 + $0x18] sm:$0xff]
    %v556 = vld [vmem:[#allocation13 + $0x20] sm:$0xff]
    %v557 = vld [vmem:[#allocation13 + $0x28] sm:$0xff]
    %v558 = vld [vmem:[#allocation13 + $0x30] sm:$0xff]
    %v559 = vld [vmem:[#allocation13 + $0x38] sm:$0xff]
    %v560 = vld [vmem:[#allocation13 + $0x40] sm:$0xff]
    %v561 = vld [vmem:[#allocation13 + $0x48] sm:$0xff]
    %v562 = vld [vmem:[#allocation13 + $0x50] sm:$0xff]
    %v563 = vld [vmem:[#allocation13 + $0x58] sm:$0xff]
    %v564 = vld [vmem:[#allocation13 + $0x60] sm:$0xff]
    %v565 = vld [vmem:[#allocation13 + $0x68] sm:$0xff]
    %v566 = vld [vmem:[#allocation13 + $0x70] sm:$0xff]
    %v567 = vld [vmem:[#allocation13 + $0x78] sm:$0xff]
    %v568 = vld [vmem:[#allocation13 + $0x80] sm:$0xff]
    %v569 = vld [vmem:[#allocation13 + $0x88] sm:$0xff]
    %v570 = vld [vmem:[#allocation13 + $0x90] sm:$0xff]
    %v571 = vld [vmem:[#allocation13 + $0x98] sm:$0xff]
    %v572 = vld [vmem:[#allocation13 + $0xa0] sm:$0xff]
    %v573 = vld [vmem:[#allocation13 + $0xa8] sm:$0xff]
    %v574 = vld [vmem:[#allocation13 + $0xb0] sm:$0xff]
    %v575 = vld [vmem:[#allocation13 + $0xb8] sm:$0xff]
    %v576 = vld [vmem:[#allocation13 + $0xc0] sm:$0xff]
    %v577 = vld [vmem:[#allocation13 + $0xc8] sm:$0xff]
    %v578 = vld [vmem:[#allocation13 + $0xd0] sm:$0xff]
    %v579 = vld [vmem:[#allocation13 + $0xd8] sm:$0xff]
    %v580 = vld [vmem:[#allocation13 + $0xe0] sm:$0xff]
    %v581 = vld [vmem:[#allocation13 + $0xe8] sm:$0xff]
    %v582 = vld [vmem:[#allocation13 + $0xf0] sm:$0xff]
    %v583 = vld [vmem:[#allocation13 + $0xf8] sm:$0xff]
    %v584 = vld [vmem:[#allocation13 + $0x100] sm:$0xff]
    %v585 = vld [vmem:[#allocation13 + $0x108] sm:$0xff]
    %v586 = vld [vmem:[#allocation13 + $0x110] sm:$0xff]
    %v587 = vld [vmem:[#allocation13 + $0x118] sm:$0xff]
    %v588 = vld [vmem:[#allocation13 + $0x120] sm:$0xff]
    %v589 = vld [vmem:[#allocation13 + $0x128] sm:$0xff]
    %v590 = vld [vmem:[#allocation13 + $0x130] sm:$0xff]
    %v591 = vld [vmem:[#allocation13 + $0x138] sm:$0xff]
    %v592 = vld [vmem:[#allocation13 + $0x140] sm:$0xff]
    %v593 = vld [vmem:[#allocation13 + $0x148] sm:$0xff]
    %v594 = vld [vmem:[#allocation13 + $0x150] sm:$0xff]
    %v595 = vld [vmem:[#allocation13 + $0x158] sm:$0xff]
    %v596 = vld [vmem:[#allocation13 + $0x160] sm:$0xff]
    %v597 = vld [vmem:[#allocation13 + $0x168] sm:$0xff]
    %v598 = vld [vmem:[#allocation13 + $0x170] sm:$0xff]
    %v599 = vld [vmem:[#allocation13 + $0x178] sm:$0xff]
    %v600 = vld [vmem:[#allocation13 + $0x180] sm:$0xff]
    %v601 = vld [vmem:[#allocation13 + $0x188] sm:$0xff]
    %v602 = vld [vmem:[#allocation13 + $0x190] sm:$0xff]
    %v603 = vld [vmem:[#allocation13 + $0x198] sm:$0xff]
    %v604 = vld [vmem:[#allocation13 + $0x1a0] sm:$0xff]
    %v605 = vld [vmem:[#allocation13 + $0x1a8] sm:$0xff]
    %v606 = vld [vmem:[#allocation13 + $0x1b0] sm:$0xff]
    %v607 = vld [vmem:[#allocation13 + $0x1b8] sm:$0xff]
    %v608 = vld [vmem:[#allocation13 + $0x1c0] sm:$0xff]
    %v609 = vld [vmem:[#allocation13 + $0x1c8] sm:$0xff]
    %v610 = vld [vmem:[#allocation13 + $0x1d0] sm:$0xff]
    %v611 = vld [vmem:[#allocation13 + $0x1d8] sm:$0xff]
    %v612 = vld [vmem:[#allocation13 + $0x1e0] sm:$0xff]
    %v613 = vld [vmem:[#allocation13 + $0x1e8] sm:$0xff]
    %v614 = vld [vmem:[#allocation13 + $0x1f0] sm:$0xff]
    %v615 = vld [vmem:[#allocation13 + $0x1f8] sm:$0xff]
    %v616 = vld [vmem:[%s8] sm:$0xf]
    %v618 = vlaneseq
    %v619 = vshrl.u32 %v618, 7
    %v620 = vsub.s32 0, %v619
    %v621 = vrot.slane %v616, %v620
    %v622 = vlaneseq
    %v623 = vshrl.u32 %v622, 7
    %v624 = vsub.s32 1, %v623
    %v625 = vrot.slane %v616, %v624
    %v626 = vlaneseq
    %v627 = vshrl.u32 %v626, 7
    %v628 = vsub.s32 2, %v627
    %v629 = vrot.slane %v616, %v628
    %v630 = vlaneseq
    %v631 = vshrl.u32 %v630, 7
    %v632 = vsub.s32 3, %v631
    %v633 = vrot.slane %v616, %v632
    %638 = vmatprep.subr.mxu0 %v613
    %639 = vmatpush1.msra.mxu0 %v612
    %640 = vmatprep.subr.mxu0 %v609
    %641 = vmatpush1.msra.mxu0 %v608
    %642 = vmatprep.subr.mxu0 %v605
    %643 = vmatpush1.msra.mxu0 %v604
    %644 = vmatprep.subr.mxu0 %v601
    %645 = vmatpush1.msra.mxu0 %v600
    %646 = vmatprep.subr.mxu0 %v597
    %647 = vmatpush1.msra.mxu0 %v596
    %648 = vmatprep.subr.mxu0 %v593
    %649 = vmatpush1.msra.mxu0 %v592
    %650 = vmatprep.subr.mxu0 %v589
    %651 = vmatpush1.msra.mxu0 %v588
    %652 = vmatprep.subr.mxu0 %v585
    %653 = vmatpush1.msra.mxu0 %v584
    %654 = vmatprep.subr.mxu0 %v581
    %655 = vmatpush1.msra.mxu0 %v580
    %656 = vmatprep.subr.mxu0 %v577
    %657 = vmatpush1.msra.mxu0 %v576
    %658 = vmatprep.subr.mxu0 %v573
    %659 = vmatpush1.msra.mxu0 %v572
    %660 = vmatprep.subr.mxu0 %v569
    %661 = vmatpush1.msra.mxu0 %v568
    %662 = vmatprep.subr.mxu0 %v565
    %663 = vmatpush1.msra.mxu0 %v564
    %664 = vmatprep.subr.mxu0 %v561
    %665 = vmatpush1.msra.mxu0 %v560
    %666 = vmatprep.subr.mxu0 %v557
    %667 = vmatpush1.msra.mxu0 %v556
    %668 = vmatprep.subr.mxu0 %v553
    %669 = vmatpush1.msra.mxu0 %v552
    %670 = vmatprep.subr.mxu0 0.0
    %671 = vmatpush2.msra.mxu0 0.0
    %672 = vmatprep.subr.mxu0 0.0
    %673 = vmatpush2.msra.mxu0 0.0
    %674 = vmatprep.subr.mxu0 0.0
    %675 = vmatpush2.msra.mxu0 0.0
    %676 = vmatprep.subr.mxu0 0.0
    %677 = vmatpush2.msra.mxu0 0.0
    %678 = vmatprep.subr.mxu0 0.0
    %679 = vmatpush2.msra.mxu0 0.0
    %680 = vmatprep.subr.mxu0 0.0
    %681 = vmatpush2.msra.mxu0 0.0
    %682 = vmatprep.subr.mxu0 0.0
    %683 = vmatpush2.msra.mxu0 0.0
    %684 = vmatprep.subr.mxu0 0.0
    %685 = vmatpush2.msra.mxu0 0.0
    %686 = vmatprep.subr.mxu0 0.0
    %687 = vmatpush2.msra.mxu0 0.0
    %688 = vmatprep.subr.mxu0 0.0
    %689 = vmatpush2.msra.mxu0 0.0
    %690 = vmatprep.subr.mxu0 0.0
    %691 = vmatpush2.msra.mxu0 0.0
    %692 = vmatprep.subr.mxu0 0.0
    %693 = vmatpush2.msra.mxu0 0.0
    %694 = vmatprep.subr.mxu0 0.0
    %695 = vmatpush2.msra.mxu0 0.0
    %696 = vmatprep.subr.mxu0 0.0
    %697 = vmatpush2.msra.mxu0 0.0
    %698 = vmatprep.subr.mxu0 0.0
    %699 = vmatpush2.msra.mxu0 0.0
    %700 = vmatprep.subr.mxu0 0.0
    %701 = vmatpush2.msra.mxu0 0.0
    %702 = vmatprep.mubr.f32.mxu0 0.0
    %703 = vmatmul.mubr.f32.gmra.mxu0 %v550
    %v704 = vpop.f32.mrf.mxu0
    %v705 = vadd.f32 %v621, %v704
    %v706 = vpop.f32.mrf.mxu0
    %v707 = vadd.f32 %v625, %v706
    %708 = vmatprep.mubr.f32.mxu0 0.0
    %709 = vmatmul.mubr.f32.gmra.mxu0 %v551
    %v710 = vpop.f32.mrf.mxu0
    %v711 = vadd.f32 %v621, %v710
    %v712 = vpop.f32.mrf.mxu0
    %v713 = vadd.f32 %v625, %v712
    %714 = vdwg.mxu0
    %715 = vmatprep.subr.mxu0 %v615
    %716 = vmatpush1.msra.mxu0 %v614
    %717 = vmatprep.subr.mxu0 %v611
    %718 = vmatpush1.msra.mxu0 %v610
    %719 = vmatprep.subr.mxu0 %v607
    %720 = vmatpush1.msra.mxu0 %v606
    %721 = vmatprep.subr.mxu0 %v603
    %722 = vmatpush1.msra.mxu0 %v602
    %723 = vmatprep.subr.mxu0 %v599
    %724 = vmatpush1.msra.mxu0 %v598
    %725 = vmatprep.subr.mxu0 %v595
    %726 = vmatpush1.msra.mxu0 %v594
    %727 = vmatprep.subr.mxu0 %v591
    %728 = vmatpush1.msra.mxu0 %v590
    %729 = vmatprep.subr.mxu0 %v587
    %730 = vmatpush1.msra.mxu0 %v586
    %731 = vmatprep.subr.mxu0 %v583
    %732 = vmatpush1.msra.mxu0 %v582
    %733 = vmatprep.subr.mxu0 %v579
    %734 = vmatpush1.msra.mxu0 %v578
    %735 = vmatprep.subr.mxu0 %v575
    %736 = vmatpush1.msra.mxu0 %v574
    %737 = vmatprep.subr.mxu0 %v571
    %738 = vmatpush1.msra.mxu0 %v570
    %739 = vmatprep.subr.mxu0 %v567
    %740 = vmatpush1.msra.mxu0 %v566
    %741 = vmatprep.subr.mxu0 %v563
    %742 = vmatpush1.msra.mxu0 %v562
    %743 = vmatprep.subr.mxu0 %v559
    %744 = vmatpush1.msra.mxu0 %v558
    %745 = vmatprep.subr.mxu0 %v555
    %746 = vmatpush1.msra.mxu0 %v554
    %747 = vmatprep.subr.mxu0 0.0
    %748 = vmatpush2.msra.mxu0 0.0
    %749 = vmatprep.subr.mxu0 0.0
    %750 = vmatpush2.msra.mxu0 0.0
    %751 = vmatprep.subr.mxu0 0.0
    %752 = vmatpush2.msra.mxu0 0.0
    %753 = vmatprep.subr.mxu0 0.0
    %754 = vmatpush2.msra.mxu0 0.0
    %755 = vmatprep.subr.mxu0 0.0
    %756 = vmatpush2.msra.mxu0 0.0
    %757 = vmatprep.subr.mxu0 0.0
    %758 = vmatpush2.msra.mxu0 0.0
    %759 = vmatprep.subr.mxu0 0.0
    %760 = vmatpush2.msra.mxu0 0.0
    %761 = vmatprep.subr.mxu0 0.0
    %762 = vmatpush2.msra.mxu0 0.0
    %763 = vmatprep.subr.mxu0 0.0
    %764 = vmatpush2.msra.mxu0 0.0
    %765 = vmatprep.subr.mxu0 0.0
    %766 = vmatpush2.msra.mxu0 0.0
    %767 = vmatprep.subr.mxu0 0.0
    %768 = vmatpush2.msra.mxu0 0.0
    %769 = vmatprep.subr.mxu0 0.0
    %770 = vmatpush2.msra.mxu0 0.0
    %771 = vmatprep.subr.mxu0 0.0
    %772 = vmatpush2.msra.mxu0 0.0
    %773 = vmatprep.subr.mxu0 0.0
    %774 = vmatpush2.msra.mxu0 0.0
    %775 = vmatprep.subr.mxu0 0.0
    %776 = vmatpush2.msra.mxu0 0.0
    %777 = vmatprep.subr.mxu0 0.0
    %778 = vmatpush2.msra.mxu0 0.0
    %779 = vmatprep.mubr.f32.mxu0 0.0
    %780 = vmatmul.mubr.f32.gmra.mxu0 %v550
    %v781 = vpop.f32.mrf.mxu0
    %v782 = vadd.f32 %v629, %v781
    %v783 = vpop.f32.mrf.mxu0
    %v784 = vadd.f32 %v633, %v783
    %785 = vmatprep.mubr.f32.mxu0 0.0
    %786 = vmatmul.mubr.f32.gmra.mxu0 %v551
    %v787 = vpop.f32.mrf.mxu0
    %v788 = vadd.f32 %v629, %v787
    %v789 = vpop.f32.mrf.mxu0
    %v790 = vadd.f32 %v633, %v789
    %791 = vdwg.mxu0
    %v792 = vld [vmem:[#allocation8] sm:$0xff]
    %v793 = vld [vmem:[#allocation8 + $0x8] sm:$0xff]
    %vm794 = vcmask 261120
    %v796 = vsel %vm794, %v463, 0
    %v799 = vsel %vm794, %v469, 0
    %v802 = vsel %vm794, %v705, 0
    %v805 = vsel %vm794, %v711, 0
    %807 = vmatprep.subr.mxu0 0.0
    %808 = vmatpush1.xpose.msra.mxu0 0.0
    %809 = vmatprep.subr.mxu0 0.0
    %810 = vmatpush1.xpose.msra.mxu0 0.0
    %811 = vmatprep.subr.mxu0 0.0
    %812 = vmatpush1.xpose.msra.mxu0 0.0
    %813 = vmatprep.subr.mxu0 0.0
    %814 = vmatpush1.xpose.msra.mxu0 0.0
    %815 = vmatprep.subr.mxu0 0.0
    %816 = vmatpush1.xpose.msra.mxu0 0.0
    %817 = vmatprep.subr.mxu0 0.0
    %818 = vmatpush1.xpose.msra.mxu0 0.0
    %819 = vmatprep.subr.mxu0 0.0
    %820 = vmatpush1.xpose.msra.mxu0 0.0
    %821 = vmatprep.subr.mxu0 0.0
    %822 = vmatpush1.xpose.msra.mxu0 0.0
    %823 = vmatprep.subr.mxu0 0.0
    %824 = vmatpush1.xpose.msra.mxu0 0.0
    %825 = vmatprep.subr.mxu0 0.0
    %826 = vmatpush1.xpose.msra.mxu0 0.0
    %827 = vmatprep.subr.mxu0 0.0
    %828 = vmatpush1.xpose.msra.mxu0 0.0
    %829 = vmatprep.subr.mxu0 0.0
    %830 = vmatpush1.xpose.msra.mxu0 0.0
    %831 = vmatprep.subr.mxu0 0.0
    %832 = vmatpush1.xpose.msra.mxu0 0.0
    %833 = vmatprep.subr.mxu0 0.0
    %834 = vmatpush1.xpose.msra.mxu0 0.0
    %835 = vmatprep.subr.mxu0 0.0
    %836 = vmatpush1.xpose.msra.mxu0 %v805
    %837 = vmatprep.subr.mxu0 0.0
    %838 = vmatpush1.xpose.msra.mxu0 %v802
    %839 = vmatprep.subr.mxu0 0.0
    %840 = vmatpush2.xpose.msra.mxu0 0.0
    %841 = vmatprep.subr.mxu0 0.0
    %842 = vmatpush2.xpose.msra.mxu0 0.0
    %843 = vmatprep.subr.mxu0 0.0
    %844 = vmatpush2.xpose.msra.mxu0 0.0
    %845 = vmatprep.subr.mxu0 0.0
    %846 = vmatpush2.xpose.msra.mxu0 0.0
    %847 = vmatprep.subr.mxu0 0.0
    %848 = vmatpush2.xpose.msra.mxu0 0.0
    %849 = vmatprep.subr.mxu0 0.0
    %850 = vmatpush2.xpose.msra.mxu0 0.0
    %851 = vmatprep.subr.mxu0 0.0
    %852 = vmatpush2.xpose.msra.mxu0 0.0
    %853 = vmatprep.subr.mxu0 0.0
    %854 = vmatpush2.xpose.msra.mxu0 0.0
    %855 = vmatprep.subr.mxu0 0.0
    %856 = vmatpush2.xpose.msra.mxu0 0.0
    %857 = vmatprep.subr.mxu0 0.0
    %858 = vmatpush2.xpose.msra.mxu0 0.0
    %859 = vmatprep.subr.mxu0 0.0
    %860 = vmatpush2.xpose.msra.mxu0 0.0
    %861 = vmatprep.subr.mxu0 0.0
    %862 = vmatpush2.xpose.msra.mxu0 0.0
    %863 = vmatprep.subr.mxu0 0.0
    %864 = vmatpush2.xpose.msra.mxu0 0.0
    %865 = vmatprep.subr.mxu0 0.0
    %866 = vmatpush2.xpose.msra.mxu0 0.0
    %867 = vmatprep.subr.mxu0 0.0
    %868 = vmatpush2.xpose.msra.mxu0 0.0
    %869 = vmatprep.subr.mxu0 0.0
    %870 = vmatpush2.xpose.msra.mxu0 0.0
    %871 = vmatprep.mubr.f32.mxu0 0.0
    %872 = vmatmul.mubr.f32.gmra.mxu0 %v796
    %v873 = vpop.f32.mrf.mxu0
    %v874 = vadd.f32 %v792, %v873
    %v875 = vpop.f32.mrf.mxu0
    %876 = vmatprep.mubr.f32.mxu0 0.0
    %877 = vmatmul.mubr.f32.gmra.mxu0 %v799
    %v878 = vpop.f32.mrf.mxu0
    %v879 = vadd.f32 %v793, %v878
    %v880 = vpop.f32.mrf.mxu0
    %881 = vdwg.mxu0
    %vm882 = vcmask 130048
    %v883 = vsel %vm882, %v874, -inf
    %884 = vmax.xlane.f32.xlu0 %v883
    %v885 = vpop.xlane.xlu0 %884
    %v886 = vsel %vm882, %v879, -inf
    %887 = vmax.xlane.f32.xlu0 %v886
    %v888 = vpop.xlane.xlu0 %887
    %v889 = vsub.f32 %v874, %v885
    %v890 = vsub.f32 %v879, %v888
    %v891 = vmul.f32 %v889, 1.442695
    %v892 = vpow.pop %v891
    %v893 = vmul.f32 %v890, 1.442695
    %v894 = vpow.pop %v893
    %v895 = vsel %vm882, %v892, 0.0
    %896 = vadd.xlane.f32.xlu0 %v895
    %v897 = vpop.xlane.xlu0 %896
    %v898 = vsel %vm882, %v894, 0.0
    %899 = vadd.xlane.f32.xlu0 %v898
    %v900 = vpop.xlane.xlu0 %899
    %v901 = vrcp.pop %v897
    %v902 = vmul.f32 %v892, %v901
    %v903 = vrcp.pop %v900
    %v904 = vmul.f32 %v894, %v903
    %v906 = vsel %vm882, %v902, 0
    %v909 = vsel %vm882, %v904, 0
    %911 = vmatprep.subr.mxu0 0.0
    %912 = vmatpush1.msra.mxu0 0.0
    %913 = vmatprep.subr.mxu0 0.0
    %914 = vmatpush1.msra.mxu0 0.0
    %915 = vmatprep.subr.mxu0 0.0
    %916 = vmatpush1.msra.mxu0 0.0
    %917 = vmatprep.subr.mxu0 0.0
    %918 = vmatpush1.msra.mxu0 0.0
    %919 = vmatprep.subr.mxu0 0.0
    %920 = vmatpush1.msra.mxu0 0.0
    %921 = vmatprep.subr.mxu0 0.0
    %922 = vmatpush1.msra.mxu0 0.0
    %923 = vmatprep.subr.mxu0 0.0
    %924 = vmatpush1.msra.mxu0 0.0
    %925 = vmatprep.subr.mxu0 0.0
    %926 = vmatpush1.msra.mxu0 0.0
    %927 = vmatprep.subr.mxu0 0.0
    %928 = vmatpush1.msra.mxu0 0.0
    %929 = vmatprep.subr.mxu0 0.0
    %930 = vmatpush1.msra.mxu0 0.0
    %931 = vmatprep.subr.mxu0 0.0
    %932 = vmatpush1.msra.mxu0 0.0
    %933 = vmatprep.subr.mxu0 0.0
    %934 = vmatpush1.msra.mxu0 0.0
    %935 = vmatprep.subr.mxu0 0.0
    %936 = vmatpush1.msra.mxu0 0.0
    %937 = vmatprep.subr.mxu0 0.0
    %938 = vmatpush1.msra.mxu0 0.0
    %939 = vmatprep.subr.mxu0 0.0
    %940 = vmatpush1.msra.mxu0 %v788
    %941 = vmatprep.subr.mxu0 0.0
    %942 = vmatpush1.msra.mxu0 %v782
    %943 = vmatprep.subr.mxu0 0.0
    %944 = vmatpush2.msra.mxu0 0.0
    %945 = vmatprep.subr.mxu0 0.0
    %946 = vmatpush2.msra.mxu0 0.0
    %947 = vmatprep.subr.mxu0 0.0
    %948 = vmatpush2.msra.mxu0 0.0
    %949 = vmatprep.subr.mxu0 0.0
    %950 = vmatpush2.msra.mxu0 0.0
    %951 = vmatprep.subr.mxu0 0.0
    %952 = vmatpush2.msra.mxu0 0.0
    %953 = vmatprep.subr.mxu0 0.0
    %954 = vmatpush2.msra.mxu0 0.0
    %955 = vmatprep.subr.mxu0 0.0
    %956 = vmatpush2.msra.mxu0 0.0
    %957 = vmatprep.subr.mxu0 0.0
    %958 = vmatpush2.msra.mxu0 0.0
    %959 = vmatprep.subr.mxu0 0.0
    %960 = vmatpush2.msra.mxu0 0.0
    %961 = vmatprep.subr.mxu0 0.0
    %962 = vmatpush2.msra.mxu0 0.0
    %963 = vmatprep.subr.mxu0 0.0
    %964 = vmatpush2.msra.mxu0 0.0
    %965 = vmatprep.subr.mxu0 0.0
    %966 = vmatpush2.msra.mxu0 0.0
    %967 = vmatprep.subr.mxu0 0.0
    %968 = vmatpush2.msra.mxu0 0.0
    %969 = vmatprep.subr.mxu0 0.0
    %970 = vmatpush2.msra.mxu0 0.0
    %971 = vmatprep.subr.mxu0 0.0
    %972 = vmatpush2.msra.mxu0 0.0
    %973 = vmatprep.subr.mxu0 0.0
    %974 = vmatpush2.msra.mxu0 0.0
    %975 = vmatprep.mubr.f32.mxu0 0.0
    %976 = vmatmul.mubr.f32.gmra.mxu0 %v906
    %v977 = vpop.f32.mrf.mxu0
    %v978 = vadd.f32 0.0, %v977
    %v979 = vpop.f32.mrf.mxu0
    %980 = vmatprep.mubr.f32.mxu0 0.0
    %981 = vmatmul.mubr.f32.gmra.mxu0 %v909
    %v982 = vpop.f32.mrf.mxu0
    %v983 = vadd.f32 0.0, %v982
    %v984 = vpop.f32.mrf.mxu0
    %985 = vdwg.mxu0
    %986 = vrot.lane.b32.xlu0 %v463, 96
    %v987 = vpop.permute.xlu0 %986
    %988 = vrot.lane.b32.xlu0 %v469, 96
    %v989 = vpop.permute.xlu0 %988
    %990 = vrot.lane.b32.xlu0 %v705, 96
    %v991 = vpop.permute.xlu0 %990
    %992 = vrot.lane.b32.xlu0 %v711, 96
    %v993 = vpop.permute.xlu0 %992
    %v994 = vsel %vm794, %v987, 0
    %v996 = vsel %vm794, %v989, 0
    %v998 = vsel %vm794, %v991, 0
    %v1000 = vsel %vm794, %v993, 0
    %1002 = vmatprep.subr.mxu0 0.0
    %1003 = vmatpush1.xpose.msra.mxu0 0.0
    %1004 = vmatprep.subr.mxu0 0.0
    %1005 = vmatpush1.xpose.msra.mxu0 0.0
    %1006 = vmatprep.subr.mxu0 0.0
    %1007 = vmatpush1.xpose.msra.mxu0 0.0
    %1008 = vmatprep.subr.mxu0 0.0
    %1009 = vmatpush1.xpose.msra.mxu0 0.0
    %1010 = vmatprep.subr.mxu0 0.0
    %1011 = vmatpush1.xpose.msra.mxu0 0.0
    %1012 = vmatprep.subr.mxu0 0.0
    %1013 = vmatpush1.xpose.msra.mxu0 0.0
    %1014 = vmatprep.subr.mxu0 0.0
    %1015 = vmatpush1.xpose.msra.mxu0 0.0
    %1016 = vmatprep.subr.mxu0 0.0
    %1017 = vmatpush1.xpose.msra.mxu0 0.0
    %1018 = vmatprep.subr.mxu0 0.0
    %1019 = vmatpush1.xpose.msra.mxu0 0.0
    %1020 = vmatprep.subr.mxu0 0.0
    %1021 = vmatpush1.xpose.msra.mxu0 0.0
    %1022 = vmatprep.subr.mxu0 0.0
    %1023 = vmatpush1.xpose.msra.mxu0 0.0
    %1024 = vmatprep.subr.mxu0 0.0
    %1025 = vmatpush1.xpose.msra.mxu0 0.0
    %1026 = vmatprep.subr.mxu0 0.0
    %1027 = vmatpush1.xpose.msra.mxu0 0.0
    %1028 = vmatprep.subr.mxu0 0.0
    %1029 = vmatpush1.xpose.msra.mxu0 0.0
    %1030 = vmatprep.subr.mxu0 0.0
    %1031 = vmatpush1.xpose.msra.mxu0 %v1000
    %1032 = vmatprep.subr.mxu0 0.0
    %1033 = vmatpush1.xpose.msra.mxu0 %v998
    %1034 = vmatprep.subr.mxu0 0.0
    %1035 = vmatpush2.xpose.msra.mxu0 0.0
    %1036 = vmatprep.subr.mxu0 0.0
    %1037 = vmatpush2.xpose.msra.mxu0 0.0
    %1038 = vmatprep.subr.mxu0 0.0
    %1039 = vmatpush2.xpose.msra.mxu0 0.0
    %1040 = vmatprep.subr.mxu0 0.0
    %1041 = vmatpush2.xpose.msra.mxu0 0.0
    %1042 = vmatprep.subr.mxu0 0.0
    %1043 = vmatpush2.xpose.msra.mxu0 0.0
    %1044 = vmatprep.subr.mxu0 0.0
    %1045 = vmatpush2.xpose.msra.mxu0 0.0
    %1046 = vmatprep.subr.mxu0 0.0
    %1047 = vmatpush2.xpose.msra.mxu0 0.0
    %1048 = vmatprep.subr.mxu0 0.0
    %1049 = vmatpush2.xpose.msra.mxu0 0.0
    %1050 = vmatprep.subr.mxu0 0.0
    %1051 = vmatpush2.xpose.msra.mxu0 0.0
    %1052 = vmatprep.subr.mxu0 0.0
    %1053 = vmatpush2.xpose.msra.mxu0 0.0
    %1054 = vmatprep.subr.mxu0 0.0
    %1055 = vmatpush2.xpose.msra.mxu0 0.0
    %1056 = vmatprep.subr.mxu0 0.0
    %1057 = vmatpush2.xpose.msra.mxu0 0.0
    %1058 = vmatprep.subr.mxu0 0.0
    %1059 = vmatpush2.xpose.msra.mxu0 0.0
    %1060 = vmatprep.subr.mxu0 0.0
    %1061 = vmatpush2.xpose.msra.mxu0 0.0
    %1062 = vmatprep.subr.mxu0 0.0
    %1063 = vmatpush2.xpose.msra.mxu0 0.0
    %1064 = vmatprep.subr.mxu0 0.0
    %1065 = vmatpush2.xpose.msra.mxu0 0.0
    %1066 = vmatprep.mubr.f32.mxu0 0.0
    %1067 = vmatmul.mubr.f32.gmra.mxu0 %v994
    %v1068 = vpop.f32.mrf.mxu0
    %v1069 = vadd.f32 %v792, %v1068
    %v1070 = vpop.f32.mrf.mxu0
    %1071 = vmatprep.mubr.f32.mxu0 0.0
    %1072 = vmatmul.mubr.f32.gmra.mxu0 %v996
    %v1073 = vpop.f32.mrf.mxu0
    %v1074 = vadd.f32 %v793, %v1073
    %v1075 = vpop.f32.mrf.mxu0
    %1076 = vdwg.mxu0
    %v1077 = vsel %vm882, %v1069, -inf
    %1078 = vmax.xlane.f32.xlu0 %v1077
    %v1079 = vpop.xlane.xlu0 %1078
    %v1080 = vsel %vm882, %v1074, -inf
    %1081 = vmax.xlane.f32.xlu0 %v1080
    %v1082 = vpop.xlane.xlu0 %1081
    %v1083 = vsub.f32 %v1069, %v1079
    %v1084 = vsub.f32 %v1074, %v1082
    %v1085 = vmul.f32 %v1083, 1.442695
    %v1086 = vpow.pop %v1085
    %v1087 = vmul.f32 %v1084, 1.442695
    %v1088 = vpow.pop %v1087
    %v1089 = vsel %vm882, %v1086, 0.0
    %1090 = vadd.xlane.f32.xlu0 %v1089
    %v1091 = vpop.xlane.xlu0 %1090
    %v1092 = vsel %vm882, %v1088, 0.0
    %1093 = vadd.xlane.f32.xlu0 %v1092
    %v1094 = vpop.xlane.xlu0 %1093
    %v1095 = vrcp.pop %v1091
    %v1096 = vmul.f32 %v1086, %v1095
    %v1097 = vrcp.pop %v1094
    %v1098 = vmul.f32 %v1088, %v1097
    %1101 = vrot.lane.b32.xlu0 %v782, 96
    %v1102 = vpop.permute.xlu0 %1101
    %1103 = vrot.lane.b32.xlu0 %v788, 96
    %v1104 = vpop.permute.xlu0 %1103
    %v1108 = vsel %vm882, %v1096, 0
    %v1111 = vsel %vm882, %v1098, 0
    %1113 = vmatprep.subr.mxu0 0.0
    %1114 = vmatpush1.msra.mxu0 0.0
    %1115 = vmatprep.subr.mxu0 0.0
    %1116 = vmatpush1.msra.mxu0 0.0
    %1117 = vmatprep.subr.mxu0 0.0
    %1118 = vmatpush1.msra.mxu0 0.0
    %1119 = vmatprep.subr.mxu0 0.0
    %1120 = vmatpush1.msra.mxu0 0.0
    %1121 = vmatprep.subr.mxu0 0.0
    %1122 = vmatpush1.msra.mxu0 0.0
    %1123 = vmatprep.subr.mxu0 0.0
    %1124 = vmatpush1.msra.mxu0 0.0
    %1125 = vmatprep.subr.mxu0 0.0
    %1126 = vmatpush1.msra.mxu0 0.0
    %1127 = vmatprep.subr.mxu0 0.0
    %1128 = vmatpush1.msra.mxu0 0.0
    %1129 = vmatprep.subr.mxu0 0.0
    %1130 = vmatpush1.msra.mxu0 0.0
    %1131 = vmatprep.subr.mxu0 0.0
    %1132 = vmatpush1.msra.mxu0 0.0
    %1133 = vmatprep.subr.mxu0 0.0
    %1134 = vmatpush1.msra.mxu0 0.0
    %1135 = vmatprep.subr.mxu0 0.0
    %1136 = vmatpush1.msra.mxu0 0.0
    %1137 = vmatprep.subr.mxu0 0.0
    %1138 = vmatpush1.msra.mxu0 0.0
    %1139 = vmatprep.subr.mxu0 0.0
    %1140 = vmatpush1.msra.mxu0 0.0
    %1141 = vmatprep.subr.mxu0 0.0
    %1142 = vmatpush1.msra.mxu0 %v1104
    %1143 = vmatprep.subr.mxu0 0.0
    %1144 = vmatpush1.msra.mxu0 %v1102
    %1145 = vmatprep.subr.mxu0 0.0
    %1146 = vmatpush2.msra.mxu0 0.0
    %1147 = vmatprep.subr.mxu0 0.0
    %1148 = vmatpush2.msra.mxu0 0.0
    %1149 = vmatprep.subr.mxu0 0.0
    %1150 = vmatpush2.msra.mxu0 0.0
    %1151 = vmatprep.subr.mxu0 0.0
    %1152 = vmatpush2.msra.mxu0 0.0
    %1153 = vmatprep.subr.mxu0 0.0
    %1154 = vmatpush2.msra.mxu0 0.0
    %1155 = vmatprep.subr.mxu0 0.0
    %1156 = vmatpush2.msra.mxu0 0.0
    %1157 = vmatprep.subr.mxu0 0.0
    %1158 = vmatpush2.msra.mxu0 0.0
    %1159 = vmatprep.subr.mxu0 0.0
    %1160 = vmatpush2.msra.mxu0 0.0
    %1161 = vmatprep.subr.mxu0 0.0
    %1162 = vmatpush2.msra.mxu0 0.0
    %1163 = vmatprep.subr.mxu0 0.0
    %1164 = vmatpush2.msra.mxu0 0.0
    %1165 = vmatprep.subr.mxu0 0.0
    %1166 = vmatpush2.msra.mxu0 0.0
    %1167 = vmatprep.subr.mxu0 0.0
    %1168 = vmatpush2.msra.mxu0 0.0
    %1169 = vmatprep.subr.mxu0 0.0
    %1170 = vmatpush2.msra.mxu0 0.0
    %1171 = vmatprep.subr.mxu0 0.0
    %1172 = vmatpush2.msra.mxu0 0.0
    %1173 = vmatprep.subr.mxu0 0.0
    %1174 = vmatpush2.msra.mxu0 0.0
    %1175 = vmatprep.subr.mxu0 0.0
    %1176 = vmatpush2.msra.mxu0 0.0
    %1177 = vmatprep.mubr.f32.mxu0 0.0
    %1178 = vmatmul.mubr.f32.gmra.mxu0 %v1108
    %v1179 = vpop.f32.mrf.mxu0
    %v1180 = vadd.f32 0.0, %v1179
    %v1181 = vpop.f32.mrf.mxu0
    %1182 = vmatprep.mubr.f32.mxu0 0.0
    %1183 = vmatmul.mubr.f32.gmra.mxu0 %v1111
    %v1184 = vpop.f32.mrf.mxu0
    %v1185 = vadd.f32 0.0, %v1184
    %v1186 = vpop.f32.mrf.mxu0
    %1187 = vdwg.mxu0
    %1188 = vrot.lane.b32.xlu0 %v463, 64
    %v1189 = vpop.permute.xlu0 %1188
    %1190 = vrot.lane.b32.xlu0 %v469, 64
    %v1191 = vpop.permute.xlu0 %1190
    %1192 = vrot.lane.b32.xlu0 %v705, 64
    %v1193 = vpop.permute.xlu0 %1192
    %1194 = vrot.lane.b32.xlu0 %v711, 64
    %v1195 = vpop.permute.xlu0 %1194
    %v1196 = vsel %vm794, %v1189, 0
    %v1198 = vsel %vm794, %v1191, 0
    %v1200 = vsel %vm794, %v1193, 0
    %v1202 = vsel %vm794, %v1195, 0
    %1204 = vmatprep.subr.mxu0 0.0
    %1205 = vmatpush1.xpose.msra.mxu0 0.0
    %1206 = vmatprep.subr.mxu0 0.0
    %1207 = vmatpush1.xpose.msra.mxu0 0.0
    %1208 = vmatprep.subr.mxu0 0.0
    %1209 = vmatpush1.xpose.msra.mxu0 0.0
    %1210 = vmatprep.subr.mxu0 0.0
    %1211 = vmatpush1.xpose.msra.mxu0 0.0
    %1212 = vmatprep.subr.mxu0 0.0
    %1213 = vmatpush1.xpose.msra.mxu0 0.0
    %1214 = vmatprep.subr.mxu0 0.0
    %1215 = vmatpush1.xpose.msra.mxu0 0.0
    %1216 = vmatprep.subr.mxu0 0.0
    %1217 = vmatpush1.xpose.msra.mxu0 0.0
    %1218 = vmatprep.subr.mxu0 0.0
    %1219 = vmatpush1.xpose.msra.mxu0 0.0
    %1220 = vmatprep.subr.mxu0 0.0
    %1221 = vmatpush1.xpose.msra.mxu0 0.0
    %1222 = vmatprep.subr.mxu0 0.0
    %1223 = vmatpush1.xpose.msra.mxu0 0.0
    %1224 = vmatprep.subr.mxu0 0.0
    %1225 = vmatpush1.xpose.msra.mxu0 0.0
    %1226 = vmatprep.subr.mxu0 0.0
    %1227 = vmatpush1.xpose.msra.mxu0 0.0
    %1228 = vmatprep.subr.mxu0 0.0
    %1229 = vmatpush1.xpose.msra.mxu0 0.0
    %1230 = vmatprep.subr.mxu0 0.0
    %1231 = vmatpush1.xpose.msra.mxu0 0.0
    %1232 = vmatprep.subr.mxu0 0.0
    %1233 = vmatpush1.xpose.msra.mxu0 %v1202
    %1234 = vmatprep.subr.mxu0 0.0
    %1235 = vmatpush1.xpose.msra.mxu0 %v1200
    %1236 = vmatprep.subr.mxu0 0.0
    %1237 = vmatpush2.xpose.msra.mxu0 0.0
    %1238 = vmatprep.subr.mxu0 0.0
    %1239 = vmatpush2.xpose.msra.mxu0 0.0
    %1240 = vmatprep.subr.mxu0 0.0
    %1241 = vmatpush2.xpose.msra.mxu0 0.0
    %1242 = vmatprep.subr.mxu0 0.0
    %1243 = vmatpush2.xpose.msra.mxu0 0.0
    %1244 = vmatprep.subr.mxu0 0.0
    %1245 = vmatpush2.xpose.msra.mxu0 0.0
    %1246 = vmatprep.subr.mxu0 0.0
    %1247 = vmatpush2.xpose.msra.mxu0 0.0
    %1248 = vmatprep.subr.mxu0 0.0
    %1249 = vmatpush2.xpose.msra.mxu0 0.0
    %1250 = vmatprep.subr.mxu0 0.0
    %1251 = vmatpush2.xpose.msra.mxu0 0.0
    %1252 = vmatprep.subr.mxu0 0.0
    %1253 = vmatpush2.xpose.msra.mxu0 0.0
    %1254 = vmatprep.subr.mxu0 0.0
    %1255 = vmatpush2.xpose.msra.mxu0 0.0
    %1256 = vmatprep.subr.mxu0 0.0
    %1257 = vmatpush2.xpose.msra.mxu0 0.0
    %1258 = vmatprep.subr.mxu0 0.0
    %1259 = vmatpush2.xpose.msra.mxu0 0.0
    %1260 = vmatprep.subr.mxu0 0.0
    %1261 = vmatpush2.xpose.msra.mxu0 0.0
    %1262 = vmatprep.subr.mxu0 0.0
    %1263 = vmatpush2.xpose.msra.mxu0 0.0
    %1264 = vmatprep.subr.mxu0 0.0
    %1265 = vmatpush2.xpose.msra.mxu0 0.0
    %1266 = vmatprep.subr.mxu0 0.0
    %1267 = vmatpush2.xpose.msra.mxu0 0.0
    %1268 = vmatprep.mubr.f32.mxu0 0.0
    %1269 = vmatmul.mubr.f32.gmra.mxu0 %v1196
    %v1270 = vpop.f32.mrf.mxu0
    %v1271 = vadd.f32 %v792, %v1270
    %v1272 = vpop.f32.mrf.mxu0
    %1273 = vmatprep.mubr.f32.mxu0 0.0
    %1274 = vmatmul.mubr.f32.gmra.mxu0 %v1198
    %v1275 = vpop.f32.mrf.mxu0
    %v1276 = vadd.f32 %v793, %v1275
    %v1277 = vpop.f32.mrf.mxu0
    %1278 = vdwg.mxu0
    %v1279 = vsel %vm882, %v1271, -inf
    %1280 = vmax.xlane.f32.xlu0 %v1279
    %v1281 = vpop.xlane.xlu0 %1280
    %v1282 = vsel %vm882, %v1276, -inf
    %1283 = vmax.xlane.f32.xlu0 %v1282
    %v1284 = vpop.xlane.xlu0 %1283
    %v1285 = vsub.f32 %v1271, %v1281
    %v1286 = vsub.f32 %v1276, %v1284
    %v1287 = vmul.f32 %v1285, 1.442695
    %v1288 = vpow.pop %v1287
    %v1289 = vmul.f32 %v1286, 1.442695
    %v1290 = vpow.pop %v1289
    %v1291 = vsel %vm882, %v1288, 0.0
    %1292 = vadd.xlane.f32.xlu0 %v1291
    %v1293 = vpop.xlane.xlu0 %1292
    %v1294 = vsel %vm882, %v1290, 0.0
    %1295 = vadd.xlane.f32.xlu0 %v1294
    %v1296 = vpop.xlane.xlu0 %1295
    %v1297 = vrcp.pop %v1293
    %v1298 = vmul.f32 %v1288, %v1297
    %v1299 = vrcp.pop %v1296
    %v1300 = vmul.f32 %v1290, %v1299
    %1301 = vrot.lane.b32.xlu0 %v782, 64
    %v1302 = vpop.permute.xlu0 %1301
    %1303 = vrot.lane.b32.xlu0 %v788, 64
    %v1304 = vpop.permute.xlu0 %1303
    %v1308 = vsel %vm882, %v1298, 0
    %v1311 = vsel %vm882, %v1300, 0
    %1313 = vmatprep.subr.mxu0 0.0
    %1314 = vmatpush1.msra.mxu0 0.0
    %1315 = vmatprep.subr.mxu0 0.0
    %1316 = vmatpush1.msra.mxu0 0.0
    %1317 = vmatprep.subr.mxu0 0.0
    %1318 = vmatpush1.msra.mxu0 0.0
    %1319 = vmatprep.subr.mxu0 0.0
    %1320 = vmatpush1.msra.mxu0 0.0
    %1321 = vmatprep.subr.mxu0 0.0
    %1322 = vmatpush1.msra.mxu0 0.0
    %1323 = vmatprep.subr.mxu0 0.0
    %1324 = vmatpush1.msra.mxu0 0.0
    %1325 = vmatprep.subr.mxu0 0.0
    %1326 = vmatpush1.msra.mxu0 0.0
    %1327 = vmatprep.subr.mxu0 0.0
    %1328 = vmatpush1.msra.mxu0 0.0
    %1329 = vmatprep.subr.mxu0 0.0
    %1330 = vmatpush1.msra.mxu0 0.0
    %1331 = vmatprep.subr.mxu0 0.0
    %1332 = vmatpush1.msra.mxu0 0.0
    %1333 = vmatprep.subr.mxu0 0.0
    %1334 = vmatpush1.msra.mxu0 0.0
    %1335 = vmatprep.subr.mxu0 0.0
    %1336 = vmatpush1.msra.mxu0 0.0
    %1337 = vmatprep.subr.mxu0 0.0
    %1338 = vmatpush1.msra.mxu0 0.0
    %1339 = vmatprep.subr.mxu0 0.0
    %1340 = vmatpush1.msra.mxu0 0.0
    %1341 = vmatprep.subr.mxu0 0.0
    %1342 = vmatpush1.msra.mxu0 %v1304
    %1343 = vmatprep.subr.mxu0 0.0
    %1344 = vmatpush1.msra.mxu0 %v1302
    %1345 = vmatprep.subr.mxu0 0.0
    %1346 = vmatpush2.msra.mxu0 0.0
    %1347 = vmatprep.subr.mxu0 0.0
    %1348 = vmatpush2.msra.mxu0 0.0
    %1349 = vmatprep.subr.mxu0 0.0
    %1350 = vmatpush2.msra.mxu0 0.0
    %1351 = vmatprep.subr.mxu0 0.0
    %1352 = vmatpush2.msra.mxu0 0.0
    %1353 = vmatprep.subr.mxu0 0.0
    %1354 = vmatpush2.msra.mxu0 0.0
    %1355 = vmatprep.subr.mxu0 0.0
    %1356 = vmatpush2.msra.mxu0 0.0
    %1357 = vmatprep.subr.mxu0 0.0
    %1358 = vmatpush2.msra.mxu0 0.0
    %1359 = vmatprep.subr.mxu0 0.0
    %1360 = vmatpush2.msra.mxu0 0.0
    %1361 = vmatprep.subr.mxu0 0.0
    %1362 = vmatpush2.msra.mxu0 0.0
    %1363 = vmatprep.subr.mxu0 0.0
    %1364 = vmatpush2.msra.mxu0 0.0
    %1365 = vmatprep.subr.mxu0 0.0
    %1366 = vmatpush2.msra.mxu0 0.0
    %1367 = vmatprep.subr.mxu0 0.0
    %1368 = vmatpush2.msra.mxu0 0.0
    %1369 = vmatprep.subr.mxu0 0.0
    %1370 = vmatpush2.msra.mxu0 0.0
    %1371 = vmatprep.subr.mxu0 0.0
    %1372 = vmatpush2.msra.mxu0 0.0
    %1373 = vmatprep.subr.mxu0 0.0
    %1374 = vmatpush2.msra.mxu0 0.0
    %1375 = vmatprep.subr.mxu0 0.0
    %1376 = vmatpush2.msra.mxu0 0.0
    %1377 = vmatprep.mubr.f32.mxu0 0.0
    %1378 = vmatmul.mubr.f32.gmra.mxu0 %v1308
    %v1379 = vpop.f32.mrf.mxu0
    %v1380 = vadd.f32 0.0, %v1379
    %v1381 = vpop.f32.mrf.mxu0
    %1382 = vmatprep.mubr.f32.mxu0 0.0
    %1383 = vmatmul.mubr.f32.gmra.mxu0 %v1311
    %v1384 = vpop.f32.mrf.mxu0
    %v1385 = vadd.f32 0.0, %v1384
    %v1386 = vpop.f32.mrf.mxu0
    %1387 = vdwg.mxu0
    %1388 = vrot.lane.b32.xlu0 %v463, 32
    %v1389 = vpop.permute.xlu0 %1388
    %1390 = vrot.lane.b32.xlu0 %v469, 32
    %v1391 = vpop.permute.xlu0 %1390
    %1392 = vrot.lane.b32.xlu0 %v705, 32
    %v1393 = vpop.permute.xlu0 %1392
    %1394 = vrot.lane.b32.xlu0 %v711, 32
    %v1395 = vpop.permute.xlu0 %1394
    %v1396 = vsel %vm794, %v1389, 0
    %v1398 = vsel %vm794, %v1391, 0
    %v1400 = vsel %vm794, %v1393, 0
    %v1402 = vsel %vm794, %v1395, 0
    %1404 = vmatprep.subr.mxu0 0.0
    %1405 = vmatpush1.xpose.msra.mxu0 0.0
    %1406 = vmatprep.subr.mxu0 0.0
    %1407 = vmatpush1.xpose.msra.mxu0 0.0
    %1408 = vmatprep.subr.mxu0 0.0
    %1409 = vmatpush1.xpose.msra.mxu0 0.0
    %1410 = vmatprep.subr.mxu0 0.0
    %1411 = vmatpush1.xpose.msra.mxu0 0.0
    %1412 = vmatprep.subr.mxu0 0.0
    %1413 = vmatpush1.xpose.msra.mxu0 0.0
    %1414 = vmatprep.subr.mxu0 0.0
    %1415 = vmatpush1.xpose.msra.mxu0 0.0
    %1416 = vmatprep.subr.mxu0 0.0
    %1417 = vmatpush1.xpose.msra.mxu0 0.0
    %1418 = vmatprep.subr.mxu0 0.0
    %1419 = vmatpush1.xpose.msra.mxu0 0.0
    %1420 = vmatprep.subr.mxu0 0.0
    %1421 = vmatpush1.xpose.msra.mxu0 0.0
    %1422 = vmatprep.subr.mxu0 0.0
    %1423 = vmatpush1.xpose.msra.mxu0 0.0
    %1424 = vmatprep.subr.mxu0 0.0
    %1425 = vmatpush1.xpose.msra.mxu0 0.0
    %1426 = vmatprep.subr.mxu0 0.0
    %1427 = vmatpush1.xpose.msra.mxu0 0.0
    %1428 = vmatprep.subr.mxu0 0.0
    %1429 = vmatpush1.xpose.msra.mxu0 0.0
    %1430 = vmatprep.subr.mxu0 0.0
    %1431 = vmatpush1.xpose.msra.mxu0 0.0
    %1432 = vmatprep.subr.mxu0 0.0
    %1433 = vmatpush1.xpose.msra.mxu0 %v1402
    %1434 = vmatprep.subr.mxu0 0.0
    %1435 = vmatpush1.xpose.msra.mxu0 %v1400
    %1436 = vmatprep.subr.mxu0 0.0
    %1437 = vmatpush2.xpose.msra.mxu0 0.0
    %1438 = vmatprep.subr.mxu0 0.0
    %1439 = vmatpush2.xpose.msra.mxu0 0.0
    %1440 = vmatprep.subr.mxu0 0.0
    %1441 = vmatpush2.xpose.msra.mxu0 0.0
    %1442 = vmatprep.subr.mxu0 0.0
    %1443 = vmatpush2.xpose.msra.mxu0 0.0
    %1444 = vmatprep.subr.mxu0 0.0
    %1445 = vmatpush2.xpose.msra.mxu0 0.0
    %1446 = vmatprep.subr.mxu0 0.0
    %1447 = vmatpush2.xpose.msra.mxu0 0.0
    %1448 = vmatprep.subr.mxu0 0.0
    %1449 = vmatpush2.xpose.msra.mxu0 0.0
    %1450 = vmatprep.subr.mxu0 0.0
    %1451 = vmatpush2.xpose.msra.mxu0 0.0
    %1452 = vmatprep.subr.mxu0 0.0
    %1453 = vmatpush2.xpose.msra.mxu0 0.0
    %1454 = vmatprep.subr.mxu0 0.0
    %1455 = vmatpush2.xpose.msra.mxu0 0.0
    %1456 = vmatprep.subr.mxu0 0.0
    %1457 = vmatpush2.xpose.msra.mxu0 0.0
    %1458 = vmatprep.subr.mxu0 0.0
    %1459 = vmatpush2.xpose.msra.mxu0 0.0
    %1460 = vmatprep.subr.mxu0 0.0
    %1461 = vmatpush2.xpose.msra.mxu0 0.0
    %1462 = vmatprep.subr.mxu0 0.0
    %1463 = vmatpush2.xpose.msra.mxu0 0.0
    %1464 = vmatprep.subr.mxu0 0.0
    %1465 = vmatpush2.xpose.msra.mxu0 0.0
    %1466 = vmatprep.subr.mxu0 0.0
    %1467 = vmatpush2.xpose.msra.mxu0 0.0
    %1468 = vmatprep.mubr.f32.mxu0 0.0
    %1469 = vmatmul.mubr.f32.gmra.mxu0 %v1396
    %v1470 = vpop.f32.mrf.mxu0
    %v1471 = vadd.f32 %v792, %v1470
    %v1472 = vpop.f32.mrf.mxu0
    %1473 = vmatprep.mubr.f32.mxu0 0.0
    %1474 = vmatmul.mubr.f32.gmra.mxu0 %v1398
    %v1475 = vpop.f32.mrf.mxu0
    %v1476 = vadd.f32 %v793, %v1475
    %v1477 = vpop.f32.mrf.mxu0
    %1478 = vdwg.mxu0
    %v1479 = vsel %vm882, %v1471, -inf
    %1480 = vmax.xlane.f32.xlu0 %v1479
    %v1481 = vpop.xlane.xlu0 %1480
    %v1482 = vsel %vm882, %v1476, -inf
    %1483 = vmax.xlane.f32.xlu0 %v1482
    %v1484 = vpop.xlane.xlu0 %1483
    %v1485 = vsub.f32 %v1471, %v1481
    %v1486 = vsub.f32 %v1476, %v1484
    %v1487 = vmul.f32 %v1485, 1.442695
    %v1488 = vpow.pop %v1487
    %v1489 = vmul.f32 %v1486, 1.442695
    %v1490 = vpow.pop %v1489
    %v1491 = vsel %vm882, %v1488, 0.0
    %1492 = vadd.xlane.f32.xlu0 %v1491
    %v1493 = vpop.xlane.xlu0 %1492
    %v1494 = vsel %vm882, %v1490, 0.0
    %1495 = vadd.xlane.f32.xlu0 %v1494
    %v1496 = vpop.xlane.xlu0 %1495
    %v1497 = vrcp.pop %v1493
    %v1498 = vmul.f32 %v1488, %v1497
    %v1499 = vrcp.pop %v1496
    %v1500 = vmul.f32 %v1490, %v1499
    %1501 = vrot.lane.b32.xlu0 %v782, 32
    %v1502 = vpop.permute.xlu0 %1501
    %1503 = vrot.lane.b32.xlu0 %v788, 32
    %v1504 = vpop.permute.xlu0 %1503
    %v1508 = vsel %vm882, %v1498, 0
    %v1511 = vsel %vm882, %v1500, 0
    %1513 = vmatprep.subr.mxu0 0.0
    %1514 = vmatpush1.msra.mxu0 0.0
    %1515 = vmatprep.subr.mxu0 0.0
    %1516 = vmatpush1.msra.mxu0 0.0
    %1517 = vmatprep.subr.mxu0 0.0
    %1518 = vmatpush1.msra.mxu0 0.0
    %1519 = vmatprep.subr.mxu0 0.0
    %1520 = vmatpush1.msra.mxu0 0.0
    %1521 = vmatprep.subr.mxu0 0.0
    %1522 = vmatpush1.msra.mxu0 0.0
    %1523 = vmatprep.subr.mxu0 0.0
    %1524 = vmatpush1.msra.mxu0 0.0
    %1525 = vmatprep.subr.mxu0 0.0
    %1526 = vmatpush1.msra.mxu0 0.0
    %1527 = vmatprep.subr.mxu0 0.0
    %1528 = vmatpush1.msra.mxu0 0.0
    %1529 = vmatprep.subr.mxu0 0.0
    %1530 = vmatpush1.msra.mxu0 0.0
    %1531 = vmatprep.subr.mxu0 0.0
    %1532 = vmatpush1.msra.mxu0 0.0
    %1533 = vmatprep.subr.mxu0 0.0
    %1534 = vmatpush1.msra.mxu0 0.0
    %1535 = vmatprep.subr.mxu0 0.0
    %1536 = vmatpush1.msra.mxu0 0.0
    %1537 = vmatprep.subr.mxu0 0.0
    %1538 = vmatpush1.msra.mxu0 0.0
    %1539 = vmatprep.subr.mxu0 0.0
    %1540 = vmatpush1.msra.mxu0 0.0
    %1541 = vmatprep.subr.mxu0 0.0
    %1542 = vmatpush1.msra.mxu0 %v1504
    %1543 = vmatprep.subr.mxu0 0.0
    %1544 = vmatpush1.msra.mxu0 %v1502
    %1545 = vmatprep.subr.mxu0 0.0
    %1546 = vmatpush2.msra.mxu0 0.0
    %1547 = vmatprep.subr.mxu0 0.0
    %1548 = vmatpush2.msra.mxu0 0.0
    %1549 = vmatprep.subr.mxu0 0.0
    %1550 = vmatpush2.msra.mxu0 0.0
    %1551 = vmatprep.subr.mxu0 0.0
    %1552 = vmatpush2.msra.mxu0 0.0
    %1553 = vmatprep.subr.mxu0 0.0
    %1554 = vmatpush2.msra.mxu0 0.0
    %1555 = vmatprep.subr.mxu0 0.0
    %1556 = vmatpush2.msra.mxu0 0.0
    %1557 = vmatprep.subr.mxu0 0.0
    %1558 = vmatpush2.msra.mxu0 0.0
    %1559 = vmatprep.subr.mxu0 0.0
    %1560 = vmatpush2.msra.mxu0 0.0
    %1561 = vmatprep.subr.mxu0 0.0
    %1562 = vmatpush2.msra.mxu0 0.0
    %1563 = vmatprep.subr.mxu0 0.0
    %1564 = vmatpush2.msra.mxu0 0.0
    %1565 = vmatprep.subr.mxu0 0.0
    %1566 = vmatpush2.msra.mxu0 0.0
    %1567 = vmatprep.subr.mxu0 0.0
    %1568 = vmatpush2.msra.mxu0 0.0
    %1569 = vmatprep.subr.mxu0 0.0
    %1570 = vmatpush2.msra.mxu0 0.0
    %1571 = vmatprep.subr.mxu0 0.0
    %1572 = vmatpush2.msra.mxu0 0.0
    %1573 = vmatprep.subr.mxu0 0.0
    %1574 = vmatpush2.msra.mxu0 0.0
    %1575 = vmatprep.subr.mxu0 0.0
    %1576 = vmatpush2.msra.mxu0 0.0
    %1577 = vmatprep.mubr.f32.mxu0 0.0
    %1578 = vmatmul.mubr.f32.gmra.mxu0 %v1508
    %v1579 = vpop.f32.mrf.mxu0
    %v1580 = vadd.f32 0.0, %v1579
    %v1581 = vpop.f32.mrf.mxu0
    %1582 = vmatprep.mubr.f32.mxu0 0.0
    %1583 = vmatmul.mubr.f32.gmra.mxu0 %v1511
    %v1584 = vpop.f32.mrf.mxu0
    %v1585 = vadd.f32 0.0, %v1584
    %v1586 = vpop.f32.mrf.mxu0
    %1587 = vdwg.mxu0
    %v1589 = vsel %vm794, %v465, 0
    %v1592 = vsel %vm794, %v471, 0
    %v1595 = vsel %vm794, %v707, 0
    %v1598 = vsel %vm794, %v713, 0
    %1600 = vmatprep.subr.mxu0 0.0
    %1601 = vmatpush1.xpose.msra.mxu0 0.0
    %1602 = vmatprep.subr.mxu0 0.0
    %1603 = vmatpush1.xpose.msra.mxu0 0.0
    %1604 = vmatprep.subr.mxu0 0.0
    %1605 = vmatpush1.xpose.msra.mxu0 0.0
    %1606 = vmatprep.subr.mxu0 0.0
    %1607 = vmatpush1.xpose.msra.mxu0 0.0
    %1608 = vmatprep.subr.mxu0 0.0
    %1609 = vmatpush1.xpose.msra.mxu0 0.0
    %1610 = vmatprep.subr.mxu0 0.0
    %1611 = vmatpush1.xpose.msra.mxu0 0.0
    %1612 = vmatprep.subr.mxu0 0.0
    %1613 = vmatpush1.xpose.msra.mxu0 0.0
    %1614 = vmatprep.subr.mxu0 0.0
    %1615 = vmatpush1.xpose.msra.mxu0 0.0
    %1616 = vmatprep.subr.mxu0 0.0
    %1617 = vmatpush1.xpose.msra.mxu0 0.0
    %1618 = vmatprep.subr.mxu0 0.0
    %1619 = vmatpush1.xpose.msra.mxu0 0.0
    %1620 = vmatprep.subr.mxu0 0.0
    %1621 = vmatpush1.xpose.msra.mxu0 0.0
    %1622 = vmatprep.subr.mxu0 0.0
    %1623 = vmatpush1.xpose.msra.mxu0 0.0
    %1624 = vmatprep.subr.mxu0 0.0
    %1625 = vmatpush1.xpose.msra.mxu0 0.0
    %1626 = vmatprep.subr.mxu0 0.0
    %1627 = vmatpush1.xpose.msra.mxu0 0.0
    %1628 = vmatprep.subr.mxu0 0.0
    %1629 = vmatpush1.xpose.msra.mxu0 %v1598
    %1630 = vmatprep.subr.mxu0 0.0
    %1631 = vmatpush1.xpose.msra.mxu0 %v1595
    %1632 = vmatprep.subr.mxu0 0.0
    %1633 = vmatpush2.xpose.msra.mxu0 0.0
    %1634 = vmatprep.subr.mxu0 0.0
    %1635 = vmatpush2.xpose.msra.mxu0 0.0
    %1636 = vmatprep.subr.mxu0 0.0
    %1637 = vmatpush2.xpose.msra.mxu0 0.0
    %1638 = vmatprep.subr.mxu0 0.0
    %1639 = vmatpush2.xpose.msra.mxu0 0.0
    %1640 = vmatprep.subr.mxu0 0.0
    %1641 = vmatpush2.xpose.msra.mxu0 0.0
    %1642 = vmatprep.subr.mxu0 0.0
    %1643 = vmatpush2.xpose.msra.mxu0 0.0
    %1644 = vmatprep.subr.mxu0 0.0
    %1645 = vmatpush2.xpose.msra.mxu0 0.0
    %1646 = vmatprep.subr.mxu0 0.0
    %1647 = vmatpush2.xpose.msra.mxu0 0.0
    %1648 = vmatprep.subr.mxu0 0.0
    %1649 = vmatpush2.xpose.msra.mxu0 0.0
    %1650 = vmatprep.subr.mxu0 0.0
    %1651 = vmatpush2.xpose.msra.mxu0 0.0
    %1652 = vmatprep.subr.mxu0 0.0
    %1653 = vmatpush2.xpose.msra.mxu0 0.0
    %1654 = vmatprep.subr.mxu0 0.0
    %1655 = vmatpush2.xpose.msra.mxu0 0.0
    %1656 = vmatprep.subr.mxu0 0.0
    %1657 = vmatpush2.xpose.msra.mxu0 0.0
    %1658 = vmatprep.subr.mxu0 0.0
    %1659 = vmatpush2.xpose.msra.mxu0 0.0
    %1660 = vmatprep.subr.mxu0 0.0
    %1661 = vmatpush2.xpose.msra.mxu0 0.0
    %1662 = vmatprep.subr.mxu0 0.0
    %1663 = vmatpush2.xpose.msra.mxu0 0.0
    %1664 = vmatprep.mubr.f32.mxu0 0.0
    %1665 = vmatmul.mubr.f32.gmra.mxu0 %v1589
    %v1666 = vpop.f32.mrf.mxu0
    %v1667 = vadd.f32 %v792, %v1666
    %v1668 = vpop.f32.mrf.mxu0
    %1669 = vmatprep.mubr.f32.mxu0 0.0
    %1670 = vmatmul.mubr.f32.gmra.mxu0 %v1592
    %v1671 = vpop.f32.mrf.mxu0
    %v1672 = vadd.f32 %v793, %v1671
    %v1673 = vpop.f32.mrf.mxu0
    %1674 = vdwg.mxu0
    %v1675 = vsel %vm882, %v1667, -inf
    %1676 = vmax.xlane.f32.xlu0 %v1675
    %v1677 = vpop.xlane.xlu0 %1676
    %v1678 = vsel %vm882, %v1672, -inf
    %1679 = vmax.xlane.f32.xlu0 %v1678
    %v1680 = vpop.xlane.xlu0 %1679
    %v1681 = vsub.f32 %v1667, %v1677
    %v1682 = vsub.f32 %v1672, %v1680
    %v1683 = vmul.f32 %v1681, 1.442695
    %v1684 = vpow.pop %v1683
    %v1685 = vmul.f32 %v1682, 1.442695
    %v1686 = vpow.pop %v1685
    %v1687 = vsel %vm882, %v1684, 0.0
    %1688 = vadd.xlane.f32.xlu0 %v1687
    %v1689 = vpop.xlane.xlu0 %1688
    %v1690 = vsel %vm882, %v1686, 0.0
    %1691 = vadd.xlane.f32.xlu0 %v1690
    %v1692 = vpop.xlane.xlu0 %1691
    %v1693 = vrcp.pop %v1689
    %v1694 = vmul.f32 %v1684, %v1693
    %v1695 = vrcp.pop %v1692
    %v1696 = vmul.f32 %v1686, %v1695
    %v1698 = vsel %vm882, %v1694, 0
    %v1701 = vsel %vm882, %v1696, 0
    %1703 = vmatprep.subr.mxu0 0.0
    %1704 = vmatpush1.msra.mxu0 0.0
    %1705 = vmatprep.subr.mxu0 0.0
    %1706 = vmatpush1.msra.mxu0 0.0
    %1707 = vmatprep.subr.mxu0 0.0
    %1708 = vmatpush1.msra.mxu0 0.0
    %1709 = vmatprep.subr.mxu0 0.0
    %1710 = vmatpush1.msra.mxu0 0.0
    %1711 = vmatprep.subr.mxu0 0.0
    %1712 = vmatpush1.msra.mxu0 0.0
    %1713 = vmatprep.subr.mxu0 0.0
    %1714 = vmatpush1.msra.mxu0 0.0
    %1715 = vmatprep.subr.mxu0 0.0
    %1716 = vmatpush1.msra.mxu0 0.0
    %1717 = vmatprep.subr.mxu0 0.0
    %1718 = vmatpush1.msra.mxu0 0.0
    %1719 = vmatprep.subr.mxu0 0.0
    %1720 = vmatpush1.msra.mxu0 0.0
    %1721 = vmatprep.subr.mxu0 0.0
    %1722 = vmatpush1.msra.mxu0 0.0
    %1723 = vmatprep.subr.mxu0 0.0
    %1724 = vmatpush1.msra.mxu0 0.0
    %1725 = vmatprep.subr.mxu0 0.0
    %1726 = vmatpush1.msra.mxu0 0.0
    %1727 = vmatprep.subr.mxu0 0.0
    %1728 = vmatpush1.msra.mxu0 0.0
    %1729 = vmatprep.subr.mxu0 0.0
    %1730 = vmatpush1.msra.mxu0 0.0
    %1731 = vmatprep.subr.mxu0 0.0
    %1732 = vmatpush1.msra.mxu0 %v790
    %1733 = vmatprep.subr.mxu0 0.0
    %1734 = vmatpush1.msra.mxu0 %v784
    %1735 = vmatprep.subr.mxu0 0.0
    %1736 = vmatpush2.msra.mxu0 0.0
    %1737 = vmatprep.subr.mxu0 0.0
    %1738 = vmatpush2.msra.mxu0 0.0
    %1739 = vmatprep.subr.mxu0 0.0
    %1740 = vmatpush2.msra.mxu0 0.0
    %1741 = vmatprep.subr.mxu0 0.0
    %1742 = vmatpush2.msra.mxu0 0.0
    %1743 = vmatprep.subr.mxu0 0.0
    %1744 = vmatpush2.msra.mxu0 0.0
    %1745 = vmatprep.subr.mxu0 0.0
    %1746 = vmatpush2.msra.mxu0 0.0
    %1747 = vmatprep.subr.mxu0 0.0
    %1748 = vmatpush2.msra.mxu0 0.0
    %1749 = vmatprep.subr.mxu0 0.0
    %1750 = vmatpush2.msra.mxu0 0.0
    %1751 = vmatprep.subr.mxu0 0.0
    %1752 = vmatpush2.msra.mxu0 0.0
    %1753 = vmatprep.subr.mxu0 0.0
    %1754 = vmatpush2.msra.mxu0 0.0
    %1755 = vmatprep.subr.mxu0 0.0
    %1756 = vmatpush2.msra.mxu0 0.0
    %1757 = vmatprep.subr.mxu0 0.0
    %1758 = vmatpush2.msra.mxu0 0.0
    %1759 = vmatprep.subr.mxu0 0.0
    %1760 = vmatpush2.msra.mxu0 0.0
    %1761 = vmatprep.subr.mxu0 0.0
    %1762 = vmatpush2.msra.mxu0 0.0
    %1763 = vmatprep.subr.mxu0 0.0
    %1764 = vmatpush2.msra.mxu0 0.0
    %1765 = vmatprep.subr.mxu0 0.0
    %1766 = vmatpush2.msra.mxu0 0.0
    %1767 = vmatprep.mubr.f32.mxu0 0.0
    %1768 = vmatmul.mubr.f32.gmra.mxu0 %v1698
    %v1769 = vpop.f32.mrf.mxu0
    %v1770 = vadd.f32 0.0, %v1769
    %v1771 = vpop.f32.mrf.mxu0
    %1772 = vmatprep.mubr.f32.mxu0 0.0
    %1773 = vmatmul.mubr.f32.gmra.mxu0 %v1701
    %v1774 = vpop.f32.mrf.mxu0
    %v1775 = vadd.f32 0.0, %v1774
    %v1776 = vpop.f32.mrf.mxu0
    %1777 = vdwg.mxu0
    %1778 = vrot.lane.b32.xlu0 %v465, 96
    %v1779 = vpop.permute.xlu0 %1778
    %1780 = vrot.lane.b32.xlu0 %v471, 96
    %v1781 = vpop.permute.xlu0 %1780
    %1782 = vrot.lane.b32.xlu0 %v707, 96
    %v1783 = vpop.permute.xlu0 %1782
    %1784 = vrot.lane.b32.xlu0 %v713, 96
    %v1785 = vpop.permute.xlu0 %1784
    %v1786 = vsel %vm794, %v1779, 0
    %v1788 = vsel %vm794, %v1781, 0
    %v1790 = vsel %vm794, %v1783, 0
    %v1792 = vsel %vm794, %v1785, 0
    %1794 = vmatprep.subr.mxu0 0.0
    %1795 = vmatpush1.xpose.msra.mxu0 0.0
    %1796 = vmatprep.subr.mxu0 0.0
    %1797 = vmatpush1.xpose.msra.mxu0 0.0
    %1798 = vmatprep.subr.mxu0 0.0
    %1799 = vmatpush1.xpose.msra.mxu0 0.0
    %1800 = vmatprep.subr.mxu0 0.0
    %1801 = vmatpush1.xpose.msra.mxu0 0.0
    %1802 = vmatprep.subr.mxu0 0.0
    %1803 = vmatpush1.xpose.msra.mxu0 0.0
    %1804 = vmatprep.subr.mxu0 0.0
    %1805 = vmatpush1.xpose.msra.mxu0 0.0
    %1806 = vmatprep.subr.mxu0 0.0
    %1807 = vmatpush1.xpose.msra.mxu0 0.0
    %1808 = vmatprep.subr.mxu0 0.0
    %1809 = vmatpush1.xpose.msra.mxu0 0.0
    %1810 = vmatprep.subr.mxu0 0.0
    %1811 = vmatpush1.xpose.msra.mxu0 0.0
    %1812 = vmatprep.subr.mxu0 0.0
    %1813 = vmatpush1.xpose.msra.mxu0 0.0
    %1814 = vmatprep.subr.mxu0 0.0
    %1815 = vmatpush1.xpose.msra.mxu0 0.0
    %1816 = vmatprep.subr.mxu0 0.0
    %1817 = vmatpush1.xpose.msra.mxu0 0.0
    %1818 = vmatprep.subr.mxu0 0.0
    %1819 = vmatpush1.xpose.msra.mxu0 0.0
    %1820 = vmatprep.subr.mxu0 0.0
    %1821 = vmatpush1.xpose.msra.mxu0 0.0
    %1822 = vmatprep.subr.mxu0 0.0
    %1823 = vmatpush1.xpose.msra.mxu0 %v1792
    %1824 = vmatprep.subr.mxu0 0.0
    %1825 = vmatpush1.xpose.msra.mxu0 %v1790
    %1826 = vmatprep.subr.mxu0 0.0
    %1827 = vmatpush2.xpose.msra.mxu0 0.0
    %1828 = vmatprep.subr.mxu0 0.0
    %1829 = vmatpush2.xpose.msra.mxu0 0.0
    %1830 = vmatprep.subr.mxu0 0.0
    %1831 = vmatpush2.xpose.msra.mxu0 0.0
    %1832 = vmatprep.subr.mxu0 0.0
    %1833 = vmatpush2.xpose.msra.mxu0 0.0
    %1834 = vmatprep.subr.mxu0 0.0
    %1835 = vmatpush2.xpose.msra.mxu0 0.0
    %1836 = vmatprep.subr.mxu0 0.0
    %1837 = vmatpush2.xpose.msra.mxu0 0.0
    %1838 = vmatprep.subr.mxu0 0.0
    %1839 = vmatpush2.xpose.msra.mxu0 0.0
    %1840 = vmatprep.subr.mxu0 0.0
    %1841 = vmatpush2.xpose.msra.mxu0 0.0
    %1842 = vmatprep.subr.mxu0 0.0
    %1843 = vmatpush2.xpose.msra.mxu0 0.0
    %1844 = vmatprep.subr.mxu0 0.0
    %1845 = vmatpush2.xpose.msra.mxu0 0.0
    %1846 = vmatprep.subr.mxu0 0.0
    %1847 = vmatpush2.xpose.msra.mxu0 0.0
    %1848 = vmatprep.subr.mxu0 0.0
    %1849 = vmatpush2.xpose.msra.mxu0 0.0
    %1850 = vmatprep.subr.mxu0 0.0
    %1851 = vmatpush2.xpose.msra.mxu0 0.0
    %1852 = vmatprep.subr.mxu0 0.0
    %1853 = vmatpush2.xpose.msra.mxu0 0.0
    %1854 = vmatprep.subr.mxu0 0.0
    %1855 = vmatpush2.xpose.msra.mxu0 0.0
    %1856 = vmatprep.subr.mxu0 0.0
    %1857 = vmatpush2.xpose.msra.mxu0 0.0
    %1858 = vmatprep.mubr.f32.mxu0 0.0
    %1859 = vmatmul.mubr.f32.gmra.mxu0 %v1786
    %v1860 = vpop.f32.mrf.mxu0
    %v1861 = vadd.f32 %v792, %v1860
    %v1862 = vpop.f32.mrf.mxu0
    %1863 = vmatprep.mubr.f32.mxu0 0.0
    %1864 = vmatmul.mubr.f32.gmra.mxu0 %v1788
    %v1865 = vpop.f32.mrf.mxu0
    %v1866 = vadd.f32 %v793, %v1865
    %v1867 = vpop.f32.mrf.mxu0
    %1868 = vdwg.mxu0
    %v1869 = vsel %vm882, %v1861, -inf
    %1870 = vmax.xlane.f32.xlu0 %v1869
    %v1871 = vpop.xlane.xlu0 %1870
    %v1872 = vsel %vm882, %v1866, -inf
    %1873 = vmax.xlane.f32.xlu0 %v1872
    %v1874 = vpop.xlane.xlu0 %1873
    %v1875 = vsub.f32 %v1861, %v1871
    %v1876 = vsub.f32 %v1866, %v1874
    %v1877 = vmul.f32 %v1875, 1.442695
    %v1878 = vpow.pop %v1877
    %v1879 = vmul.f32 %v1876, 1.442695
    %v1880 = vpow.pop %v1879
    %v1881 = vsel %vm882, %v1878, 0.0
    %1882 = vadd.xlane.f32.xlu0 %v1881
    %v1883 = vpop.xlane.xlu0 %1882
    %v1884 = vsel %vm882, %v1880, 0.0
    %1885 = vadd.xlane.f32.xlu0 %v1884
    %v1886 = vpop.xlane.xlu0 %1885
    %v1887 = vrcp.pop %v1883
    %v1888 = vmul.f32 %v1878, %v1887
    %v1889 = vrcp.pop %v1886
    %v1890 = vmul.f32 %v1880, %v1889
    %1893 = vrot.lane.b32.xlu0 %v784, 96
    %v1894 = vpop.permute.xlu0 %1893
    %1895 = vrot.lane.b32.xlu0 %v790, 96
    %v1896 = vpop.permute.xlu0 %1895
    %v1900 = vsel %vm882, %v1888, 0
    %v1903 = vsel %vm882, %v1890, 0
    %1905 = vmatprep.subr.mxu0 0.0
    %1906 = vmatpush1.msra.mxu0 0.0
    %1907 = vmatprep.subr.mxu0 0.0
    %1908 = vmatpush1.msra.mxu0 0.0
    %1909 = vmatprep.subr.mxu0 0.0
    %1910 = vmatpush1.msra.mxu0 0.0
    %1911 = vmatprep.subr.mxu0 0.0
    %1912 = vmatpush1.msra.mxu0 0.0
    %1913 = vmatprep.subr.mxu0 0.0
    %1914 = vmatpush1.msra.mxu0 0.0
    %1915 = vmatprep.subr.mxu0 0.0
    %1916 = vmatpush1.msra.mxu0 0.0
    %1917 = vmatprep.subr.mxu0 0.0
    %1918 = vmatpush1.msra.mxu0 0.0
    %1919 = vmatprep.subr.mxu0 0.0
    %1920 = vmatpush1.msra.mxu0 0.0
    %1921 = vmatprep.subr.mxu0 0.0
    %1922 = vmatpush1.msra.mxu0 0.0
    %1923 = vmatprep.subr.mxu0 0.0
    %1924 = vmatpush1.msra.mxu0 0.0
    %1925 = vmatprep.subr.mxu0 0.0
    %1926 = vmatpush1.msra.mxu0 0.0
    %1927 = vmatprep.subr.mxu0 0.0
    %1928 = vmatpush1.msra.mxu0 0.0
    %1929 = vmatprep.subr.mxu0 0.0
    %1930 = vmatpush1.msra.mxu0 0.0
    %1931 = vmatprep.subr.mxu0 0.0
    %1932 = vmatpush1.msra.mxu0 0.0
    %1933 = vmatprep.subr.mxu0 0.0
    %1934 = vmatpush1.msra.mxu0 %v1896
    %1935 = vmatprep.subr.mxu0 0.0
    %1936 = vmatpush1.msra.mxu0 %v1894
    %1937 = vmatprep.subr.mxu0 0.0
    %1938 = vmatpush2.msra.mxu0 0.0
    %1939 = vmatprep.subr.mxu0 0.0
    %1940 = vmatpush2.msra.mxu0 0.0
    %1941 = vmatprep.subr.mxu0 0.0
    %1942 = vmatpush2.msra.mxu0 0.0
    %1943 = vmatprep.subr.mxu0 0.0
    %1944 = vmatpush2.msra.mxu0 0.0
    %1945 = vmatprep.subr.mxu0 0.0
    %1946 = vmatpush2.msra.mxu0 0.0
    %1947 = vmatprep.subr.mxu0 0.0
    %1948 = vmatpush2.msra.mxu0 0.0
    %1949 = vmatprep.subr.mxu0 0.0
    %1950 = vmatpush2.msra.mxu0 0.0
    %1951 = vmatprep.subr.mxu0 0.0
    %1952 = vmatpush2.msra.mxu0 0.0
    %1953 = vmatprep.subr.mxu0 0.0
    %1954 = vmatpush2.msra.mxu0 0.0
    %1955 = vmatprep.subr.mxu0 0.0
    %1956 = vmatpush2.msra.mxu0 0.0
    %1957 = vmatprep.subr.mxu0 0.0
    %1958 = vmatpush2.msra.mxu0 0.0
    %1959 = vmatprep.subr.mxu0 0.0
    %1960 = vmatpush2.msra.mxu0 0.0
    %1961 = vmatprep.subr.mxu0 0.0
    %1962 = vmatpush2.msra.mxu0 0.0
    %1963 = vmatprep.subr.mxu0 0.0
    %1964 = vmatpush2.msra.mxu0 0.0
    %1965 = vmatprep.subr.mxu0 0.0
    %1966 = vmatpush2.msra.mxu0 0.0
    %1967 = vmatprep.subr.mxu0 0.0
    %1968 = vmatpush2.msra.mxu0 0.0
    %1969 = vmatprep.mubr.f32.mxu0 0.0
    %1970 = vmatmul.mubr.f32.gmra.mxu0 %v1900
    %v1971 = vpop.f32.mrf.mxu0
    %v1972 = vadd.f32 0.0, %v1971
    %v1973 = vpop.f32.mrf.mxu0
    %1974 = vmatprep.mubr.f32.mxu0 0.0
    %1975 = vmatmul.mubr.f32.gmra.mxu0 %v1903
    %v1976 = vpop.f32.mrf.mxu0
    %v1977 = vadd.f32 0.0, %v1976
    %v1978 = vpop.f32.mrf.mxu0
    %1979 = vdwg.mxu0
    %1980 = vrot.lane.b32.xlu0 %v465, 64
    %v1981 = vpop.permute.xlu0 %1980
    %1982 = vrot.lane.b32.xlu0 %v471, 64
    %v1983 = vpop.permute.xlu0 %1982
    %1984 = vrot.lane.b32.xlu0 %v707, 64
    %v1985 = vpop.permute.xlu0 %1984
    %1986 = vrot.lane.b32.xlu0 %v713, 64
    %v1987 = vpop.permute.xlu0 %1986
    %v1988 = vsel %vm794, %v1981, 0
    %v1990 = vsel %vm794, %v1983, 0
    %v1992 = vsel %vm794, %v1985, 0
    %v1994 = vsel %vm794, %v1987, 0
    %1996 = vmatprep.subr.mxu0 0.0
    %1997 = vmatpush1.xpose.msra.mxu0 0.0
    %1998 = vmatprep.subr.mxu0 0.0
    %1999 = vmatpush1.xpose.msra.mxu0 0.0
    %2000 = vmatprep.subr.mxu0 0.0
    %2001 = vmatpush1.xpose.msra.mxu0 0.0
    %2002 = vmatprep.subr.mxu0 0.0
    %2003 = vmatpush1.xpose.msra.mxu0 0.0
    %2004 = vmatprep.subr.mxu0 0.0
    %2005 = vmatpush1.xpose.msra.mxu0 0.0
    %2006 = vmatprep.subr.mxu0 0.0
    %2007 = vmatpush1.xpose.msra.mxu0 0.0
    %2008 = vmatprep.subr.mxu0 0.0
    %2009 = vmatpush1.xpose.msra.mxu0 0.0
    %2010 = vmatprep.subr.mxu0 0.0
    %2011 = vmatpush1.xpose.msra.mxu0 0.0
    %2012 = vmatprep.subr.mxu0 0.0
    %2013 = vmatpush1.xpose.msra.mxu0 0.0
    %2014 = vmatprep.subr.mxu0 0.0
    %2015 = vmatpush1.xpose.msra.mxu0 0.0
    %2016 = vmatprep.subr.mxu0 0.0
    %2017 = vmatpush1.xpose.msra.mxu0 0.0
    %2018 = vmatprep.subr.mxu0 0.0
    %2019 = vmatpush1.xpose.msra.mxu0 0.0
    %2020 = vmatprep.subr.mxu0 0.0
    %2021 = vmatpush1.xpose.msra.mxu0 0.0
    %2022 = vmatprep.subr.mxu0 0.0
    %2023 = vmatpush1.xpose.msra.mxu0 0.0
    %2024 = vmatprep.subr.mxu0 0.0
    %2025 = vmatpush1.xpose.msra.mxu0 %v1994
    %2026 = vmatprep.subr.mxu0 0.0
    %2027 = vmatpush1.xpose.msra.mxu0 %v1992
    %2028 = vmatprep.subr.mxu0 0.0
    %2029 = vmatpush2.xpose.msra.mxu0 0.0
    %2030 = vmatprep.subr.mxu0 0.0
    %2031 = vmatpush2.xpose.msra.mxu0 0.0
    %2032 = vmatprep.subr.mxu0 0.0
    %2033 = vmatpush2.xpose.msra.mxu0 0.0
    %2034 = vmatprep.subr.mxu0 0.0
    %2035 = vmatpush2.xpose.msra.mxu0 0.0
    %2036 = vmatprep.subr.mxu0 0.0
    %2037 = vmatpush2.xpose.msra.mxu0 0.0
    %2038 = vmatprep.subr.mxu0 0.0
    %2039 = vmatpush2.xpose.msra.mxu0 0.0
    %2040 = vmatprep.subr.mxu0 0.0
    %2041 = vmatpush2.xpose.msra.mxu0 0.0
    %2042 = vmatprep.subr.mxu0 0.0
    %2043 = vmatpush2.xpose.msra.mxu0 0.0
    %2044 = vmatprep.subr.mxu0 0.0
    %2045 = vmatpush2.xpose.msra.mxu0 0.0
    %2046 = vmatprep.subr.mxu0 0.0
    %2047 = vmatpush2.xpose.msra.mxu0 0.0
    %2048 = vmatprep.subr.mxu0 0.0
    %2049 = vmatpush2.xpose.msra.mxu0 0.0
    %2050 = vmatprep.subr.mxu0 0.0
    %2051 = vmatpush2.xpose.msra.mxu0 0.0
    %2052 = vmatprep.subr.mxu0 0.0
    %2053 = vmatpush2.xpose.msra.mxu0 0.0
    %2054 = vmatprep.subr.mxu0 0.0
    %2055 = vmatpush2.xpose.msra.mxu0 0.0
    %2056 = vmatprep.subr.mxu0 0.0
    %2057 = vmatpush2.xpose.msra.mxu0 0.0
    %2058 = vmatprep.subr.mxu0 0.0
    %2059 = vmatpush2.xpose.msra.mxu0 0.0
    %2060 = vmatprep.mubr.f32.mxu0 0.0
    %2061 = vmatmul.mubr.f32.gmra.mxu0 %v1988
    %v2062 = vpop.f32.mrf.mxu0
    %v2063 = vadd.f32 %v792, %v2062
    %v2064 = vpop.f32.mrf.mxu0
    %2065 = vmatprep.mubr.f32.mxu0 0.0
    %2066 = vmatmul.mubr.f32.gmra.mxu0 %v1990
    %v2067 = vpop.f32.mrf.mxu0
    %v2068 = vadd.f32 %v793, %v2067
    %v2069 = vpop.f32.mrf.mxu0
    %2070 = vdwg.mxu0
    %v2071 = vsel %vm882, %v2063, -inf
    %2072 = vmax.xlane.f32.xlu0 %v2071
    %v2073 = vpop.xlane.xlu0 %2072
    %v2074 = vsel %vm882, %v2068, -inf
    %2075 = vmax.xlane.f32.xlu0 %v2074
    %v2076 = vpop.xlane.xlu0 %2075
    %v2077 = vsub.f32 %v2063, %v2073
    %v2078 = vsub.f32 %v2068, %v2076
    %v2079 = vmul.f32 %v2077, 1.442695
    %v2080 = vpow.pop %v2079
    %v2081 = vmul.f32 %v2078, 1.442695
    %v2082 = vpow.pop %v2081
    %v2083 = vsel %vm882, %v2080, 0.0
    %2084 = vadd.xlane.f32.xlu0 %v2083
    %v2085 = vpop.xlane.xlu0 %2084
    %v2086 = vsel %vm882, %v2082, 0.0
    %2087 = vadd.xlane.f32.xlu0 %v2086
    %v2088 = vpop.xlane.xlu0 %2087
    %v2089 = vrcp.pop %v2085
    %v2090 = vmul.f32 %v2080, %v2089
    %v2091 = vrcp.pop %v2088
    %v2092 = vmul.f32 %v2082, %v2091
    %2093 = vrot.lane.b32.xlu0 %v784, 64
    %v2094 = vpop.permute.xlu0 %2093
    %2095 = vrot.lane.b32.xlu0 %v790, 64
    %v2096 = vpop.permute.xlu0 %2095
    %v2100 = vsel %vm882, %v2090, 0
    %v2103 = vsel %vm882, %v2092, 0
    %2105 = vmatprep.subr.mxu0 0.0
    %2106 = vmatpush1.msra.mxu0 0.0
    %2107 = vmatprep.subr.mxu0 0.0
    %2108 = vmatpush1.msra.mxu0 0.0
    %2109 = vmatprep.subr.mxu0 0.0
    %2110 = vmatpush1.msra.mxu0 0.0
    %2111 = vmatprep.subr.mxu0 0.0
    %2112 = vmatpush1.msra.mxu0 0.0
    %2113 = vmatprep.subr.mxu0 0.0
    %2114 = vmatpush1.msra.mxu0 0.0
    %2115 = vmatprep.subr.mxu0 0.0
    %2116 = vmatpush1.msra.mxu0 0.0
    %2117 = vmatprep.subr.mxu0 0.0
    %2118 = vmatpush1.msra.mxu0 0.0
    %2119 = vmatprep.subr.mxu0 0.0
    %2120 = vmatpush1.msra.mxu0 0.0
    %2121 = vmatprep.subr.mxu0 0.0
    %2122 = vmatpush1.msra.mxu0 0.0
    %2123 = vmatprep.subr.mxu0 0.0
    %2124 = vmatpush1.msra.mxu0 0.0
    %2125 = vmatprep.subr.mxu0 0.0
    %2126 = vmatpush1.msra.mxu0 0.0
    %2127 = vmatprep.subr.mxu0 0.0
    %2128 = vmatpush1.msra.mxu0 0.0
    %2129 = vmatprep.subr.mxu0 0.0
    %2130 = vmatpush1.msra.mxu0 0.0
    %2131 = vmatprep.subr.mxu0 0.0
    %2132 = vmatpush1.msra.mxu0 0.0
    %2133 = vmatprep.subr.mxu0 0.0
    %2134 = vmatpush1.msra.mxu0 %v2096
    %2135 = vmatprep.subr.mxu0 0.0
    %2136 = vmatpush1.msra.mxu0 %v2094
    %2137 = vmatprep.subr.mxu0 0.0
    %2138 = vmatpush2.msra.mxu0 0.0
    %2139 = vmatprep.subr.mxu0 0.0
    %2140 = vmatpush2.msra.mxu0 0.0
    %2141 = vmatprep.subr.mxu0 0.0
    %2142 = vmatpush2.msra.mxu0 0.0
    %2143 = vmatprep.subr.mxu0 0.0
    %2144 = vmatpush2.msra.mxu0 0.0
    %2145 = vmatprep.subr.mxu0 0.0
    %2146 = vmatpush2.msra.mxu0 0.0
    %2147 = vmatprep.subr.mxu0 0.0
    %2148 = vmatpush2.msra.mxu0 0.0
    %2149 = vmatprep.subr.mxu0 0.0
    %2150 = vmatpush2.msra.mxu0 0.0
    %2151 = vmatprep.subr.mxu0 0.0
    %2152 = vmatpush2.msra.mxu0 0.0
    %2153 = vmatprep.subr.mxu0 0.0
    %2154 = vmatpush2.msra.mxu0 0.0
    %2155 = vmatprep.subr.mxu0 0.0
    %2156 = vmatpush2.msra.mxu0 0.0
    %2157 = vmatprep.subr.mxu0 0.0
    %2158 = vmatpush2.msra.mxu0 0.0
    %2159 = vmatprep.subr.mxu0 0.0
    %2160 = vmatpush2.msra.mxu0 0.0
    %2161 = vmatprep.subr.mxu0 0.0
    %2162 = vmatpush2.msra.mxu0 0.0
    %2163 = vmatprep.subr.mxu0 0.0
    %2164 = vmatpush2.msra.mxu0 0.0
    %2165 = vmatprep.subr.mxu0 0.0
    %2166 = vmatpush2.msra.mxu0 0.0
    %2167 = vmatprep.subr.mxu0 0.0
    %2168 = vmatpush2.msra.mxu0 0.0
    %2169 = vmatprep.mubr.f32.mxu0 0.0
    %2170 = vmatmul.mubr.f32.gmra.mxu0 %v2100
    %v2171 = vpop.f32.mrf.mxu0
    %v2172 = vadd.f32 0.0, %v2171
    %v2173 = vpop.f32.mrf.mxu0
    %2174 = vmatprep.mubr.f32.mxu0 0.0
    %2175 = vmatmul.mubr.f32.gmra.mxu0 %v2103
    %v2176 = vpop.f32.mrf.mxu0
    %v2177 = vadd.f32 0.0, %v2176
    %v2178 = vpop.f32.mrf.mxu0
    %2179 = vdwg.mxu0
    %2180 = vrot.lane.b32.xlu0 %v465, 32
    %v2181 = vpop.permute.xlu0 %2180
    %2182 = vrot.lane.b32.xlu0 %v471, 32
    %v2183 = vpop.permute.xlu0 %2182
    %2184 = vrot.lane.b32.xlu0 %v707, 32
    %v2185 = vpop.permute.xlu0 %2184
    %2186 = vrot.lane.b32.xlu0 %v713, 32
    %v2187 = vpop.permute.xlu0 %2186
    %v2188 = vsel %vm794, %v2181, 0
    %v2190 = vsel %vm794, %v2183, 0
    %v2192 = vsel %vm794, %v2185, 0
    %v2194 = vsel %vm794, %v2187, 0
    %2196 = vmatprep.subr.mxu0 0.0
    %2197 = vmatpush1.xpose.msra.mxu0 0.0
    %2198 = vmatprep.subr.mxu0 0.0
    %2199 = vmatpush1.xpose.msra.mxu0 0.0
    %2200 = vmatprep.subr.mxu0 0.0
    %2201 = vmatpush1.xpose.msra.mxu0 0.0
    %2202 = vmatprep.subr.mxu0 0.0
    %2203 = vmatpush1.xpose.msra.mxu0 0.0
    %2204 = vmatprep.subr.mxu0 0.0
    %2205 = vmatpush1.xpose.msra.mxu0 0.0
    %2206 = vmatprep.subr.mxu0 0.0
    %2207 = vmatpush1.xpose.msra.mxu0 0.0
    %2208 = vmatprep.subr.mxu0 0.0
    %2209 = vmatpush1.xpose.msra.mxu0 0.0
    %2210 = vmatprep.subr.mxu0 0.0
    %2211 = vmatpush1.xpose.msra.mxu0 0.0
    %2212 = vmatprep.subr.mxu0 0.0
    %2213 = vmatpush1.xpose.msra.mxu0 0.0
    %2214 = vmatprep.subr.mxu0 0.0
    %2215 = vmatpush1.xpose.msra.mxu0 0.0
    %2216 = vmatprep.subr.mxu0 0.0
    %2217 = vmatpush1.xpose.msra.mxu0 0.0
    %2218 = vmatprep.subr.mxu0 0.0
    %2219 = vmatpush1.xpose.msra.mxu0 0.0
    %2220 = vmatprep.subr.mxu0 0.0
    %2221 = vmatpush1.xpose.msra.mxu0 0.0
    %2222 = vmatprep.subr.mxu0 0.0
    %2223 = vmatpush1.xpose.msra.mxu0 0.0
    %2224 = vmatprep.subr.mxu0 0.0
    %2225 = vmatpush1.xpose.msra.mxu0 %v2194
    %2226 = vmatprep.subr.mxu0 0.0
    %2227 = vmatpush1.xpose.msra.mxu0 %v2192
    %2228 = vmatprep.subr.mxu0 0.0
    %2229 = vmatpush2.xpose.msra.mxu0 0.0
    %2230 = vmatprep.subr.mxu0 0.0
    %2231 = vmatpush2.xpose.msra.mxu0 0.0
    %2232 = vmatprep.subr.mxu0 0.0
    %2233 = vmatpush2.xpose.msra.mxu0 0.0
    %2234 = vmatprep.subr.mxu0 0.0
    %2235 = vmatpush2.xpose.msra.mxu0 0.0
    %2236 = vmatprep.subr.mxu0 0.0
    %2237 = vmatpush2.xpose.msra.mxu0 0.0
    %2238 = vmatprep.subr.mxu0 0.0
    %2239 = vmatpush2.xpose.msra.mxu0 0.0
    %2240 = vmatprep.subr.mxu0 0.0
    %2241 = vmatpush2.xpose.msra.mxu0 0.0
    %2242 = vmatprep.subr.mxu0 0.0
    %2243 = vmatpush2.xpose.msra.mxu0 0.0
    %2244 = vmatprep.subr.mxu0 0.0
    %2245 = vmatpush2.xpose.msra.mxu0 0.0
    %2246 = vmatprep.subr.mxu0 0.0
    %2247 = vmatpush2.xpose.msra.mxu0 0.0
    %2248 = vmatprep.subr.mxu0 0.0
    %2249 = vmatpush2.xpose.msra.mxu0 0.0
    %2250 = vmatprep.subr.mxu0 0.0
    %2251 = vmatpush2.xpose.msra.mxu0 0.0
    %2252 = vmatprep.subr.mxu0 0.0
    %2253 = vmatpush2.xpose.msra.mxu0 0.0
    %2254 = vmatprep.subr.mxu0 0.0
    %2255 = vmatpush2.xpose.msra.mxu0 0.0
    %2256 = vmatprep.subr.mxu0 0.0
    %2257 = vmatpush2.xpose.msra.mxu0 0.0
    %2258 = vmatprep.subr.mxu0 0.0
    %2259 = vmatpush2.xpose.msra.mxu0 0.0
    %2260 = vmatprep.mubr.f32.mxu0 0.0
    %2261 = vmatmul.mubr.f32.gmra.mxu0 %v2188
    %v2262 = vpop.f32.mrf.mxu0
    %v2263 = vadd.f32 %v792, %v2262
    %v2264 = vpop.f32.mrf.mxu0
    %2265 = vmatprep.mubr.f32.mxu0 0.0
    %2266 = vmatmul.mubr.f32.gmra.mxu0 %v2190
    %v2267 = vpop.f32.mrf.mxu0
    %v2268 = vadd.f32 %v793, %v2267
    %v2269 = vpop.f32.mrf.mxu0
    %2270 = vdwg.mxu0
    %v2271 = vsel %vm882, %v2263, -inf
    %2272 = vmax.xlane.f32.xlu0 %v2271
    %v2273 = vpop.xlane.xlu0 %2272
    %v2274 = vsel %vm882, %v2268, -inf
    %2275 = vmax.xlane.f32.xlu0 %v2274
    %v2276 = vpop.xlane.xlu0 %2275
    %v2277 = vsub.f32 %v2263, %v2273
    %v2278 = vsub.f32 %v2268, %v2276
    %v2279 = vmul.f32 %v2277, 1.442695
    %v2280 = vpow.pop %v2279
    %v2281 = vmul.f32 %v2278, 1.442695
    %v2282 = vpow.pop %v2281
    %v2283 = vsel %vm882, %v2280, 0.0
    %2284 = vadd.xlane.f32.xlu0 %v2283
    %v2285 = vpop.xlane.xlu0 %2284
    %v2286 = vsel %vm882, %v2282, 0.0
    %2287 = vadd.xlane.f32.xlu0 %v2286
    %v2288 = vpop.xlane.xlu0 %2287
    %v2289 = vrcp.pop %v2285
    %v2290 = vmul.f32 %v2280, %v2289
    %v2291 = vrcp.pop %v2288
    %v2292 = vmul.f32 %v2282, %v2291
    %2293 = vrot.lane.b32.xlu0 %v784, 32
    %v2294 = vpop.permute.xlu0 %2293
    %2295 = vrot.lane.b32.xlu0 %v790, 32
    %v2296 = vpop.permute.xlu0 %2295
    %v2300 = vsel %vm882, %v2290, 0
    %v2303 = vsel %vm882, %v2292, 0
    %2305 = vmatprep.subr.mxu0 0.0
    %2306 = vmatpush1.msra.mxu0 0.0
    %2307 = vmatprep.subr.mxu0 0.0
    %2308 = vmatpush1.msra.mxu0 0.0
    %2309 = vmatprep.subr.mxu0 0.0
    %2310 = vmatpush1.msra.mxu0 0.0
    %2311 = vmatprep.subr.mxu0 0.0
    %2312 = vmatpush1.msra.mxu0 0.0
    %2313 = vmatprep.subr.mxu0 0.0
    %2314 = vmatpush1.msra.mxu0 0.0
    %2315 = vmatprep.subr.mxu0 0.0
    %2316 = vmatpush1.msra.mxu0 0.0
    %2317 = vmatprep.subr.mxu0 0.0
    %2318 = vmatpush1.msra.mxu0 0.0
    %2319 = vmatprep.subr.mxu0 0.0
    %2320 = vmatpush1.msra.mxu0 0.0
    %2321 = vmatprep.subr.mxu0 0.0
    %2322 = vmatpush1.msra.mxu0 0.0
    %2323 = vmatprep.subr.mxu0 0.0
    %2324 = vmatpush1.msra.mxu0 0.0
    %2325 = vmatprep.subr.mxu0 0.0
    %2326 = vmatpush1.msra.mxu0 0.0
    %2327 = vmatprep.subr.mxu0 0.0
    %2328 = vmatpush1.msra.mxu0 0.0
    %2329 = vmatprep.subr.mxu0 0.0
    %2330 = vmatpush1.msra.mxu0 0.0
    %2331 = vmatprep.subr.mxu0 0.0
    %2332 = vmatpush1.msra.mxu0 0.0
    %2333 = vmatprep.subr.mxu0 0.0
    %2334 = vmatpush1.msra.mxu0 %v2296
    %2335 = vmatprep.subr.mxu0 0.0
    %2336 = vmatpush1.msra.mxu0 %v2294
    %2337 = vmatprep.subr.mxu0 0.0
    %2338 = vmatpush2.msra.mxu0 0.0
    %2339 = vmatprep.subr.mxu0 0.0
    %2340 = vmatpush2.msra.mxu0 0.0
    %2341 = vmatprep.subr.mxu0 0.0
    %2342 = vmatpush2.msra.mxu0 0.0
    %2343 = vmatprep.subr.mxu0 0.0
    %2344 = vmatpush2.msra.mxu0 0.0
    %2345 = vmatprep.subr.mxu0 0.0
    %2346 = vmatpush2.msra.mxu0 0.0
    %2347 = vmatprep.subr.mxu0 0.0
    %2348 = vmatpush2.msra.mxu0 0.0
    %2349 = vmatprep.subr.mxu0 0.0
    %2350 = vmatpush2.msra.mxu0 0.0
    %2351 = vmatprep.subr.mxu0 0.0
    %2352 = vmatpush2.msra.mxu0 0.0
    %2353 = vmatprep.subr.mxu0 0.0
    %2354 = vmatpush2.msra.mxu0 0.0
    %2355 = vmatprep.subr.mxu0 0.0
    %2356 = vmatpush2.msra.mxu0 0.0
    %2357 = vmatprep.subr.mxu0 0.0
    %2358 = vmatpush2.msra.mxu0 0.0
    %2359 = vmatprep.subr.mxu0 0.0
    %2360 = vmatpush2.msra.mxu0 0.0
    %2361 = vmatprep.subr.mxu0 0.0
    %2362 = vmatpush2.msra.mxu0 0.0
    %2363 = vmatprep.subr.mxu0 0.0
    %2364 = vmatpush2.msra.mxu0 0.0
    %2365 = vmatprep.subr.mxu0 0.0
    %2366 = vmatpush2.msra.mxu0 0.0
    %2367 = vmatprep.subr.mxu0 0.0
    %2368 = vmatpush2.msra.mxu0 0.0
    %2369 = vmatprep.mubr.f32.mxu0 0.0
    %2370 = vmatmul.mubr.f32.gmra.mxu0 %v2300
    %v2371 = vpop.f32.mrf.mxu0
    %v2372 = vadd.f32 0.0, %v2371
    %v2373 = vpop.f32.mrf.mxu0
    %2374 = vmatprep.mubr.f32.mxu0 0.0
    %2375 = vmatmul.mubr.f32.gmra.mxu0 %v2303
    %v2376 = vpop.f32.mrf.mxu0
    %v2377 = vadd.f32 0.0, %v2376
    %v2378 = vpop.f32.mrf.mxu0
    %2379 = vdwg.mxu0
    %2382 = vrot.lane.b32.xlu0 %v1180, 32
    %v2383 = vpop.permute.xlu0 %2382
    %2384 = vrot.lane.b32.xlu0 %v1185, 32
    %v2385 = vpop.permute.xlu0 %2384
    %2390 = vrot.lane.b32.xlu0 %v1380, 64
    %v2391 = vpop.permute.xlu0 %2390
    %2392 = vrot.lane.b32.xlu0 %v1385, 64
    %v2393 = vpop.permute.xlu0 %2392
    %2398 = vrot.lane.b32.xlu0 %v1580, 96
    %v2399 = vpop.permute.xlu0 %2398
    %2400 = vrot.lane.b32.xlu0 %v1585, 96
    %v2401 = vpop.permute.xlu0 %2400
    %2406 = vrot.lane.b32.xlu0 %v1972, 32
    %v2407 = vpop.permute.xlu0 %2406
    %2408 = vrot.lane.b32.xlu0 %v1977, 32
    %v2409 = vpop.permute.xlu0 %2408
    %2414 = vrot.lane.b32.xlu0 %v2172, 64
    %v2415 = vpop.permute.xlu0 %2414
    %2416 = vrot.lane.b32.xlu0 %v2177, 64
    %v2417 = vpop.permute.xlu0 %2416
    %2422 = vrot.lane.b32.xlu0 %v2372, 96
    %v2423 = vpop.permute.xlu0 %2422
    %2424 = vrot.lane.b32.xlu0 %v2377, 96
    %v2425 = vpop.permute.xlu0 %2424
    %v2428 = vsel %vm794, %v978, %v2383
    %v2429 = vsel %vm794, %v983, %v2385
    %vm2430 = vcmask 523264
    %v2431 = vsel %vm2430, %v2428, %v2391
    %v2432 = vsel %vm2430, %v2429, %v2393
    %vm2433 = vcmask 785408
    %v2434 = vsel %vm2433, %v2431, %v2399
    %v2435 = vsel %vm2433, %v2432, %v2401
    %v2436 = vsel %vm794, %v1770, %v2407
    %v2437 = vsel %vm794, %v1775, %v2409
    %v2438 = vsel %vm2430, %v2436, %v2415
    %v2439 = vsel %vm2430, %v2437, %v2417
    %v2440 = vsel %vm2433, %v2438, %v2423
    %v2441 = vsel %vm2433, %v2439, %v2425
    %v2442 = vld [vmem:[#allocation14] sm:$0xff]
    %v2443 = vld [vmem:[#allocation14 + $0x8] sm:$0xff]
    %v2444 = vld [vmem:[#allocation14 + $0x10] sm:$0xff]
    %v2445 = vld [vmem:[#allocation14 + $0x18] sm:$0xff]
    %v2446 = vld [vmem:[#allocation14 + $0x20] sm:$0xff]
    %v2447 = vld [vmem:[#allocation14 + $0x28] sm:$0xff]
    %v2448 = vld [vmem:[#allocation14 + $0x30] sm:$0xff]
    %v2449 = vld [vmem:[#allocation14 + $0x38] sm:$0xff]
    %v2450 = vld [vmem:[#allocation14 + $0x40] sm:$0xff]
    %v2451 = vld [vmem:[#allocation14 + $0x48] sm:$0xff]
    %v2452 = vld [vmem:[#allocation14 + $0x50] sm:$0xff]
    %v2453 = vld [vmem:[#allocation14 + $0x58] sm:$0xff]
    %v2454 = vld [vmem:[#allocation14 + $0x60] sm:$0xff]
    %v2455 = vld [vmem:[#allocation14 + $0x68] sm:$0xff]
    %v2456 = vld [vmem:[#allocation14 + $0x70] sm:$0xff]
    %v2457 = vld [vmem:[#allocation14 + $0x78] sm:$0xff]
    %v2458 = vld [vmem:[#allocation14 + $0x80] sm:$0xff]
    %v2459 = vld [vmem:[#allocation14 + $0x88] sm:$0xff]
    %v2460 = vld [vmem:[#allocation14 + $0x90] sm:$0xff]
    %v2461 = vld [vmem:[#allocation14 + $0x98] sm:$0xff]
    %v2462 = vld [vmem:[#allocation14 + $0xa0] sm:$0xff]
    %v2463 = vld [vmem:[#allocation14 + $0xa8] sm:$0xff]
    %v2464 = vld [vmem:[#allocation14 + $0xb0] sm:$0xff]
    %v2465 = vld [vmem:[#allocation14 + $0xb8] sm:$0xff]
    %v2466 = vld [vmem:[#allocation14 + $0xc0] sm:$0xff]
    %v2467 = vld [vmem:[#allocation14 + $0xc8] sm:$0xff]
    %v2468 = vld [vmem:[#allocation14 + $0xd0] sm:$0xff]
    %v2469 = vld [vmem:[#allocation14 + $0xd8] sm:$0xff]
    %v2470 = vld [vmem:[#allocation14 + $0xe0] sm:$0xff]
    %v2471 = vld [vmem:[#allocation14 + $0xe8] sm:$0xff]
    %v2472 = vld [vmem:[#allocation14 + $0xf0] sm:$0xff]
    %v2473 = vld [vmem:[#allocation14 + $0xf8] sm:$0xff]
    %v2474 = vld [vmem:[#allocation14 + $0x100] sm:$0xff]
    %v2475 = vld [vmem:[#allocation14 + $0x108] sm:$0xff]
    %v2476 = vld [vmem:[#allocation14 + $0x110] sm:$0xff]
    %v2477 = vld [vmem:[#allocation14 + $0x118] sm:$0xff]
    %v2478 = vld [vmem:[#allocation14 + $0x120] sm:$0xff]
    %v2479 = vld [vmem:[#allocation14 + $0x128] sm:$0xff]
    %v2480 = vld [vmem:[#allocation14 + $0x130] sm:$0xff]
    %v2481 = vld [vmem:[#allocation14 + $0x138] sm:$0xff]
    %v2482 = vld [vmem:[#allocation14 + $0x140] sm:$0xff]
    %v2483 = vld [vmem:[#allocation14 + $0x148] sm:$0xff]
    %v2484 = vld [vmem:[#allocation14 + $0x150] sm:$0xff]
    %v2485 = vld [vmem:[#allocation14 + $0x158] sm:$0xff]
    %v2486 = vld [vmem:[#allocation14 + $0x160] sm:$0xff]
    %v2487 = vld [vmem:[#allocation14 + $0x168] sm:$0xff]
    %v2488 = vld [vmem:[#allocation14 + $0x170] sm:$0xff]
    %v2489 = vld [vmem:[#allocation14 + $0x178] sm:$0xff]
    %v2490 = vld [vmem:[#allocation14 + $0x180] sm:$0xff]
    %v2491 = vld [vmem:[#allocation14 + $0x188] sm:$0xff]
    %v2492 = vld [vmem:[#allocation14 + $0x190] sm:$0xff]
    %v2493 = vld [vmem:[#allocation14 + $0x198] sm:$0xff]
    %v2494 = vld [vmem:[#allocation14 + $0x1a0] sm:$0xff]
    %v2495 = vld [vmem:[#allocation14 + $0x1a8] sm:$0xff]
    %v2496 = vld [vmem:[#allocation14 + $0x1b0] sm:$0xff]
    %v2497 = vld [vmem:[#allocation14 + $0x1b8] sm:$0xff]
    %v2498 = vld [vmem:[#allocation14 + $0x1c0] sm:$0xff]
    %v2499 = vld [vmem:[#allocation14 + $0x1c8] sm:$0xff]
    %v2500 = vld [vmem:[#allocation14 + $0x1d0] sm:$0xff]
    %v2501 = vld [vmem:[#allocation14 + $0x1d8] sm:$0xff]
    %v2502 = vld [vmem:[#allocation14 + $0x1e0] sm:$0xff]
    %v2503 = vld [vmem:[#allocation14 + $0x1e8] sm:$0xff]
    %v2504 = vld [vmem:[#allocation14 + $0x1f0] sm:$0xff]
    %v2505 = vld [vmem:[#allocation14 + $0x1f8] sm:$0xff]
    %v2506 = vld [vmem:[%s10] sm:$0x3]
    %v2508 = vlaneseq
    %v2509 = vshrl.u32 %v2508, 7
    %v2510 = vsub.s32 0, %v2509
    %v2511 = vrot.slane %v2506, %v2510
    %v2512 = vlaneseq
    %v2513 = vshrl.u32 %v2512, 7
    %v2514 = vsub.s32 1, %v2513
    %v2515 = vrot.slane %v2506, %v2514
    %2518 = vmatprep.subr.mxu0 %v2473
    %2519 = vmatpush1.msra.mxu0 %v2472
    %2520 = vmatprep.subr.mxu0 %v2471
    %2521 = vmatpush1.msra.mxu0 %v2470
    %2522 = vmatprep.subr.mxu0 %v2469
    %2523 = vmatpush1.msra.mxu0 %v2468
    %2524 = vmatprep.subr.mxu0 %v2467
    %2525 = vmatpush1.msra.mxu0 %v2466
    %2526 = vmatprep.subr.mxu0 %v2465
    %2527 = vmatpush1.msra.mxu0 %v2464
    %2528 = vmatprep.subr.mxu0 %v2463
    %2529 = vmatpush1.msra.mxu0 %v2462
    %2530 = vmatprep.subr.mxu0 %v2461
    %2531 = vmatpush1.msra.mxu0 %v2460
    %2532 = vmatprep.subr.mxu0 %v2459
    %2533 = vmatpush1.msra.mxu0 %v2458
    %2534 = vmatprep.subr.mxu0 %v2457
    %2535 = vmatpush1.msra.mxu0 %v2456
    %2536 = vmatprep.subr.mxu0 %v2455
    %2537 = vmatpush1.msra.mxu0 %v2454
    %2538 = vmatprep.subr.mxu0 %v2453
    %2539 = vmatpush1.msra.mxu0 %v2452
    %2540 = vmatprep.subr.mxu0 %v2451
    %2541 = vmatpush1.msra.mxu0 %v2450
    %2542 = vmatprep.subr.mxu0 %v2449
    %2543 = vmatpush1.msra.mxu0 %v2448
    %2544 = vmatprep.subr.mxu0 %v2447
    %2545 = vmatpush1.msra.mxu0 %v2446
    %2546 = vmatprep.subr.mxu0 %v2445
    %2547 = vmatpush1.msra.mxu0 %v2444
    %2548 = vmatprep.subr.mxu0 %v2443
    %2549 = vmatpush1.msra.mxu0 %v2442
    %2550 = vmatprep.subr.mxu0 %v2505
    %2551 = vmatpush2.msra.mxu0 %v2504
    %2552 = vmatprep.subr.mxu0 %v2503
    %2553 = vmatpush2.msra.mxu0 %v2502
    %2554 = vmatprep.subr.mxu0 %v2501
    %2555 = vmatpush2.msra.mxu0 %v2500
    %2556 = vmatprep.subr.mxu0 %v2499
    %2557 = vmatpush2.msra.mxu0 %v2498
    %2558 = vmatprep.subr.mxu0 %v2497
    %2559 = vmatpush2.msra.mxu0 %v2496
    %2560 = vmatprep.subr.mxu0 %v2495
    %2561 = vmatpush2.msra.mxu0 %v2494
    %2562 = vmatprep.subr.mxu0 %v2493
    %2563 = vmatpush2.msra.mxu0 %v2492
    %2564 = vmatprep.subr.mxu0 %v2491
    %2565 = vmatpush2.msra.mxu0 %v2490
    %2566 = vmatprep.subr.mxu0 %v2489
    %2567 = vmatpush2.msra.mxu0 %v2488
    %2568 = vmatprep.subr.mxu0 %v2487
    %2569 = vmatpush2.msra.mxu0 %v2486
    %2570 = vmatprep.subr.mxu0 %v2485
    %2571 = vmatpush2.msra.mxu0 %v2484
    %2572 = vmatprep.subr.mxu0 %v2483
    %2573 = vmatpush2.msra.mxu0 %v2482
    %2574 = vmatprep.subr.mxu0 %v2481
    %2575 = vmatpush2.msra.mxu0 %v2480
    %2576 = vmatprep.subr.mxu0 %v2479
    %2577 = vmatpush2.msra.mxu0 %v2478
    %2578 = vmatprep.subr.mxu0 %v2477
    %2579 = vmatpush2.msra.mxu0 %v2476
    %2580 = vmatprep.subr.mxu0 %v2475
    %2581 = vmatpush2.msra.mxu0 %v2474
    %2582 = vmatprep.mubr.f32.mxu0 %v2440
    %2583 = vmatmul.mubr.f32.gmra.mxu0 %v2434
    %v2584 = vpop.f32.mrf.mxu0
    %v2585 = vadd.f32 %v2511, %v2584
    %v2586 = vpop.f32.mrf.mxu0
    %v2587 = vadd.f32 %v2515, %v2586
    %2588 = vmatprep.mubr.f32.mxu0 %v2441
    %2589 = vmatmul.mubr.f32.gmra.mxu0 %v2435
    %v2590 = vpop.f32.mrf.mxu0
    %v2591 = vadd.f32 %v2511, %v2590
    %v2592 = vpop.f32.mrf.mxu0
    %v2593 = vadd.f32 %v2515, %v2592
    %2594 = vdwg.mxu0
    %v2595 = vmax.f32 %v2585, 0.0
    %v2596 = vmax.f32 %v2587, 0.0
    %v2597 = vmax.f32 %v2591, 0.0
    %v2598 = vmax.f32 %v2593, 0.0
    %v2599 = vld [vmem:[#allocation7] sm:$0xff]
    %v2600 = vld [vmem:[#allocation7 + $0x8] sm:$0xff]
    %v2601 = vld [vmem:[#allocation7 + $0x10] sm:$0xff]
    %v2602 = vld [vmem:[#allocation7 + $0x18] sm:$0xff]
    %v2603 = vld [vmem:[#allocation16] sm:$0xff]
    %v2604 = vld [vmem:[#allocation16 + $0x8] sm:$0xff]
    %v2605 = vld [vmem:[#allocation16 + $0x10] sm:$0xff]
    %v2606 = vld [vmem:[#allocation16 + $0x18] sm:$0xff]
    %v2607 = vld [vmem:[#allocation16 + $0x20] sm:$0xff]
    %v2608 = vld [vmem:[#allocation16 + $0x28] sm:$0xff]
    %v2609 = vld [vmem:[#allocation16 + $0x30] sm:$0xff]
    %v2610 = vld [vmem:[#allocation16 + $0x38] sm:$0xff]
    %v2611 = vld [vmem:[#allocation16 + $0x40] sm:$0xff]
    %v2612 = vld [vmem:[#allocation16 + $0x48] sm:$0xff]
    %v2613 = vld [vmem:[#allocation16 + $0x50] sm:$0xff]
    %v2614 = vld [vmem:[#allocation16 + $0x58] sm:$0xff]
    %v2615 = vld [vmem:[#allocation16 + $0x60] sm:$0xff]
    %v2616 = vld [vmem:[#allocation16 + $0x68] sm:$0xff]
    %v2617 = vld [vmem:[#allocation16 + $0x70] sm:$0xff]
    %v2618 = vld [vmem:[#allocation16 + $0x78] sm:$0xff]
    %v2619 = vld [vmem:[#allocation16 + $0x80] sm:$0xff]
    %v2620 = vld [vmem:[#allocation16 + $0x88] sm:$0xff]
    %v2621 = vld [vmem:[#allocation16 + $0x90] sm:$0xff]
    %v2622 = vld [vmem:[#allocation16 + $0x98] sm:$0xff]
    %v2623 = vld [vmem:[#allocation16 + $0xa0] sm:$0xff]
    %v2624 = vld [vmem:[#allocation16 + $0xa8] sm:$0xff]
    %v2625 = vld [vmem:[#allocation16 + $0xb0] sm:$0xff]
    %v2626 = vld [vmem:[#allocation16 + $0xb8] sm:$0xff]
    %v2627 = vld [vmem:[#allocation16 + $0xc0] sm:$0xff]
    %v2628 = vld [vmem:[#allocation16 + $0xc8] sm:$0xff]
    %v2629 = vld [vmem:[#allocation16 + $0xd0] sm:$0xff]
    %v2630 = vld [vmem:[#allocation16 + $0xd8] sm:$0xff]
    %v2631 = vld [vmem:[#allocation16 + $0xe0] sm:$0xff]
    %v2632 = vld [vmem:[#allocation16 + $0xe8] sm:$0xff]
    %v2633 = vld [vmem:[#allocation16 + $0xf0] sm:$0xff]
    %v2634 = vld [vmem:[#allocation16 + $0xf8] sm:$0xff]
    %v2635 = vld [vmem:[#allocation16 + $0x100] sm:$0xff]
    %v2636 = vld [vmem:[#allocation16 + $0x108] sm:$0xff]
    %v2637 = vld [vmem:[#allocation16 + $0x110] sm:$0xff]
    %v2638 = vld [vmem:[#allocation16 + $0x118] sm:$0xff]
    %v2639 = vld [vmem:[#allocation16 + $0x120] sm:$0xff]
    %v2640 = vld [vmem:[#allocation16 + $0x128] sm:$0xff]
    %v2641 = vld [vmem:[#allocation16 + $0x130] sm:$0xff]
    %v2642 = vld [vmem:[#allocation16 + $0x138] sm:$0xff]
    %v2643 = vld [vmem:[#allocation16 + $0x140] sm:$0xff]
    %v2644 = vld [vmem:[#allocation16 + $0x148] sm:$0xff]
    %v2645 = vld [vmem:[#allocation16 + $0x150] sm:$0xff]
    %v2646 = vld [vmem:[#allocation16 + $0x158] sm:$0xff]
    %v2647 = vld [vmem:[#allocation16 + $0x160] sm:$0xff]
    %v2648 = vld [vmem:[#allocation16 + $0x168] sm:$0xff]
    %v2649 = vld [vmem:[#allocation16 + $0x170] sm:$0xff]
    %v2650 = vld [vmem:[#allocation16 + $0x178] sm:$0xff]
    %v2651 = vld [vmem:[#allocation16 + $0x180] sm:$0xff]
    %v2652 = vld [vmem:[#allocation16 + $0x188] sm:$0xff]
    %v2653 = vld [vmem:[#allocation16 + $0x190] sm:$0xff]
    %v2654 = vld [vmem:[#allocation16 + $0x198] sm:$0xff]
    %v2655 = vld [vmem:[#allocation16 + $0x1a0] sm:$0xff]
    %v2656 = vld [vmem:[#allocation16 + $0x1a8] sm:$0xff]
    %v2657 = vld [vmem:[#allocation16 + $0x1b0] sm:$0xff]
    %v2658 = vld [vmem:[#allocation16 + $0x1b8] sm:$0xff]
    %v2659 = vld [vmem:[#allocation16 + $0x1c0] sm:$0xff]
    %v2660 = vld [vmem:[#allocation16 + $0x1c8] sm:$0xff]
    %v2661 = vld [vmem:[#allocation16 + $0x1d0] sm:$0xff]
    %v2662 = vld [vmem:[#allocation16 + $0x1d8] sm:$0xff]
    %v2663 = vld [vmem:[#allocation16 + $0x1e0] sm:$0xff]
    %v2664 = vld [vmem:[#allocation16 + $0x1e8] sm:$0xff]
    %v2665 = vld [vmem:[#allocation16 + $0x1f0] sm:$0xff]
    %v2666 = vld [vmem:[#allocation16 + $0x1f8] sm:$0xff]
    %v2667 = vld [vmem:[#allocation16 + $0x200] sm:$0xff]
    %v2668 = vld [vmem:[#allocation16 + $0x208] sm:$0xff]
    %v2669 = vld [vmem:[#allocation16 + $0x210] sm:$0xff]
    %v2670 = vld [vmem:[#allocation16 + $0x218] sm:$0xff]
    %v2671 = vld [vmem:[#allocation16 + $0x220] sm:$0xff]
    %v2672 = vld [vmem:[#allocation16 + $0x228] sm:$0xff]
    %v2673 = vld [vmem:[#allocation16 + $0x230] sm:$0xff]
    %v2674 = vld [vmem:[#allocation16 + $0x238] sm:$0xff]
    %v2675 = vld [vmem:[#allocation16 + $0x240] sm:$0xff]
    %v2676 = vld [vmem:[#allocation16 + $0x248] sm:$0xff]
    %v2677 = vld [vmem:[#allocation16 + $0x250] sm:$0xff]
    %v2678 = vld [vmem:[#allocation16 + $0x258] sm:$0xff]
    %v2679 = vld [vmem:[#allocation16 + $0x260] sm:$0xff]
    %v2680 = vld [vmem:[#allocation16 + $0x268] sm:$0xff]
    %v2681 = vld [vmem:[#allocation16 + $0x270] sm:$0xff]
    %v2682 = vld [vmem:[#allocation16 + $0x278] sm:$0xff]
    %v2683 = vld [vmem:[#allocation16 + $0x280] sm:$0xff]
    %v2684 = vld [vmem:[#allocation16 + $0x288] sm:$0xff]
    %v2685 = vld [vmem:[#allocation16 + $0x290] sm:$0xff]
    %v2686 = vld [vmem:[#allocation16 + $0x298] sm:$0xff]
    %v2687 = vld [vmem:[#allocation16 + $0x2a0] sm:$0xff]
    %v2688 = vld [vmem:[#allocation16 + $0x2a8] sm:$0xff]
    %v2689 = vld [vmem:[#allocation16 + $0x2b0] sm:$0xff]
    %v2690 = vld [vmem:[#allocation16 + $0x2b8] sm:$0xff]
    %v2691 = vld [vmem:[#allocation16 + $0x2c0] sm:$0xff]
    %v2692 = vld [vmem:[#allocation16 + $0x2c8] sm:$0xff]
    %v2693 = vld [vmem:[#allocation16 + $0x2d0] sm:$0xff]
    %v2694 = vld [vmem:[#allocation16 + $0x2d8] sm:$0xff]
    %v2695 = vld [vmem:[#allocation16 + $0x2e0] sm:$0xff]
    %v2696 = vld [vmem:[#allocation16 + $0x2e8] sm:$0xff]
    %v2697 = vld [vmem:[#allocation16 + $0x2f0] sm:$0xff]
    %v2698 = vld [vmem:[#allocation16 + $0x2f8] sm:$0xff]
    %v2699 = vld [vmem:[#allocation16 + $0x300] sm:$0xff]
    %v2700 = vld [vmem:[#allocation16 + $0x308] sm:$0xff]
    %v2701 = vld [vmem:[#allocation16 + $0x310] sm:$0xff]
    %v2702 = vld [vmem:[#allocation16 + $0x318] sm:$0xff]
    %v2703 = vld [vmem:[#allocation16 + $0x320] sm:$0xff]
    %v2704 = vld [vmem:[#allocation16 + $0x328] sm:$0xff]
    %v2705 = vld [vmem:[#allocation16 + $0x330] sm:$0xff]
    %v2706 = vld [vmem:[#allocation16 + $0x338] sm:$0xff]
    %v2707 = vld [vmem:[#allocation16 + $0x340] sm:$0xff]
    %v2708 = vld [vmem:[#allocation16 + $0x348] sm:$0xff]
    %v2709 = vld [vmem:[#allocation16 + $0x350] sm:$0xff]
    %v2710 = vld [vmem:[#allocation16 + $0x358] sm:$0xff]
    %v2711 = vld [vmem:[#allocation16 + $0x360] sm:$0xff]
    %v2712 = vld [vmem:[#allocation16 + $0x368] sm:$0xff]
    %v2713 = vld [vmem:[#allocation16 + $0x370] sm:$0xff]
    %v2714 = vld [vmem:[#allocation16 + $0x378] sm:$0xff]
    %v2715 = vld [vmem:[#allocation16 + $0x380] sm:$0xff]
    %v2716 = vld [vmem:[#allocation16 + $0x388] sm:$0xff]
    %v2717 = vld [vmem:[#allocation16 + $0x390] sm:$0xff]
    %v2718 = vld [vmem:[#allocation16 + $0x398] sm:$0xff]
    %v2719 = vld [vmem:[#allocation16 + $0x3a0] sm:$0xff]
    %v2720 = vld [vmem:[#allocation16 + $0x3a8] sm:$0xff]
    %v2721 = vld [vmem:[#allocation16 + $0x3b0] sm:$0xff]
    %v2722 = vld [vmem:[#allocation16 + $0x3b8] sm:$0xff]
    %v2723 = vld [vmem:[#allocation16 + $0x3c0] sm:$0xff]
    %v2724 = vld [vmem:[#allocation16 + $0x3c8] sm:$0xff]
    %v2725 = vld [vmem:[#allocation16 + $0x3d0] sm:$0xff]
    %v2726 = vld [vmem:[#allocation16 + $0x3d8] sm:$0xff]
    %v2727 = vld [vmem:[#allocation16 + $0x3e0] sm:$0xff]
    %v2728 = vld [vmem:[#allocation16 + $0x3e8] sm:$0xff]
    %v2729 = vld [vmem:[#allocation16 + $0x3f0] sm:$0xff]
    %v2730 = vld [vmem:[#allocation16 + $0x3f8] sm:$0xff]
    %v2731 = vld [vmem:[%s12] sm:$0xf]
    %v2733 = vlaneseq
    %v2734 = vshrl.u32 %v2733, 7
    %v2735 = vsub.s32 0, %v2734
    %v2736 = vrot.slane %v2731, %v2735
    %v2737 = vlaneseq
    %v2738 = vshrl.u32 %v2737, 7
    %v2739 = vsub.s32 1, %v2738
    %v2740 = vrot.slane %v2731, %v2739
    %v2741 = vlaneseq
    %v2742 = vshrl.u32 %v2741, 7
    %v2743 = vsub.s32 2, %v2742
    %v2744 = vrot.slane %v2731, %v2743
    %v2745 = vlaneseq
    %v2746 = vshrl.u32 %v2745, 7
    %v2747 = vsub.s32 3, %v2746
    %v2748 = vrot.slane %v2731, %v2747
    %2753 = vmatprep.subr.mxu0 %v2664
    %2754 = vmatpush1.msra.mxu0 %v2663
    %2755 = vmatprep.subr.mxu0 %v2660
    %2756 = vmatpush1.msra.mxu0 %v2659
    %2757 = vmatprep.subr.mxu0 %v2656
    %2758 = vmatpush1.msra.mxu0 %v2655
    %2759 = vmatprep.subr.mxu0 %v2652
    %2760 = vmatpush1.msra.mxu0 %v2651
    %2761 = vmatprep.subr.mxu0 %v2648
    %2762 = vmatpush1.msra.mxu0 %v2647
    %2763 = vmatprep.subr.mxu0 %v2644
    %2764 = vmatpush1.msra.mxu0 %v2643
    %2765 = vmatprep.subr.mxu0 %v2640
    %2766 = vmatpush1.msra.mxu0 %v2639
    %2767 = vmatprep.subr.mxu0 %v2636
    %2768 = vmatpush1.msra.mxu0 %v2635
    %2769 = vmatprep.subr.mxu0 %v2632
    %2770 = vmatpush1.msra.mxu0 %v2631
    %2771 = vmatprep.subr.mxu0 %v2628
    %2772 = vmatpush1.msra.mxu0 %v2627
    %2773 = vmatprep.subr.mxu0 %v2624
    %2774 = vmatpush1.msra.mxu0 %v2623
    %2775 = vmatprep.subr.mxu0 %v2620
    %2776 = vmatpush1.msra.mxu0 %v2619
    %2777 = vmatprep.subr.mxu0 %v2616
    %2778 = vmatpush1.msra.mxu0 %v2615
    %2779 = vmatprep.subr.mxu0 %v2612
    %2780 = vmatpush1.msra.mxu0 %v2611
    %2781 = vmatprep.subr.mxu0 %v2608
    %2782 = vmatpush1.msra.mxu0 %v2607
    %2783 = vmatprep.subr.mxu0 %v2604
    %2784 = vmatpush1.msra.mxu0 %v2603
    %2785 = vmatprep.subr.mxu0 %v2728
    %2786 = vmatpush2.msra.mxu0 %v2727
    %2787 = vmatprep.subr.mxu0 %v2724
    %2788 = vmatpush2.msra.mxu0 %v2723
    %2789 = vmatprep.subr.mxu0 %v2720
    %2790 = vmatpush2.msra.mxu0 %v2719
    %2791 = vmatprep.subr.mxu0 %v2716
    %2792 = vmatpush2.msra.mxu0 %v2715
    %2793 = vmatprep.subr.mxu0 %v2712
    %2794 = vmatpush2.msra.mxu0 %v2711
    %2795 = vmatprep.subr.mxu0 %v2708
    %2796 = vmatpush2.msra.mxu0 %v2707
    %2797 = vmatprep.subr.mxu0 %v2704
    %2798 = vmatpush2.msra.mxu0 %v2703
    %2799 = vmatprep.subr.mxu0 %v2700
    %2800 = vmatpush2.msra.mxu0 %v2699
    %2801 = vmatprep.subr.mxu0 %v2696
    %2802 = vmatpush2.msra.mxu0 %v2695
    %2803 = vmatprep.subr.mxu0 %v2692
    %2804 = vmatpush2.msra.mxu0 %v2691
    %2805 = vmatprep.subr.mxu0 %v2688
    %2806 = vmatpush2.msra.mxu0 %v2687
    %2807 = vmatprep.subr.mxu0 %v2684
    %2808 = vmatpush2.msra.mxu0 %v2683
    %2809 = vmatprep.subr.mxu0 %v2680
    %2810 = vmatpush2.msra.mxu0 %v2679
    %2811 = vmatprep.subr.mxu0 %v2676
    %2812 = vmatpush2.msra.mxu0 %v2675
    %2813 = vmatprep.subr.mxu0 %v2672
    %2814 = vmatpush2.msra.mxu0 %v2671
    %2815 = vmatprep.subr.mxu0 %v2668
    %2816 = vmatpush2.msra.mxu0 %v2667
    %2817 = vmatprep.mubr.f32.mxu0 %v2600
    %2818 = vmatmul.mubr.f32.gmra.mxu0 %v2599
    %v2819 = vpop.f32.mrf.mxu0
    %v2820 = vadd.f32 %v2736, %v2819
    %v2821 = vpop.f32.mrf.mxu0
    %v2822 = vadd.f32 %v2740, %v2821
    %2823 = vmatprep.mubr.f32.mxu0 %v2602
    %2824 = vmatmul.mubr.f32.gmra.mxu0 %v2601
    %v2825 = vpop.f32.mrf.mxu0
    %v2826 = vadd.f32 %v2736, %v2825
    %v2827 = vpop.f32.mrf.mxu0
    %v2828 = vadd.f32 %v2740, %v2827
    %2829 = vdwg.mxu0
    %2830 = vmatprep.subr.mxu0 %v2666
    %2831 = vmatpush1.msra.mxu0 %v2665
    %2832 = vmatprep.subr.mxu0 %v2662
    %2833 = vmatpush1.msra.mxu0 %v2661
    %2834 = vmatprep.subr.mxu0 %v2658
    %2835 = vmatpush1.msra.mxu0 %v2657
    %2836 = vmatprep.subr.mxu0 %v2654
    %2837 = vmatpush1.msra.mxu0 %v2653
    %2838 = vmatprep.subr.mxu0 %v2650
    %2839 = vmatpush1.msra.mxu0 %v2649
    %2840 = vmatprep.subr.mxu0 %v2646
    %2841 = vmatpush1.msra.mxu0 %v2645
    %2842 = vmatprep.subr.mxu0 %v2642
    %2843 = vmatpush1.msra.mxu0 %v2641
    %2844 = vmatprep.subr.mxu0 %v2638
    %2845 = vmatpush1.msra.mxu0 %v2637
    %2846 = vmatprep.subr.mxu0 %v2634
    %2847 = vmatpush1.msra.mxu0 %v2633
    %2848 = vmatprep.subr.mxu0 %v2630
    %2849 = vmatpush1.msra.mxu0 %v2629
    %2850 = vmatprep.subr.mxu0 %v2626
    %2851 = vmatpush1.msra.mxu0 %v2625
    %2852 = vmatprep.subr.mxu0 %v2622
    %2853 = vmatpush1.msra.mxu0 %v2621
    %2854 = vmatprep.subr.mxu0 %v2618
    %2855 = vmatpush1.msra.mxu0 %v2617
    %2856 = vmatprep.subr.mxu0 %v2614
    %2857 = vmatpush1.msra.mxu0 %v2613
    %2858 = vmatprep.subr.mxu0 %v2610
    %2859 = vmatpush1.msra.mxu0 %v2609
    %2860 = vmatprep.subr.mxu0 %v2606
    %2861 = vmatpush1.msra.mxu0 %v2605
    %2862 = vmatprep.subr.mxu0 %v2730
    %2863 = vmatpush2.msra.mxu0 %v2729
    %2864 = vmatprep.subr.mxu0 %v2726
    %2865 = vmatpush2.msra.mxu0 %v2725
    %2866 = vmatprep.subr.mxu0 %v2722
    %2867 = vmatpush2.msra.mxu0 %v2721
    %2868 = vmatprep.subr.mxu0 %v2718
    %2869 = vmatpush2.msra.mxu0 %v2717
    %2870 = vmatprep.subr.mxu0 %v2714
    %2871 = vmatpush2.msra.mxu0 %v2713
    %2872 = vmatprep.subr.mxu0 %v2710
    %2873 = vmatpush2.msra.mxu0 %v2709
    %2874 = vmatprep.subr.mxu0 %v2706
    %2875 = vmatpush2.msra.mxu0 %v2705
    %2876 = vmatprep.subr.mxu0 %v2702
    %2877 = vmatpush2.msra.mxu0 %v2701
    %2878 = vmatprep.subr.mxu0 %v2698
    %2879 = vmatpush2.msra.mxu0 %v2697
    %2880 = vmatprep.subr.mxu0 %v2694
    %2881 = vmatpush2.msra.mxu0 %v2693
    %2882 = vmatprep.subr.mxu0 %v2690
    %2883 = vmatpush2.msra.mxu0 %v2689
    %2884 = vmatprep.subr.mxu0 %v2686
    %2885 = vmatpush2.msra.mxu0 %v2685
    %2886 = vmatprep.subr.mxu0 %v2682
    %2887 = vmatpush2.msra.mxu0 %v2681
    %2888 = vmatprep.subr.mxu0 %v2678
    %2889 = vmatpush2.msra.mxu0 %v2677
    %2890 = vmatprep.subr.mxu0 %v2674
    %2891 = vmatpush2.msra.mxu0 %v2673
    %2892 = vmatprep.subr.mxu0 %v2670
    %2893 = vmatpush2.msra.mxu0 %v2669
    %2894 = vmatprep.mubr.f32.mxu0 %v2600
    %2895 = vmatmul.mubr.f32.gmra.mxu0 %v2599
    %v2896 = vpop.f32.mrf.mxu0
    %v2897 = vadd.f32 %v2744, %v2896
    %v2898 = vpop.f32.mrf.mxu0
    %v2899 = vadd.f32 %v2748, %v2898
    %2900 = vmatprep.mubr.f32.mxu0 %v2602
    %2901 = vmatmul.mubr.f32.gmra.mxu0 %v2601
    %v2902 = vpop.f32.mrf.mxu0
    %v2903 = vadd.f32 %v2744, %v2902
    %v2904 = vpop.f32.mrf.mxu0
    %v2905 = vadd.f32 %v2748, %v2904
    %2906 = vdwg.mxu0
    %v2907 = vld [vmem:[#allocation10] sm:$0xff]
    %v2908 = vld [vmem:[#allocation10 + $0x8] sm:$0xff]
    %v2910 = vsel %vm794, %v540, 0
    %v2913 = vsel %vm794, %v546, 0
    %v2916 = vsel %vm794, %v2820, 0
    %v2919 = vsel %vm794, %v2826, 0
    %2921 = vmatprep.subr.mxu0 0.0
    %2922 = vmatpush1.xpose.msra.mxu0 0.0
    %2923 = vmatprep.subr.mxu0 0.0
    %2924 = vmatpush1.xpose.msra.mxu0 0.0
    %2925 = vmatprep.subr.mxu0 0.0
    %2926 = vmatpush1.xpose.msra.mxu0 0.0
    %2927 = vmatprep.subr.mxu0 0.0
    %2928 = vmatpush1.xpose.msra.mxu0 0.0
    %2929 = vmatprep.subr.mxu0 0.0
    %2930 = vmatpush1.xpose.msra.mxu0 0.0
    %2931 = vmatprep.subr.mxu0 0.0
    %2932 = vmatpush1.xpose.msra.mxu0 0.0
    %2933 = vmatprep.subr.mxu0 0.0
    %2934 = vmatpush1.xpose.msra.mxu0 0.0
    %2935 = vmatprep.subr.mxu0 0.0
    %2936 = vmatpush1.xpose.msra.mxu0 0.0
    %2937 = vmatprep.subr.mxu0 0.0
    %2938 = vmatpush1.xpose.msra.mxu0 0.0
    %2939 = vmatprep.subr.mxu0 0.0
    %2940 = vmatpush1.xpose.msra.mxu0 0.0
    %2941 = vmatprep.subr.mxu0 0.0
    %2942 = vmatpush1.xpose.msra.mxu0 0.0
    %2943 = vmatprep.subr.mxu0 0.0
    %2944 = vmatpush1.xpose.msra.mxu0 0.0
    %2945 = vmatprep.subr.mxu0 0.0
    %2946 = vmatpush1.xpose.msra.mxu0 0.0
    %2947 = vmatprep.subr.mxu0 0.0
    %2948 = vmatpush1.xpose.msra.mxu0 0.0
    %2949 = vmatprep.subr.mxu0 0.0
    %2950 = vmatpush1.xpose.msra.mxu0 %v2919
    %2951 = vmatprep.subr.mxu0 0.0
    %2952 = vmatpush1.xpose.msra.mxu0 %v2916
    %2953 = vmatprep.subr.mxu0 0.0
    %2954 = vmatpush2.xpose.msra.mxu0 0.0
    %2955 = vmatprep.subr.mxu0 0.0
    %2956 = vmatpush2.xpose.msra.mxu0 0.0
    %2957 = vmatprep.subr.mxu0 0.0
    %2958 = vmatpush2.xpose.msra.mxu0 0.0
    %2959 = vmatprep.subr.mxu0 0.0
    %2960 = vmatpush2.xpose.msra.mxu0 0.0
    %2961 = vmatprep.subr.mxu0 0.0
    %2962 = vmatpush2.xpose.msra.mxu0 0.0
    %2963 = vmatprep.subr.mxu0 0.0
    %2964 = vmatpush2.xpose.msra.mxu0 0.0
    %2965 = vmatprep.subr.mxu0 0.0
    %2966 = vmatpush2.xpose.msra.mxu0 0.0
    %2967 = vmatprep.subr.mxu0 0.0
    %2968 = vmatpush2.xpose.msra.mxu0 0.0
    %2969 = vmatprep.subr.mxu0 0.0
    %2970 = vmatpush2.xpose.msra.mxu0 0.0
    %2971 = vmatprep.subr.mxu0 0.0
    %2972 = vmatpush2.xpose.msra.mxu0 0.0
    %2973 = vmatprep.subr.mxu0 0.0
    %2974 = vmatpush2.xpose.msra.mxu0 0.0
    %2975 = vmatprep.subr.mxu0 0.0
    %2976 = vmatpush2.xpose.msra.mxu0 0.0
    %2977 = vmatprep.subr.mxu0 0.0
    %2978 = vmatpush2.xpose.msra.mxu0 0.0
    %2979 = vmatprep.subr.mxu0 0.0
    %2980 = vmatpush2.xpose.msra.mxu0 0.0
    %2981 = vmatprep.subr.mxu0 0.0
    %2982 = vmatpush2.xpose.msra.mxu0 0.0
    %2983 = vmatprep.subr.mxu0 0.0
    %2984 = vmatpush2.xpose.msra.mxu0 0.0
    %2985 = vmatprep.mubr.f32.mxu0 0.0
    %2986 = vmatmul.mubr.f32.gmra.mxu0 %v2910
    %v2987 = vpop.f32.mrf.mxu0
    %v2988 = vadd.f32 %v2907, %v2987
    %v2989 = vpop.f32.mrf.mxu0
    %2990 = vmatprep.mubr.f32.mxu0 0.0
    %2991 = vmatmul.mubr.f32.gmra.mxu0 %v2913
    %v2992 = vpop.f32.mrf.mxu0
    %v2993 = vadd.f32 %v2908, %v2992
    %v2994 = vpop.f32.mrf.mxu0
    %2995 = vdwg.mxu0
    %v2996 = vsel %vm882, %v2988, -inf
    %2997 = vmax.xlane.f32.xlu0 %v2996
    %v2998 = vpop.xlane.xlu0 %2997
    %v2999 = vsel %vm882, %v2993, -inf
    %3000 = vmax.xlane.f32.xlu0 %v2999
    %v3001 = vpop.xlane.xlu0 %3000
    %v3002 = vsub.f32 %v2988, %v2998
    %v3003 = vsub.f32 %v2993, %v3001
    %v3004 = vmul.f32 %v3002, 1.442695
    %v3005 = vpow.pop %v3004
    %v3006 = vmul.f32 %v3003, 1.442695
    %v3007 = vpow.pop %v3006
    %v3008 = vsel %vm882, %v3005, 0.0
    %3009 = vadd.xlane.f32.xlu0 %v3008
    %v3010 = vpop.xlane.xlu0 %3009
    %v3011 = vsel %vm882, %v3007, 0.0
    %3012 = vadd.xlane.f32.xlu0 %v3011
    %v3013 = vpop.xlane.xlu0 %3012
    %v3014 = vrcp.pop %v3010
    %v3015 = vmul.f32 %v3005, %v3014
    %v3016 = vrcp.pop %v3013
    %v3017 = vmul.f32 %v3007, %v3016
    %v3019 = vsel %vm882, %v3015, 0
    %v3022 = vsel %vm882, %v3017, 0
    %3024 = vmatprep.subr.mxu0 0.0
    %3025 = vmatpush1.msra.mxu0 0.0
    %3026 = vmatprep.subr.mxu0 0.0
    %3027 = vmatpush1.msra.mxu0 0.0
    %3028 = vmatprep.subr.mxu0 0.0
    %3029 = vmatpush1.msra.mxu0 0.0
    %3030 = vmatprep.subr.mxu0 0.0
    %3031 = vmatpush1.msra.mxu0 0.0
    %3032 = vmatprep.subr.mxu0 0.0
    %3033 = vmatpush1.msra.mxu0 0.0
    %3034 = vmatprep.subr.mxu0 0.0
    %3035 = vmatpush1.msra.mxu0 0.0
    %3036 = vmatprep.subr.mxu0 0.0
    %3037 = vmatpush1.msra.mxu0 0.0
    %3038 = vmatprep.subr.mxu0 0.0
    %3039 = vmatpush1.msra.mxu0 0.0
    %3040 = vmatprep.subr.mxu0 0.0
    %3041 = vmatpush1.msra.mxu0 0.0
    %3042 = vmatprep.subr.mxu0 0.0
    %3043 = vmatpush1.msra.mxu0 0.0
    %3044 = vmatprep.subr.mxu0 0.0
    %3045 = vmatpush1.msra.mxu0 0.0
    %3046 = vmatprep.subr.mxu0 0.0
    %3047 = vmatpush1.msra.mxu0 0.0
    %3048 = vmatprep.subr.mxu0 0.0
    %3049 = vmatpush1.msra.mxu0 0.0
    %3050 = vmatprep.subr.mxu0 0.0
    %3051 = vmatpush1.msra.mxu0 0.0
    %3052 = vmatprep.subr.mxu0 0.0
    %3053 = vmatpush1.msra.mxu0 %v2903
    %3054 = vmatprep.subr.mxu0 0.0
    %3055 = vmatpush1.msra.mxu0 %v2897
    %3056 = vmatprep.subr.mxu0 0.0
    %3057 = vmatpush2.msra.mxu0 0.0
    %3058 = vmatprep.subr.mxu0 0.0
    %3059 = vmatpush2.msra.mxu0 0.0
    %3060 = vmatprep.subr.mxu0 0.0
    %3061 = vmatpush2.msra.mxu0 0.0
    %3062 = vmatprep.subr.mxu0 0.0
    %3063 = vmatpush2.msra.mxu0 0.0
    %3064 = vmatprep.subr.mxu0 0.0
    %3065 = vmatpush2.msra.mxu0 0.0
    %3066 = vmatprep.subr.mxu0 0.0
    %3067 = vmatpush2.msra.mxu0 0.0
    %3068 = vmatprep.subr.mxu0 0.0
    %3069 = vmatpush2.msra.mxu0 0.0
    %3070 = vmatprep.subr.mxu0 0.0
    %3071 = vmatpush2.msra.mxu0 0.0
    %3072 = vmatprep.subr.mxu0 0.0
    %3073 = vmatpush2.msra.mxu0 0.0
    %3074 = vmatprep.subr.mxu0 0.0
    %3075 = vmatpush2.msra.mxu0 0.0
    %3076 = vmatprep.subr.mxu0 0.0
    %3077 = vmatpush2.msra.mxu0 0.0
    %3078 = vmatprep.subr.mxu0 0.0
    %3079 = vmatpush2.msra.mxu0 0.0
    %3080 = vmatprep.subr.mxu0 0.0
    %3081 = vmatpush2.msra.mxu0 0.0
    %3082 = vmatprep.subr.mxu0 0.0
    %3083 = vmatpush2.msra.mxu0 0.0
    %3084 = vmatprep.subr.mxu0 0.0
    %3085 = vmatpush2.msra.mxu0 0.0
    %3086 = vmatprep.subr.mxu0 0.0
    %3087 = vmatpush2.msra.mxu0 0.0
    %3088 = vmatprep.mubr.f32.mxu0 0.0
    %3089 = vmatmul.mubr.f32.gmra.mxu0 %v3019
    %v3090 = vpop.f32.mrf.mxu0
    %v3091 = vadd.f32 0.0, %v3090
    %v3092 = vpop.f32.mrf.mxu0
    %3093 = vmatprep.mubr.f32.mxu0 0.0
    %3094 = vmatmul.mubr.f32.gmra.mxu0 %v3022
    %v3095 = vpop.f32.mrf.mxu0
    %v3096 = vadd.f32 0.0, %v3095
    %v3097 = vpop.f32.mrf.mxu0
    %3098 = vdwg.mxu0
    %3099 = vrot.lane.b32.xlu0 %v540, 96
    %v3100 = vpop.permute.xlu0 %3099
    %3101 = vrot.lane.b32.xlu0 %v546, 96
    %v3102 = vpop.permute.xlu0 %3101
    %3103 = vrot.lane.b32.xlu0 %v2820, 96
    %v3104 = vpop.permute.xlu0 %3103
    %3105 = vrot.lane.b32.xlu0 %v2826, 96
    %v3106 = vpop.permute.xlu0 %3105
    %v3107 = vsel %vm794, %v3100, 0
    %v3109 = vsel %vm794, %v3102, 0
    %v3111 = vsel %vm794, %v3104, 0
    %v3113 = vsel %vm794, %v3106, 0
    %3115 = vmatprep.subr.mxu0 0.0
    %3116 = vmatpush1.xpose.msra.mxu0 0.0
    %3117 = vmatprep.subr.mxu0 0.0
    %3118 = vmatpush1.xpose.msra.mxu0 0.0
    %3119 = vmatprep.subr.mxu0 0.0
    %3120 = vmatpush1.xpose.msra.mxu0 0.0
    %3121 = vmatprep.subr.mxu0 0.0
    %3122 = vmatpush1.xpose.msra.mxu0 0.0
    %3123 = vmatprep.subr.mxu0 0.0
    %3124 = vmatpush1.xpose.msra.mxu0 0.0
    %3125 = vmatprep.subr.mxu0 0.0
    %3126 = vmatpush1.xpose.msra.mxu0 0.0
    %3127 = vmatprep.subr.mxu0 0.0
    %3128 = vmatpush1.xpose.msra.mxu0 0.0
    %3129 = vmatprep.subr.mxu0 0.0
    %3130 = vmatpush1.xpose.msra.mxu0 0.0
    %3131 = vmatprep.subr.mxu0 0.0
    %3132 = vmatpush1.xpose.msra.mxu0 0.0
    %3133 = vmatprep.subr.mxu0 0.0
    %3134 = vmatpush1.xpose.msra.mxu0 0.0
    %3135 = vmatprep.subr.mxu0 0.0
    %3136 = vmatpush1.xpose.msra.mxu0 0.0
    %3137 = vmatprep.subr.mxu0 0.0
    %3138 = vmatpush1.xpose.msra.mxu0 0.0
    %3139 = vmatprep.subr.mxu0 0.0
    %3140 = vmatpush1.xpose.msra.mxu0 0.0
    %3141 = vmatprep.subr.mxu0 0.0
    %3142 = vmatpush1.xpose.msra.mxu0 0.0
    %3143 = vmatprep.subr.mxu0 0.0
    %3144 = vmatpush1.xpose.msra.mxu0 %v3113
    %3145 = vmatprep.subr.mxu0 0.0
    %3146 = vmatpush1.xpose.msra.mxu0 %v3111
    %3147 = vmatprep.subr.mxu0 0.0
    %3148 = vmatpush2.xpose.msra.mxu0 0.0
    %3149 = vmatprep.subr.mxu0 0.0
    %3150 = vmatpush2.xpose.msra.mxu0 0.0
    %3151 = vmatprep.subr.mxu0 0.0
    %3152 = vmatpush2.xpose.msra.mxu0 0.0
    %3153 = vmatprep.subr.mxu0 0.0
    %3154 = vmatpush2.xpose.msra.mxu0 0.0
    %3155 = vmatprep.subr.mxu0 0.0
    %3156 = vmatpush2.xpose.msra.mxu0 0.0
    %3157 = vmatprep.subr.mxu0 0.0
    %3158 = vmatpush2.xpose.msra.mxu0 0.0
    %3159 = vmatprep.subr.mxu0 0.0
    %3160 = vmatpush2.xpose.msra.mxu0 0.0
    %3161 = vmatprep.subr.mxu0 0.0
    %3162 = vmatpush2.xpose.msra.mxu0 0.0
    %3163 = vmatprep.subr.mxu0 0.0
    %3164 = vmatpush2.xpose.msra.mxu0 0.0
    %3165 = vmatprep.subr.mxu0 0.0
    %3166 = vmatpush2.xpose.msra.mxu0 0.0
    %3167 = vmatprep.subr.mxu0 0.0
    %3168 = vmatpush2.xpose.msra.mxu0 0.0
    %3169 = vmatprep.subr.mxu0 0.0
    %3170 = vmatpush2.xpose.msra.mxu0 0.0
    %3171 = vmatprep.subr.mxu0 0.0
    %3172 = vmatpush2.xpose.msra.mxu0 0.0
    %3173 = vmatprep.subr.mxu0 0.0
    %3174 = vmatpush2.xpose.msra.mxu0 0.0
    %3175 = vmatprep.subr.mxu0 0.0
    %3176 = vmatpush2.xpose.msra.mxu0 0.0
    %3177 = vmatprep.subr.mxu0 0.0
    %3178 = vmatpush2.xpose.msra.mxu0 0.0
    %3179 = vmatprep.mubr.f32.mxu0 0.0
    %3180 = vmatmul.mubr.f32.gmra.mxu0 %v3107
    %v3181 = vpop.f32.mrf.mxu0
    %v3182 = vadd.f32 %v2907, %v3181
    %v3183 = vpop.f32.mrf.mxu0
    %3184 = vmatprep.mubr.f32.mxu0 0.0
    %3185 = vmatmul.mubr.f32.gmra.mxu0 %v3109
    %v3186 = vpop.f32.mrf.mxu0
    %v3187 = vadd.f32 %v2908, %v3186
    %v3188 = vpop.f32.mrf.mxu0
    %3189 = vdwg.mxu0
    %v3190 = vsel %vm882, %v3182, -inf
    %3191 = vmax.xlane.f32.xlu0 %v3190
    %v3192 = vpop.xlane.xlu0 %3191
    %v3193 = vsel %vm882, %v3187, -inf
    %3194 = vmax.xlane.f32.xlu0 %v3193
    %v3195 = vpop.xlane.xlu0 %3194
    %v3196 = vsub.f32 %v3182, %v3192
    %v3197 = vsub.f32 %v3187, %v3195
    %v3198 = vmul.f32 %v3196, 1.442695
    %v3199 = vpow.pop %v3198
    %v3200 = vmul.f32 %v3197, 1.442695
    %v3201 = vpow.pop %v3200
    %v3202 = vsel %vm882, %v3199, 0.0
    %3203 = vadd.xlane.f32.xlu0 %v3202
    %v3204 = vpop.xlane.xlu0 %3203
    %v3205 = vsel %vm882, %v3201, 0.0
    %3206 = vadd.xlane.f32.xlu0 %v3205
    %v3207 = vpop.xlane.xlu0 %3206
    %v3208 = vrcp.pop %v3204
    %v3209 = vmul.f32 %v3199, %v3208
    %v3210 = vrcp.pop %v3207
    %v3211 = vmul.f32 %v3201, %v3210
    %3214 = vrot.lane.b32.xlu0 %v2897, 96
    %v3215 = vpop.permute.xlu0 %3214
    %3216 = vrot.lane.b32.xlu0 %v2903, 96
    %v3217 = vpop.permute.xlu0 %3216
    %v3221 = vsel %vm882, %v3209, 0
    %v3224 = vsel %vm882, %v3211, 0
    %3226 = vmatprep.subr.mxu0 0.0
    %3227 = vmatpush1.msra.mxu0 0.0
    %3228 = vmatprep.subr.mxu0 0.0
    %3229 = vmatpush1.msra.mxu0 0.0
    %3230 = vmatprep.subr.mxu0 0.0
    %3231 = vmatpush1.msra.mxu0 0.0
    %3232 = vmatprep.subr.mxu0 0.0
    %3233 = vmatpush1.msra.mxu0 0.0
    %3234 = vmatprep.subr.mxu0 0.0
    %3235 = vmatpush1.msra.mxu0 0.0
    %3236 = vmatprep.subr.mxu0 0.0
    %3237 = vmatpush1.msra.mxu0 0.0
    %3238 = vmatprep.subr.mxu0 0.0
    %3239 = vmatpush1.msra.mxu0 0.0
    %3240 = vmatprep.subr.mxu0 0.0
    %3241 = vmatpush1.msra.mxu0 0.0
    %3242 = vmatprep.subr.mxu0 0.0
    %3243 = vmatpush1.msra.mxu0 0.0
    %3244 = vmatprep.subr.mxu0 0.0
    %3245 = vmatpush1.msra.mxu0 0.0
    %3246 = vmatprep.subr.mxu0 0.0
    %3247 = vmatpush1.msra.mxu0 0.0
    %3248 = vmatprep.subr.mxu0 0.0
    %3249 = vmatpush1.msra.mxu0 0.0
    %3250 = vmatprep.subr.mxu0 0.0
    %3251 = vmatpush1.msra.mxu0 0.0
    %3252 = vmatprep.subr.mxu0 0.0
    %3253 = vmatpush1.msra.mxu0 0.0
    %3254 = vmatprep.subr.mxu0 0.0
    %3255 = vmatpush1.msra.mxu0 %v3217
    %3256 = vmatprep.subr.mxu0 0.0
    %3257 = vmatpush1.msra.mxu0 %v3215
    %3258 = vmatprep.subr.mxu0 0.0
    %3259 = vmatpush2.msra.mxu0 0.0
    %3260 = vmatprep.subr.mxu0 0.0
    %3261 = vmatpush2.msra.mxu0 0.0
    %3262 = vmatprep.subr.mxu0 0.0
    %3263 = vmatpush2.msra.mxu0 0.0
    %3264 = vmatprep.subr.mxu0 0.0
    %3265 = vmatpush2.msra.mxu0 0.0
    %3266 = vmatprep.subr.mxu0 0.0
    %3267 = vmatpush2.msra.mxu0 0.0
    %3268 = vmatprep.subr.mxu0 0.0
    %3269 = vmatpush2.msra.mxu0 0.0
    %3270 = vmatprep.subr.mxu0 0.0
    %3271 = vmatpush2.msra.mxu0 0.0
    %3272 = vmatprep.subr.mxu0 0.0
    %3273 = vmatpush2.msra.mxu0 0.0
    %3274 = vmatprep.subr.mxu0 0.0
    %3275 = vmatpush2.msra.mxu0 0.0
    %3276 = vmatprep.subr.mxu0 0.0
    %3277 = vmatpush2.msra.mxu0 0.0
    %3278 = vmatprep.subr.mxu0 0.0
    %3279 = vmatpush2.msra.mxu0 0.0
    %3280 = vmatprep.subr.mxu0 0.0
    %3281 = vmatpush2.msra.mxu0 0.0
    %3282 = vmatprep.subr.mxu0 0.0
    %3283 = vmatpush2.msra.mxu0 0.0
    %3284 = vmatprep.subr.mxu0 0.0
    %3285 = vmatpush2.msra.mxu0 0.0
    %3286 = vmatprep.subr.mxu0 0.0
    %3287 = vmatpush2.msra.mxu0 0.0
    %3288 = vmatprep.subr.mxu0 0.0
    %3289 = vmatpush2.msra.mxu0 0.0
    %3290 = vmatprep.mubr.f32.mxu0 0.0
    %3291 = vmatmul.mubr.f32.gmra.mxu0 %v3221
    %v3292 = vpop.f32.mrf.mxu0
    %v3293 = vadd.f32 0.0, %v3292
    %v3294 = vpop.f32.mrf.mxu0
    %3295 = vmatprep.mubr.f32.mxu0 0.0
    %3296 = vmatmul.mubr.f32.gmra.mxu0 %v3224
    %v3297 = vpop.f32.mrf.mxu0
    %v3298 = vadd.f32 0.0, %v3297
    %v3299 = vpop.f32.mrf.mxu0
    %3300 = vdwg.mxu0
    %3301 = vrot.lane.b32.xlu0 %v540, 64
    %v3302 = vpop.permute.xlu0 %3301
    %3303 = vrot.lane.b32.xlu0 %v546, 64
    %v3304 = vpop.permute.xlu0 %3303
    %3305 = vrot.lane.b32.xlu0 %v2820, 64
    %v3306 = vpop.permute.xlu0 %3305
    %3307 = vrot.lane.b32.xlu0 %v2826, 64
    %v3308 = vpop.permute.xlu0 %3307
    %v3309 = vsel %vm794, %v3302, 0
    %v3311 = vsel %vm794, %v3304, 0
    %v3313 = vsel %vm794, %v3306, 0
    %v3315 = vsel %vm794, %v3308, 0
    %3317 = vmatprep.subr.mxu0 0.0
    %3318 = vmatpush1.xpose.msra.mxu0 0.0
    %3319 = vmatprep.subr.mxu0 0.0
    %3320 = vmatpush1.xpose.msra.mxu0 0.0
    %3321 = vmatprep.subr.mxu0 0.0
    %3322 = vmatpush1.xpose.msra.mxu0 0.0
    %3323 = vmatprep.subr.mxu0 0.0
    %3324 = vmatpush1.xpose.msra.mxu0 0.0
    %3325 = vmatprep.subr.mxu0 0.0
    %3326 = vmatpush1.xpose.msra.mxu0 0.0
    %3327 = vmatprep.subr.mxu0 0.0
    %3328 = vmatpush1.xpose.msra.mxu0 0.0
    %3329 = vmatprep.subr.mxu0 0.0
    %3330 = vmatpush1.xpose.msra.mxu0 0.0
    %3331 = vmatprep.subr.mxu0 0.0
    %3332 = vmatpush1.xpose.msra.mxu0 0.0
    %3333 = vmatprep.subr.mxu0 0.0
    %3334 = vmatpush1.xpose.msra.mxu0 0.0
    %3335 = vmatprep.subr.mxu0 0.0
    %3336 = vmatpush1.xpose.msra.mxu0 0.0
    %3337 = vmatprep.subr.mxu0 0.0
    %3338 = vmatpush1.xpose.msra.mxu0 0.0
    %3339 = vmatprep.subr.mxu0 0.0
    %3340 = vmatpush1.xpose.msra.mxu0 0.0
    %3341 = vmatprep.subr.mxu0 0.0
    %3342 = vmatpush1.xpose.msra.mxu0 0.0
    %3343 = vmatprep.subr.mxu0 0.0
    %3344 = vmatpush1.xpose.msra.mxu0 0.0
    %3345 = vmatprep.subr.mxu0 0.0
    %3346 = vmatpush1.xpose.msra.mxu0 %v3315
    %3347 = vmatprep.subr.mxu0 0.0
    %3348 = vmatpush1.xpose.msra.mxu0 %v3313
    %3349 = vmatprep.subr.mxu0 0.0
    %3350 = vmatpush2.xpose.msra.mxu0 0.0
    %3351 = vmatprep.subr.mxu0 0.0
    %3352 = vmatpush2.xpose.msra.mxu0 0.0
    %3353 = vmatprep.subr.mxu0 0.0
    %3354 = vmatpush2.xpose.msra.mxu0 0.0
    %3355 = vmatprep.subr.mxu0 0.0
    %3356 = vmatpush2.xpose.msra.mxu0 0.0
    %3357 = vmatprep.subr.mxu0 0.0
    %3358 = vmatpush2.xpose.msra.mxu0 0.0
    %3359 = vmatprep.subr.mxu0 0.0
    %3360 = vmatpush2.xpose.msra.mxu0 0.0
    %3361 = vmatprep.subr.mxu0 0.0
    %3362 = vmatpush2.xpose.msra.mxu0 0.0
    %3363 = vmatprep.subr.mxu0 0.0
    %3364 = vmatpush2.xpose.msra.mxu0 0.0
    %3365 = vmatprep.subr.mxu0 0.0
    %3366 = vmatpush2.xpose.msra.mxu0 0.0
    %3367 = vmatprep.subr.mxu0 0.0
    %3368 = vmatpush2.xpose.msra.mxu0 0.0
    %3369 = vmatprep.subr.mxu0 0.0
    %3370 = vmatpush2.xpose.msra.mxu0 0.0
    %3371 = vmatprep.subr.mxu0 0.0
    %3372 = vmatpush2.xpose.msra.mxu0 0.0
    %3373 = vmatprep.subr.mxu0 0.0
    %3374 = vmatpush2.xpose.msra.mxu0 0.0
    %3375 = vmatprep.subr.mxu0 0.0
    %3376 = vmatpush2.xpose.msra.mxu0 0.0
    %3377 = vmatprep.subr.mxu0 0.0
    %3378 = vmatpush2.xpose.msra.mxu0 0.0
    %3379 = vmatprep.subr.mxu0 0.0
    %3380 = vmatpush2.xpose.msra.mxu0 0.0
    %3381 = vmatprep.mubr.f32.mxu0 0.0
    %3382 = vmatmul.mubr.f32.gmra.mxu0 %v3309
    %v3383 = vpop.f32.mrf.mxu0
    %v3384 = vadd.f32 %v2907, %v3383
    %v3385 = vpop.f32.mrf.mxu0
    %3386 = vmatprep.mubr.f32.mxu0 0.0
    %3387 = vmatmul.mubr.f32.gmra.mxu0 %v3311
    %v3388 = vpop.f32.mrf.mxu0
    %v3389 = vadd.f32 %v2908, %v3388
    %v3390 = vpop.f32.mrf.mxu0
    %3391 = vdwg.mxu0
    %v3392 = vsel %vm882, %v3384, -inf
    %3393 = vmax.xlane.f32.xlu0 %v3392
    %v3394 = vpop.xlane.xlu0 %3393
    %v3395 = vsel %vm882, %v3389, -inf
    %3396 = vmax.xlane.f32.xlu0 %v3395
    %v3397 = vpop.xlane.xlu0 %3396
    %v3398 = vsub.f32 %v3384, %v3394
    %v3399 = vsub.f32 %v3389, %v3397
    %v3400 = vmul.f32 %v3398, 1.442695
    %v3401 = vpow.pop %v3400
    %v3402 = vmul.f32 %v3399, 1.442695
    %v3403 = vpow.pop %v3402
    %v3404 = vsel %vm882, %v3401, 0.0
    %3405 = vadd.xlane.f32.xlu0 %v3404
    %v3406 = vpop.xlane.xlu0 %3405
    %v3407 = vsel %vm882, %v3403, 0.0
    %3408 = vadd.xlane.f32.xlu0 %v3407
    %v3409 = vpop.xlane.xlu0 %3408
    %v3410 = vrcp.pop %v3406
    %v3411 = vmul.f32 %v3401, %v3410
    %v3412 = vrcp.pop %v3409
    %v3413 = vmul.f32 %v3403, %v3412
    %3414 = vrot.lane.b32.xlu0 %v2897, 64
    %v3415 = vpop.permute.xlu0 %3414
    %3416 = vrot.lane.b32.xlu0 %v2903, 64
    %v3417 = vpop.permute.xlu0 %3416
    %v3421 = vsel %vm882, %v3411, 0
    %v3424 = vsel %vm882, %v3413, 0
    %3426 = vmatprep.subr.mxu0 0.0
    %3427 = vmatpush1.msra.mxu0 0.0
    %3428 = vmatprep.subr.mxu0 0.0
    %3429 = vmatpush1.msra.mxu0 0.0
    %3430 = vmatprep.subr.mxu0 0.0
    %3431 = vmatpush1.msra.mxu0 0.0
    %3432 = vmatprep.subr.mxu0 0.0
    %3433 = vmatpush1.msra.mxu0 0.0
    %3434 = vmatprep.subr.mxu0 0.0
    %3435 = vmatpush1.msra.mxu0 0.0
    %3436 = vmatprep.subr.mxu0 0.0
    %3437 = vmatpush1.msra.mxu0 0.0
    %3438 = vmatprep.subr.mxu0 0.0
    %3439 = vmatpush1.msra.mxu0 0.0
    %3440 = vmatprep.subr.mxu0 0.0
    %3441 = vmatpush1.msra.mxu0 0.0
    %3442 = vmatprep.subr.mxu0 0.0
    %3443 = vmatpush1.msra.mxu0 0.0
    %3444 = vmatprep.subr.mxu0 0.0
    %3445 = vmatpush1.msra.mxu0 0.0
    %3446 = vmatprep.subr.mxu0 0.0
    %3447 = vmatpush1.msra.mxu0 0.0
    %3448 = vmatprep.subr.mxu0 0.0
    %3449 = vmatpush1.msra.mxu0 0.0
    %3450 = vmatprep.subr.mxu0 0.0
    %3451 = vmatpush1.msra.mxu0 0.0
    %3452 = vmatprep.subr.mxu0 0.0
    %3453 = vmatpush1.msra.mxu0 0.0
    %3454 = vmatprep.subr.mxu0 0.0
    %3455 = vmatpush1.msra.mxu0 %v3417
    %3456 = vmatprep.subr.mxu0 0.0
    %3457 = vmatpush1.msra.mxu0 %v3415
    %3458 = vmatprep.subr.mxu0 0.0
    %3459 = vmatpush2.msra.mxu0 0.0
    %3460 = vmatprep.subr.mxu0 0.0
    %3461 = vmatpush2.msra.mxu0 0.0
    %3462 = vmatprep.subr.mxu0 0.0
    %3463 = vmatpush2.msra.mxu0 0.0
    %3464 = vmatprep.subr.mxu0 0.0
    %3465 = vmatpush2.msra.mxu0 0.0
    %3466 = vmatprep.subr.mxu0 0.0
    %3467 = vmatpush2.msra.mxu0 0.0
    %3468 = vmatprep.subr.mxu0 0.0
    %3469 = vmatpush2.msra.mxu0 0.0
    %3470 = vmatprep.subr.mxu0 0.0
    %3471 = vmatpush2.msra.mxu0 0.0
    %3472 = vmatprep.subr.mxu0 0.0
    %3473 = vmatpush2.msra.mxu0 0.0
    %3474 = vmatprep.subr.mxu0 0.0
    %3475 = vmatpush2.msra.mxu0 0.0
    %3476 = vmatprep.subr.mxu0 0.0
    %3477 = vmatpush2.msra.mxu0 0.0
    %3478 = vmatprep.subr.mxu0 0.0
    %3479 = vmatpush2.msra.mxu0 0.0
    %3480 = vmatprep.subr.mxu0 0.0
    %3481 = vmatpush2.msra.mxu0 0.0
    %3482 = vmatprep.subr.mxu0 0.0
    %3483 = vmatpush2.msra.mxu0 0.0
    %3484 = vmatprep.subr.mxu0 0.0
    %3485 = vmatpush2.msra.mxu0 0.0
    %3486 = vmatprep.subr.mxu0 0.0
    %3487 = vmatpush2.msra.mxu0 0.0
    %3488 = vmatprep.subr.mxu0 0.0
    %3489 = vmatpush2.msra.mxu0 0.0
    %3490 = vmatprep.mubr.f32.mxu0 0.0
    %3491 = vmatmul.mubr.f32.gmra.mxu0 %v3421
    %v3492 = vpop.f32.mrf.mxu0
    %v3493 = vadd.f32 0.0, %v3492
    %v3494 = vpop.f32.mrf.mxu0
    %3495 = vmatprep.mubr.f32.mxu0 0.0
    %3496 = vmatmul.mubr.f32.gmra.mxu0 %v3424
    %v3497 = vpop.f32.mrf.mxu0
    %v3498 = vadd.f32 0.0, %v3497
    %v3499 = vpop.f32.mrf.mxu0
    %3500 = vdwg.mxu0
    %3501 = vrot.lane.b32.xlu0 %v540, 32
    %v3502 = vpop.permute.xlu0 %3501
    %3503 = vrot.lane.b32.xlu0 %v546, 32
    %v3504 = vpop.permute.xlu0 %3503
    %3505 = vrot.lane.b32.xlu0 %v2820, 32
    %v3506 = vpop.permute.xlu0 %3505
    %3507 = vrot.lane.b32.xlu0 %v2826, 32
    %v3508 = vpop.permute.xlu0 %3507
    %v3509 = vsel %vm794, %v3502, 0
    %v3511 = vsel %vm794, %v3504, 0
    %v3513 = vsel %vm794, %v3506, 0
    %v3515 = vsel %vm794, %v3508, 0
    %3517 = vmatprep.subr.mxu0 0.0
    %3518 = vmatpush1.xpose.msra.mxu0 0.0
    %3519 = vmatprep.subr.mxu0 0.0
    %3520 = vmatpush1.xpose.msra.mxu0 0.0
    %3521 = vmatprep.subr.mxu0 0.0
    %3522 = vmatpush1.xpose.msra.mxu0 0.0
    %3523 = vmatprep.subr.mxu0 0.0
    %3524 = vmatpush1.xpose.msra.mxu0 0.0
    %3525 = vmatprep.subr.mxu0 0.0
    %3526 = vmatpush1.xpose.msra.mxu0 0.0
    %3527 = vmatprep.subr.mxu0 0.0
    %3528 = vmatpush1.xpose.msra.mxu0 0.0
    %3529 = vmatprep.subr.mxu0 0.0
    %3530 = vmatpush1.xpose.msra.mxu0 0.0
    %3531 = vmatprep.subr.mxu0 0.0
    %3532 = vmatpush1.xpose.msra.mxu0 0.0
    %3533 = vmatprep.subr.mxu0 0.0
    %3534 = vmatpush1.xpose.msra.mxu0 0.0
    %3535 = vmatprep.subr.mxu0 0.0
    %3536 = vmatpush1.xpose.msra.mxu0 0.0
    %3537 = vmatprep.subr.mxu0 0.0
    %3538 = vmatpush1.xpose.msra.mxu0 0.0
    %3539 = vmatprep.subr.mxu0 0.0
    %3540 = vmatpush1.xpose.msra.mxu0 0.0
    %3541 = vmatprep.subr.mxu0 0.0
    %3542 = vmatpush1.xpose.msra.mxu0 0.0
    %3543 = vmatprep.subr.mxu0 0.0
    %3544 = vmatpush1.xpose.msra.mxu0 0.0
    %3545 = vmatprep.subr.mxu0 0.0
    %3546 = vmatpush1.xpose.msra.mxu0 %v3515
    %3547 = vmatprep.subr.mxu0 0.0
    %3548 = vmatpush1.xpose.msra.mxu0 %v3513
    %3549 = vmatprep.subr.mxu0 0.0
    %3550 = vmatpush2.xpose.msra.mxu0 0.0
    %3551 = vmatprep.subr.mxu0 0.0
    %3552 = vmatpush2.xpose.msra.mxu0 0.0
    %3553 = vmatprep.subr.mxu0 0.0
    %3554 = vmatpush2.xpose.msra.mxu0 0.0
    %3555 = vmatprep.subr.mxu0 0.0
    %3556 = vmatpush2.xpose.msra.mxu0 0.0
    %3557 = vmatprep.subr.mxu0 0.0
    %3558 = vmatpush2.xpose.msra.mxu0 0.0
    %3559 = vmatprep.subr.mxu0 0.0
    %3560 = vmatpush2.xpose.msra.mxu0 0.0
    %3561 = vmatprep.subr.mxu0 0.0
    %3562 = vmatpush2.xpose.msra.mxu0 0.0
    %3563 = vmatprep.subr.mxu0 0.0
    %3564 = vmatpush2.xpose.msra.mxu0 0.0
    %3565 = vmatprep.subr.mxu0 0.0
    %3566 = vmatpush2.xpose.msra.mxu0 0.0
    %3567 = vmatprep.subr.mxu0 0.0
    %3568 = vmatpush2.xpose.msra.mxu0 0.0
    %3569 = vmatprep.subr.mxu0 0.0
    %3570 = vmatpush2.xpose.msra.mxu0 0.0
    %3571 = vmatprep.subr.mxu0 0.0
    %3572 = vmatpush2.xpose.msra.mxu0 0.0
    %3573 = vmatprep.subr.mxu0 0.0
    %3574 = vmatpush2.xpose.msra.mxu0 0.0
    %3575 = vmatprep.subr.mxu0 0.0
    %3576 = vmatpush2.xpose.msra.mxu0 0.0
    %3577 = vmatprep.subr.mxu0 0.0
    %3578 = vmatpush2.xpose.msra.mxu0 0.0
    %3579 = vmatprep.subr.mxu0 0.0
    %3580 = vmatpush2.xpose.msra.mxu0 0.0
    %3581 = vmatprep.mubr.f32.mxu0 0.0
    %3582 = vmatmul.mubr.f32.gmra.mxu0 %v3509
    %v3583 = vpop.f32.mrf.mxu0
    %v3584 = vadd.f32 %v2907, %v3583
    %v3585 = vpop.f32.mrf.mxu0
    %3586 = vmatprep.mubr.f32.mxu0 0.0
    %3587 = vmatmul.mubr.f32.gmra.mxu0 %v3511
    %v3588 = vpop.f32.mrf.mxu0
    %v3589 = vadd.f32 %v2908, %v3588
    %v3590 = vpop.f32.mrf.mxu0
    %3591 = vdwg.mxu0
    %v3592 = vsel %vm882, %v3584, -inf
    %3593 = vmax.xlane.f32.xlu0 %v3592
    %v3594 = vpop.xlane.xlu0 %3593
    %v3595 = vsel %vm882, %v3589, -inf
    %3596 = vmax.xlane.f32.xlu0 %v3595
    %v3597 = vpop.xlane.xlu0 %3596
    %v3598 = vsub.f32 %v3584, %v3594
    %v3599 = vsub.f32 %v3589, %v3597
    %v3600 = vmul.f32 %v3598, 1.442695
    %v3601 = vpow.pop %v3600
    %v3602 = vmul.f32 %v3599, 1.442695
    %v3603 = vpow.pop %v3602
    %v3604 = vsel %vm882, %v3601, 0.0
    %3605 = vadd.xlane.f32.xlu0 %v3604
    %v3606 = vpop.xlane.xlu0 %3605
    %v3607 = vsel %vm882, %v3603, 0.0
    %3608 = vadd.xlane.f32.xlu0 %v3607
    %v3609 = vpop.xlane.xlu0 %3608
    %v3610 = vrcp.pop %v3606
    %v3611 = vmul.f32 %v3601, %v3610
    %v3612 = vrcp.pop %v3609
    %v3613 = vmul.f32 %v3603, %v3612
    %3614 = vrot.lane.b32.xlu0 %v2897, 32
    %v3615 = vpop.permute.xlu0 %3614
    %3616 = vrot.lane.b32.xlu0 %v2903, 32
    %v3617 = vpop.permute.xlu0 %3616
    %v3621 = vsel %vm882, %v3611, 0
    %v3624 = vsel %vm882, %v3613, 0
    %3626 = vmatprep.subr.mxu0 0.0
    %3627 = vmatpush1.msra.mxu0 0.0
    %3628 = vmatprep.subr.mxu0 0.0
    %3629 = vmatpush1.msra.mxu0 0.0
    %3630 = vmatprep.subr.mxu0 0.0
    %3631 = vmatpush1.msra.mxu0 0.0
    %3632 = vmatprep.subr.mxu0 0.0
    %3633 = vmatpush1.msra.mxu0 0.0
    %3634 = vmatprep.subr.mxu0 0.0
    %3635 = vmatpush1.msra.mxu0 0.0
    %3636 = vmatprep.subr.mxu0 0.0
    %3637 = vmatpush1.msra.mxu0 0.0
    %3638 = vmatprep.subr.mxu0 0.0
    %3639 = vmatpush1.msra.mxu0 0.0
    %3640 = vmatprep.subr.mxu0 0.0
    %3641 = vmatpush1.msra.mxu0 0.0
    %3642 = vmatprep.subr.mxu0 0.0
    %3643 = vmatpush1.msra.mxu0 0.0
    %3644 = vmatprep.subr.mxu0 0.0
    %3645 = vmatpush1.msra.mxu0 0.0
    %3646 = vmatprep.subr.mxu0 0.0
    %3647 = vmatpush1.msra.mxu0 0.0
    %3648 = vmatprep.subr.mxu0 0.0
    %3649 = vmatpush1.msra.mxu0 0.0
    %3650 = vmatprep.subr.mxu0 0.0
    %3651 = vmatpush1.msra.mxu0 0.0
    %3652 = vmatprep.subr.mxu0 0.0
    %3653 = vmatpush1.msra.mxu0 0.0
    %3654 = vmatprep.subr.mxu0 0.0
    %3655 = vmatpush1.msra.mxu0 %v3617
    %3656 = vmatprep.subr.mxu0 0.0
    %3657 = vmatpush1.msra.mxu0 %v3615
    %3658 = vmatprep.subr.mxu0 0.0
    %3659 = vmatpush2.msra.mxu0 0.0
    %3660 = vmatprep.subr.mxu0 0.0
    %3661 = vmatpush2.msra.mxu0 0.0
    %3662 = vmatprep.subr.mxu0 0.0
    %3663 = vmatpush2.msra.mxu0 0.0
    %3664 = vmatprep.subr.mxu0 0.0
    %3665 = vmatpush2.msra.mxu0 0.0
    %3666 = vmatprep.subr.mxu0 0.0
    %3667 = vmatpush2.msra.mxu0 0.0
    %3668 = vmatprep.subr.mxu0 0.0
    %3669 = vmatpush2.msra.mxu0 0.0
    %3670 = vmatprep.subr.mxu0 0.0
    %3671 = vmatpush2.msra.mxu0 0.0
    %3672 = vmatprep.subr.mxu0 0.0
    %3673 = vmatpush2.msra.mxu0 0.0
    %3674 = vmatprep.subr.mxu0 0.0
    %3675 = vmatpush2.msra.mxu0 0.0
    %3676 = vmatprep.subr.mxu0 0.0
    %3677 = vmatpush2.msra.mxu0 0.0
    %3678 = vmatprep.subr.mxu0 0.0
    %3679 = vmatpush2.msra.mxu0 0.0
    %3680 = vmatprep.subr.mxu0 0.0
    %3681 = vmatpush2.msra.mxu0 0.0
    %3682 = vmatprep.subr.mxu0 0.0
    %3683 = vmatpush2.msra.mxu0 0.0
    %3684 = vmatprep.subr.mxu0 0.0
    %3685 = vmatpush2.msra.mxu0 0.0
    %3686 = vmatprep.subr.mxu0 0.0
    %3687 = vmatpush2.msra.mxu0 0.0
    %3688 = vmatprep.subr.mxu0 0.0
    %3689 = vmatpush2.msra.mxu0 0.0
    %3690 = vmatprep.mubr.f32.mxu0 0.0
    %3691 = vmatmul.mubr.f32.gmra.mxu0 %v3621
    %v3692 = vpop.f32.mrf.mxu0
    %v3693 = vadd.f32 0.0, %v3692
    %v3694 = vpop.f32.mrf.mxu0
    %3695 = vmatprep.mubr.f32.mxu0 0.0
    %3696 = vmatmul.mubr.f32.gmra.mxu0 %v3624
    %v3697 = vpop.f32.mrf.mxu0
    %v3698 = vadd.f32 0.0, %v3697
    %v3699 = vpop.f32.mrf.mxu0
    %3700 = vdwg.mxu0
    %v3702 = vsel %vm794, %v542, 0
    %v3705 = vsel %vm794, %v548, 0
    %v3708 = vsel %vm794, %v2822, 0
    %v3711 = vsel %vm794, %v2828, 0
    %3713 = vmatprep.subr.mxu0 0.0
    %3714 = vmatpush1.xpose.msra.mxu0 0.0
    %3715 = vmatprep.subr.mxu0 0.0
    %3716 = vmatpush1.xpose.msra.mxu0 0.0
    %3717 = vmatprep.subr.mxu0 0.0
    %3718 = vmatpush1.xpose.msra.mxu0 0.0
    %3719 = vmatprep.subr.mxu0 0.0
    %3720 = vmatpush1.xpose.msra.mxu0 0.0
    %3721 = vmatprep.subr.mxu0 0.0
    %3722 = vmatpush1.xpose.msra.mxu0 0.0
    %3723 = vmatprep.subr.mxu0 0.0
    %3724 = vmatpush1.xpose.msra.mxu0 0.0
    %3725 = vmatprep.subr.mxu0 0.0
    %3726 = vmatpush1.xpose.msra.mxu0 0.0
    %3727 = vmatprep.subr.mxu0 0.0
    %3728 = vmatpush1.xpose.msra.mxu0 0.0
    %3729 = vmatprep.subr.mxu0 0.0
    %3730 = vmatpush1.xpose.msra.mxu0 0.0
    %3731 = vmatprep.subr.mxu0 0.0
    %3732 = vmatpush1.xpose.msra.mxu0 0.0
    %3733 = vmatprep.subr.mxu0 0.0
    %3734 = vmatpush1.xpose.msra.mxu0 0.0
    %3735 = vmatprep.subr.mxu0 0.0
    %3736 = vmatpush1.xpose.msra.mxu0 0.0
    %3737 = vmatprep.subr.mxu0 0.0
    %3738 = vmatpush1.xpose.msra.mxu0 0.0
    %3739 = vmatprep.subr.mxu0 0.0
    %3740 = vmatpush1.xpose.msra.mxu0 0.0
    %3741 = vmatprep.subr.mxu0 0.0
    %3742 = vmatpush1.xpose.msra.mxu0 %v3711
    %3743 = vmatprep.subr.mxu0 0.0
    %3744 = vmatpush1.xpose.msra.mxu0 %v3708
    %3745 = vmatprep.subr.mxu0 0.0
    %3746 = vmatpush2.xpose.msra.mxu0 0.0
    %3747 = vmatprep.subr.mxu0 0.0
    %3748 = vmatpush2.xpose.msra.mxu0 0.0
    %3749 = vmatprep.subr.mxu0 0.0
    %3750 = vmatpush2.xpose.msra.mxu0 0.0
    %3751 = vmatprep.subr.mxu0 0.0
    %3752 = vmatpush2.xpose.msra.mxu0 0.0
    %3753 = vmatprep.subr.mxu0 0.0
    %3754 = vmatpush2.xpose.msra.mxu0 0.0
    %3755 = vmatprep.subr.mxu0 0.0
    %3756 = vmatpush2.xpose.msra.mxu0 0.0
    %3757 = vmatprep.subr.mxu0 0.0
    %3758 = vmatpush2.xpose.msra.mxu0 0.0
    %3759 = vmatprep.subr.mxu0 0.0
    %3760 = vmatpush2.xpose.msra.mxu0 0.0
    %3761 = vmatprep.subr.mxu0 0.0
    %3762 = vmatpush2.xpose.msra.mxu0 0.0
    %3763 = vmatprep.subr.mxu0 0.0
    %3764 = vmatpush2.xpose.msra.mxu0 0.0
    %3765 = vmatprep.subr.mxu0 0.0
    %3766 = vmatpush2.xpose.msra.mxu0 0.0
    %3767 = vmatprep.subr.mxu0 0.0
    %3768 = vmatpush2.xpose.msra.mxu0 0.0
    %3769 = vmatprep.subr.mxu0 0.0
    %3770 = vmatpush2.xpose.msra.mxu0 0.0
    %3771 = vmatprep.subr.mxu0 0.0
    %3772 = vmatpush2.xpose.msra.mxu0 0.0
    %3773 = vmatprep.subr.mxu0 0.0
    %3774 = vmatpush2.xpose.msra.mxu0 0.0
    %3775 = vmatprep.subr.mxu0 0.0
    %3776 = vmatpush2.xpose.msra.mxu0 0.0
    %3777 = vmatprep.mubr.f32.mxu0 0.0
    %3778 = vmatmul.mubr.f32.gmra.mxu0 %v3702
    %v3779 = vpop.f32.mrf.mxu0
    %v3780 = vadd.f32 %v2907, %v3779
    %v3781 = vpop.f32.mrf.mxu0
    %3782 = vmatprep.mubr.f32.mxu0 0.0
    %3783 = vmatmul.mubr.f32.gmra.mxu0 %v3705
    %v3784 = vpop.f32.mrf.mxu0
    %v3785 = vadd.f32 %v2908, %v3784
    %v3786 = vpop.f32.mrf.mxu0
    %3787 = vdwg.mxu0
    %v3788 = vsel %vm882, %v3780, -inf
    %3789 = vmax.xlane.f32.xlu0 %v3788
    %v3790 = vpop.xlane.xlu0 %3789
    %v3791 = vsel %vm882, %v3785, -inf
    %3792 = vmax.xlane.f32.xlu0 %v3791
    %v3793 = vpop.xlane.xlu0 %3792
    %v3794 = vsub.f32 %v3780, %v3790
    %v3795 = vsub.f32 %v3785, %v3793
    %v3796 = vmul.f32 %v3794, 1.442695
    %v3797 = vpow.pop %v3796
    %v3798 = vmul.f32 %v3795, 1.442695
    %v3799 = vpow.pop %v3798
    %v3800 = vsel %vm882, %v3797, 0.0
    %3801 = vadd.xlane.f32.xlu0 %v3800
    %v3802 = vpop.xlane.xlu0 %3801
    %v3803 = vsel %vm882, %v3799, 0.0
    %3804 = vadd.xlane.f32.xlu0 %v3803
    %v3805 = vpop.xlane.xlu0 %3804
    %v3806 = vrcp.pop %v3802
    %v3807 = vmul.f32 %v3797, %v3806
    %v3808 = vrcp.pop %v3805
    %v3809 = vmul.f32 %v3799, %v3808
    %v3811 = vsel %vm882, %v3807, 0
    %v3814 = vsel %vm882, %v3809, 0
    %3816 = vmatprep.subr.mxu0 0.0
    %3817 = vmatpush1.msra.mxu0 0.0
    %3818 = vmatprep.subr.mxu0 0.0
    %3819 = vmatpush1.msra.mxu0 0.0
    %3820 = vmatprep.subr.mxu0 0.0
    %3821 = vmatpush1.msra.mxu0 0.0
    %3822 = vmatprep.subr.mxu0 0.0
    %3823 = vmatpush1.msra.mxu0 0.0
    %3824 = vmatprep.subr.mxu0 0.0
    %3825 = vmatpush1.msra.mxu0 0.0
    %3826 = vmatprep.subr.mxu0 0.0
    %3827 = vmatpush1.msra.mxu0 0.0
    %3828 = vmatprep.subr.mxu0 0.0
    %3829 = vmatpush1.msra.mxu0 0.0
    %3830 = vmatprep.subr.mxu0 0.0
    %3831 = vmatpush1.msra.mxu0 0.0
    %3832 = vmatprep.subr.mxu0 0.0
    %3833 = vmatpush1.msra.mxu0 0.0
    %3834 = vmatprep.subr.mxu0 0.0
    %3835 = vmatpush1.msra.mxu0 0.0
    %3836 = vmatprep.subr.mxu0 0.0
    %3837 = vmatpush1.msra.mxu0 0.0
    %3838 = vmatprep.subr.mxu0 0.0
    %3839 = vmatpush1.msra.mxu0 0.0
    %3840 = vmatprep.subr.mxu0 0.0
    %3841 = vmatpush1.msra.mxu0 0.0
    %3842 = vmatprep.subr.mxu0 0.0
    %3843 = vmatpush1.msra.mxu0 0.0
    %3844 = vmatprep.subr.mxu0 0.0
    %3845 = vmatpush1.msra.mxu0 %v2905
    %3846 = vmatprep.subr.mxu0 0.0
    %3847 = vmatpush1.msra.mxu0 %v2899
    %3848 = vmatprep.subr.mxu0 0.0
    %3849 = vmatpush2.msra.mxu0 0.0
    %3850 = vmatprep.subr.mxu0 0.0
    %3851 = vmatpush2.msra.mxu0 0.0
    %3852 = vmatprep.subr.mxu0 0.0
    %3853 = vmatpush2.msra.mxu0 0.0
    %3854 = vmatprep.subr.mxu0 0.0
    %3855 = vmatpush2.msra.mxu0 0.0
    %3856 = vmatprep.subr.mxu0 0.0
    %3857 = vmatpush2.msra.mxu0 0.0
    %3858 = vmatprep.subr.mxu0 0.0
    %3859 = vmatpush2.msra.mxu0 0.0
    %3860 = vmatprep.subr.mxu0 0.0
    %3861 = vmatpush2.msra.mxu0 0.0
    %3862 = vmatprep.subr.mxu0 0.0
    %3863 = vmatpush2.msra.mxu0 0.0
    %3864 = vmatprep.subr.mxu0 0.0
    %3865 = vmatpush2.msra.mxu0 0.0
    %3866 = vmatprep.subr.mxu0 0.0
    %3867 = vmatpush2.msra.mxu0 0.0
    %3868 = vmatprep.subr.mxu0 0.0
    %3869 = vmatpush2.msra.mxu0 0.0
    %3870 = vmatprep.subr.mxu0 0.0
    %3871 = vmatpush2.msra.mxu0 0.0
    %3872 = vmatprep.subr.mxu0 0.0
    %3873 = vmatpush2.msra.mxu0 0.0
    %3874 = vmatprep.subr.mxu0 0.0
    %3875 = vmatpush2.msra.mxu0 0.0
    %3876 = vmatprep.subr.mxu0 0.0
    %3877 = vmatpush2.msra.mxu0 0.0
    %3878 = vmatprep.subr.mxu0 0.0
    %3879 = vmatpush2.msra.mxu0 0.0
    %3880 = vmatprep.mubr.f32.mxu0 0.0
    %3881 = vmatmul.mubr.f32.gmra.mxu0 %v3811
    %v3882 = vpop.f32.mrf.mxu0
    %v3883 = vadd.f32 0.0, %v3882
    %v3884 = vpop.f32.mrf.mxu0
    %3885 = vmatprep.mubr.f32.mxu0 0.0
    %3886 = vmatmul.mubr.f32.gmra.mxu0 %v3814
    %v3887 = vpop.f32.mrf.mxu0
    %v3888 = vadd.f32 0.0, %v3887
    %v3889 = vpop.f32.mrf.mxu0
    %3890 = vdwg.mxu0
    %3891 = vrot.lane.b32.xlu0 %v542, 96
    %v3892 = vpop.permute.xlu0 %3891
    %3893 = vrot.lane.b32.xlu0 %v548, 96
    %v3894 = vpop.permute.xlu0 %3893
    %3895 = vrot.lane.b32.xlu0 %v2822, 96
    %v3896 = vpop.permute.xlu0 %3895
    %3897 = vrot.lane.b32.xlu0 %v2828, 96
    %v3898 = vpop.permute.xlu0 %3897
    %v3899 = vsel %vm794, %v3892, 0
    %v3901 = vsel %vm794, %v3894, 0
    %v3903 = vsel %vm794, %v3896, 0
    %v3905 = vsel %vm794, %v3898, 0
    %3907 = vmatprep.subr.mxu0 0.0
    %3908 = vmatpush1.xpose.msra.mxu0 0.0
    %3909 = vmatprep.subr.mxu0 0.0
    %3910 = vmatpush1.xpose.msra.mxu0 0.0
    %3911 = vmatprep.subr.mxu0 0.0
    %3912 = vmatpush1.xpose.msra.mxu0 0.0
    %3913 = vmatprep.subr.mxu0 0.0
    %3914 = vmatpush1.xpose.msra.mxu0 0.0
    %3915 = vmatprep.subr.mxu0 0.0
    %3916 = vmatpush1.xpose.msra.mxu0 0.0
    %3917 = vmatprep.subr.mxu0 0.0
    %3918 = vmatpush1.xpose.msra.mxu0 0.0
    %3919 = vmatprep.subr.mxu0 0.0
    %3920 = vmatpush1.xpose.msra.mxu0 0.0
    %3921 = vmatprep.subr.mxu0 0.0
    %3922 = vmatpush1.xpose.msra.mxu0 0.0
    %3923 = vmatprep.subr.mxu0 0.0
    %3924 = vmatpush1.xpose.msra.mxu0 0.0
    %3925 = vmatprep.subr.mxu0 0.0
    %3926 = vmatpush1.xpose.msra.mxu0 0.0
    %3927 = vmatprep.subr.mxu0 0.0
    %3928 = vmatpush1.xpose.msra.mxu0 0.0
    %3929 = vmatprep.subr.mxu0 0.0
    %3930 = vmatpush1.xpose.msra.mxu0 0.0
    %3931 = vmatprep.subr.mxu0 0.0
    %3932 = vmatpush1.xpose.msra.mxu0 0.0
    %3933 = vmatprep.subr.mxu0 0.0
    %3934 = vmatpush1.xpose.msra.mxu0 0.0
    %3935 = vmatprep.subr.mxu0 0.0
    %3936 = vmatpush1.xpose.msra.mxu0 %v3905
    %3937 = vmatprep.subr.mxu0 0.0
    %3938 = vmatpush1.xpose.msra.mxu0 %v3903
    %3939 = vmatprep.subr.mxu0 0.0
    %3940 = vmatpush2.xpose.msra.mxu0 0.0
    %3941 = vmatprep.subr.mxu0 0.0
    %3942 = vmatpush2.xpose.msra.mxu0 0.0
    %3943 = vmatprep.subr.mxu0 0.0
    %3944 = vmatpush2.xpose.msra.mxu0 0.0
    %3945 = vmatprep.subr.mxu0 0.0
    %3946 = vmatpush2.xpose.msra.mxu0 0.0
    %3947 = vmatprep.subr.mxu0 0.0
    %3948 = vmatpush2.xpose.msra.mxu0 0.0
    %3949 = vmatprep.subr.mxu0 0.0
    %3950 = vmatpush2.xpose.msra.mxu0 0.0
    %3951 = vmatprep.subr.mxu0 0.0
    %3952 = vmatpush2.xpose.msra.mxu0 0.0
    %3953 = vmatprep.subr.mxu0 0.0
    %3954 = vmatpush2.xpose.msra.mxu0 0.0
    %3955 = vmatprep.subr.mxu0 0.0
    %3956 = vmatpush2.xpose.msra.mxu0 0.0
    %3957 = vmatprep.subr.mxu0 0.0
    %3958 = vmatpush2.xpose.msra.mxu0 0.0
    %3959 = vmatprep.subr.mxu0 0.0
    %3960 = vmatpush2.xpose.msra.mxu0 0.0
    %3961 = vmatprep.subr.mxu0 0.0
    %3962 = vmatpush2.xpose.msra.mxu0 0.0
    %3963 = vmatprep.subr.mxu0 0.0
    %3964 = vmatpush2.xpose.msra.mxu0 0.0
    %3965 = vmatprep.subr.mxu0 0.0
    %3966 = vmatpush2.xpose.msra.mxu0 0.0
    %3967 = vmatprep.subr.mxu0 0.0
    %3968 = vmatpush2.xpose.msra.mxu0 0.0
    %3969 = vmatprep.subr.mxu0 0.0
    %3970 = vmatpush2.xpose.msra.mxu0 0.0
    %3971 = vmatprep.mubr.f32.mxu0 0.0
    %3972 = vmatmul.mubr.f32.gmra.mxu0 %v3899
    %v3973 = vpop.f32.mrf.mxu0
    %v3974 = vadd.f32 %v2907, %v3973
    %v3975 = vpop.f32.mrf.mxu0
    %3976 = vmatprep.mubr.f32.mxu0 0.0
    %3977 = vmatmul.mubr.f32.gmra.mxu0 %v3901
    %v3978 = vpop.f32.mrf.mxu0
    %v3979 = vadd.f32 %v2908, %v3978
    %v3980 = vpop.f32.mrf.mxu0
    %3981 = vdwg.mxu0
    %v3982 = vsel %vm882, %v3974, -inf
    %3983 = vmax.xlane.f32.xlu0 %v3982
    %v3984 = vpop.xlane.xlu0 %3983
    %v3985 = vsel %vm882, %v3979, -inf
    %3986 = vmax.xlane.f32.xlu0 %v3985
    %v3987 = vpop.xlane.xlu0 %3986
    %v3988 = vsub.f32 %v3974, %v3984
    %v3989 = vsub.f32 %v3979, %v3987
    %v3990 = vmul.f32 %v3988, 1.442695
    %v3991 = vpow.pop %v3990
    %v3992 = vmul.f32 %v3989, 1.442695
    %v3993 = vpow.pop %v3992
    %v3994 = vsel %vm882, %v3991, 0.0
    %3995 = vadd.xlane.f32.xlu0 %v3994
    %v3996 = vpop.xlane.xlu0 %3995
    %v3997 = vsel %vm882, %v3993, 0.0
    %3998 = vadd.xlane.f32.xlu0 %v3997
    %v3999 = vpop.xlane.xlu0 %3998
    %v4000 = vrcp.pop %v3996
    %v4001 = vmul.f32 %v3991, %v4000
    %v4002 = vrcp.pop %v3999
    %v4003 = vmul.f32 %v3993, %v4002
    %4006 = vrot.lane.b32.xlu0 %v2899, 96
    %v4007 = vpop.permute.xlu0 %4006
    %4008 = vrot.lane.b32.xlu0 %v2905, 96
    %v4009 = vpop.permute.xlu0 %4008
    %v4013 = vsel %vm882, %v4001, 0
    %v4016 = vsel %vm882, %v4003, 0
    %4018 = vmatprep.subr.mxu0 0.0
    %4019 = vmatpush1.msra.mxu0 0.0
    %4020 = vmatprep.subr.mxu0 0.0
    %4021 = vmatpush1.msra.mxu0 0.0
    %4022 = vmatprep.subr.mxu0 0.0
    %4023 = vmatpush1.msra.mxu0 0.0
    %4024 = vmatprep.subr.mxu0 0.0
    %4025 = vmatpush1.msra.mxu0 0.0
    %4026 = vmatprep.subr.mxu0 0.0
    %4027 = vmatpush1.msra.mxu0 0.0
    %4028 = vmatprep.subr.mxu0 0.0
    %4029 = vmatpush1.msra.mxu0 0.0
    %4030 = vmatprep.subr.mxu0 0.0
    %4031 = vmatpush1.msra.mxu0 0.0
    %4032 = vmatprep.subr.mxu0 0.0
    %4033 = vmatpush1.msra.mxu0 0.0
    %4034 = vmatprep.subr.mxu0 0.0
    %4035 = vmatpush1.msra.mxu0 0.0
    %4036 = vmatprep.subr.mxu0 0.0
    %4037 = vmatpush1.msra.mxu0 0.0
    %4038 = vmatprep.subr.mxu0 0.0
    %4039 = vmatpush1.msra.mxu0 0.0
    %4040 = vmatprep.subr.mxu0 0.0
    %4041 = vmatpush1.msra.mxu0 0.0
    %4042 = vmatprep.subr.mxu0 0.0
    %4043 = vmatpush1.msra.mxu0 0.0
    %4044 = vmatprep.subr.mxu0 0.0
    %4045 = vmatpush1.msra.mxu0 0.0
    %4046 = vmatprep.subr.mxu0 0.0
    %4047 = vmatpush1.msra.mxu0 %v4009
    %4048 = vmatprep.subr.mxu0 0.0
    %4049 = vmatpush1.msra.mxu0 %v4007
    %4050 = vmatprep.subr.mxu0 0.0
    %4051 = vmatpush2.msra.mxu0 0.0
    %4052 = vmatprep.subr.mxu0 0.0
    %4053 = vmatpush2.msra.mxu0 0.0
    %4054 = vmatprep.subr.mxu0 0.0
    %4055 = vmatpush2.msra.mxu0 0.0
    %4056 = vmatprep.subr.mxu0 0.0
    %4057 = vmatpush2.msra.mxu0 0.0
    %4058 = vmatprep.subr.mxu0 0.0
    %4059 = vmatpush2.msra.mxu0 0.0
    %4060 = vmatprep.subr.mxu0 0.0
    %4061 = vmatpush2.msra.mxu0 0.0
    %4062 = vmatprep.subr.mxu0 0.0
    %4063 = vmatpush2.msra.mxu0 0.0
    %4064 = vmatprep.subr.mxu0 0.0
    %4065 = vmatpush2.msra.mxu0 0.0
    %4066 = vmatprep.subr.mxu0 0.0
    %4067 = vmatpush2.msra.mxu0 0.0
    %4068 = vmatprep.subr.mxu0 0.0
    %4069 = vmatpush2.msra.mxu0 0.0
    %4070 = vmatprep.subr.mxu0 0.0
    %4071 = vmatpush2.msra.mxu0 0.0
    %4072 = vmatprep.subr.mxu0 0.0
    %4073 = vmatpush2.msra.mxu0 0.0
    %4074 = vmatprep.subr.mxu0 0.0
    %4075 = vmatpush2.msra.mxu0 0.0
    %4076 = vmatprep.subr.mxu0 0.0
    %4077 = vmatpush2.msra.mxu0 0.0
    %4078 = vmatprep.subr.mxu0 0.0
    %4079 = vmatpush2.msra.mxu0 0.0
    %4080 = vmatprep.subr.mxu0 0.0
    %4081 = vmatpush2.msra.mxu0 0.0
    %4082 = vmatprep.mubr.f32.mxu0 0.0
    %4083 = vmatmul.mubr.f32.gmra.mxu0 %v4013
    %v4084 = vpop.f32.mrf.mxu0
    %v4085 = vadd.f32 0.0, %v4084
    %v4086 = vpop.f32.mrf.mxu0
    %4087 = vmatprep.mubr.f32.mxu0 0.0
    %4088 = vmatmul.mubr.f32.gmra.mxu0 %v4016
    %v4089 = vpop.f32.mrf.mxu0
    %v4090 = vadd.f32 0.0, %v4089
    %v4091 = vpop.f32.mrf.mxu0
    %4092 = vdwg.mxu0
    %4093 = vrot.lane.b32.xlu0 %v542, 64
    %v4094 = vpop.permute.xlu0 %4093
    %4095 = vrot.lane.b32.xlu0 %v548, 64
    %v4096 = vpop.permute.xlu0 %4095
    %4097 = vrot.lane.b32.xlu0 %v2822, 64
    %v4098 = vpop.permute.xlu0 %4097
    %4099 = vrot.lane.b32.xlu0 %v2828, 64
    %v4100 = vpop.permute.xlu0 %4099
    %v4101 = vsel %vm794, %v4094, 0
    %v4103 = vsel %vm794, %v4096, 0
    %v4105 = vsel %vm794, %v4098, 0
    %v4107 = vsel %vm794, %v4100, 0
    %4109 = vmatprep.subr.mxu0 0.0
    %4110 = vmatpush1.xpose.msra.mxu0 0.0
    %4111 = vmatprep.subr.mxu0 0.0
    %4112 = vmatpush1.xpose.msra.mxu0 0.0
    %4113 = vmatprep.subr.mxu0 0.0
    %4114 = vmatpush1.xpose.msra.mxu0 0.0
    %4115 = vmatprep.subr.mxu0 0.0
    %4116 = vmatpush1.xpose.msra.mxu0 0.0
    %4117 = vmatprep.subr.mxu0 0.0
    %4118 = vmatpush1.xpose.msra.mxu0 0.0
    %4119 = vmatprep.subr.mxu0 0.0
    %4120 = vmatpush1.xpose.msra.mxu0 0.0
    %4121 = vmatprep.subr.mxu0 0.0
    %4122 = vmatpush1.xpose.msra.mxu0 0.0
    %4123 = vmatprep.subr.mxu0 0.0
    %4124 = vmatpush1.xpose.msra.mxu0 0.0
    %4125 = vmatprep.subr.mxu0 0.0
    %4126 = vmatpush1.xpose.msra.mxu0 0.0
    %4127 = vmatprep.subr.mxu0 0.0
    %4128 = vmatpush1.xpose.msra.mxu0 0.0
    %4129 = vmatprep.subr.mxu0 0.0
    %4130 = vmatpush1.xpose.msra.mxu0 0.0
    %4131 = vmatprep.subr.mxu0 0.0
    %4132 = vmatpush1.xpose.msra.mxu0 0.0
    %4133 = vmatprep.subr.mxu0 0.0
    %4134 = vmatpush1.xpose.msra.mxu0 0.0
    %4135 = vmatprep.subr.mxu0 0.0
    %4136 = vmatpush1.xpose.msra.mxu0 0.0
    %4137 = vmatprep.subr.mxu0 0.0
    %4138 = vmatpush1.xpose.msra.mxu0 %v4107
    %4139 = vmatprep.subr.mxu0 0.0
    %4140 = vmatpush1.xpose.msra.mxu0 %v4105
    %4141 = vmatprep.subr.mxu0 0.0
    %4142 = vmatpush2.xpose.msra.mxu0 0.0
    %4143 = vmatprep.subr.mxu0 0.0
    %4144 = vmatpush2.xpose.msra.mxu0 0.0
    %4145 = vmatprep.subr.mxu0 0.0
    %4146 = vmatpush2.xpose.msra.mxu0 0.0
    %4147 = vmatprep.subr.mxu0 0.0
    %4148 = vmatpush2.xpose.msra.mxu0 0.0
    %4149 = vmatprep.subr.mxu0 0.0
    %4150 = vmatpush2.xpose.msra.mxu0 0.0
    %4151 = vmatprep.subr.mxu0 0.0
    %4152 = vmatpush2.xpose.msra.mxu0 0.0
    %4153 = vmatprep.subr.mxu0 0.0
    %4154 = vmatpush2.xpose.msra.mxu0 0.0
    %4155 = vmatprep.subr.mxu0 0.0
    %4156 = vmatpush2.xpose.msra.mxu0 0.0
    %4157 = vmatprep.subr.mxu0 0.0
    %4158 = vmatpush2.xpose.msra.mxu0 0.0
    %4159 = vmatprep.subr.mxu0 0.0
    %4160 = vmatpush2.xpose.msra.mxu0 0.0
    %4161 = vmatprep.subr.mxu0 0.0
    %4162 = vmatpush2.xpose.msra.mxu0 0.0
    %4163 = vmatprep.subr.mxu0 0.0
    %4164 = vmatpush2.xpose.msra.mxu0 0.0
    %4165 = vmatprep.subr.mxu0 0.0
    %4166 = vmatpush2.xpose.msra.mxu0 0.0
    %4167 = vmatprep.subr.mxu0 0.0
    %4168 = vmatpush2.xpose.msra.mxu0 0.0
    %4169 = vmatprep.subr.mxu0 0.0
    %4170 = vmatpush2.xpose.msra.mxu0 0.0
    %4171 = vmatprep.subr.mxu0 0.0
    %4172 = vmatpush2.xpose.msra.mxu0 0.0
    %4173 = vmatprep.mubr.f32.mxu0 0.0
    %4174 = vmatmul.mubr.f32.gmra.mxu0 %v4101
    %v4175 = vpop.f32.mrf.mxu0
    %v4176 = vadd.f32 %v2907, %v4175
    %v4177 = vpop.f32.mrf.mxu0
    %4178 = vmatprep.mubr.f32.mxu0 0.0
    %4179 = vmatmul.mubr.f32.gmra.mxu0 %v4103
    %v4180 = vpop.f32.mrf.mxu0
    %v4181 = vadd.f32 %v2908, %v4180
    %v4182 = vpop.f32.mrf.mxu0
    %4183 = vdwg.mxu0
    %v4184 = vsel %vm882, %v4176, -inf
    %4185 = vmax.xlane.f32.xlu0 %v4184
    %v4186 = vpop.xlane.xlu0 %4185
    %v4187 = vsel %vm882, %v4181, -inf
    %4188 = vmax.xlane.f32.xlu0 %v4187
    %v4189 = vpop.xlane.xlu0 %4188
    %v4190 = vsub.f32 %v4176, %v4186
    %v4191 = vsub.f32 %v4181, %v4189
    %v4192 = vmul.f32 %v4190, 1.442695
    %v4193 = vpow.pop %v4192
    %v4194 = vmul.f32 %v4191, 1.442695
    %v4195 = vpow.pop %v4194
    %v4196 = vsel %vm882, %v4193, 0.0
    %4197 = vadd.xlane.f32.xlu0 %v4196
    %v4198 = vpop.xlane.xlu0 %4197
    %v4199 = vsel %vm882, %v4195, 0.0
    %4200 = vadd.xlane.f32.xlu0 %v4199
    %v4201 = vpop.xlane.xlu0 %4200
    %v4202 = vrcp.pop %v4198
    %v4203 = vmul.f32 %v4193, %v4202
    %v4204 = vrcp.pop %v4201
    %v4205 = vmul.f32 %v4195, %v4204
    %4206 = vrot.lane.b32.xlu0 %v2899, 64
    %v4207 = vpop.permute.xlu0 %4206
    %4208 = vrot.lane.b32.xlu0 %v2905, 64
    %v4209 = vpop.permute.xlu0 %4208
    %v4213 = vsel %vm882, %v4203, 0
    %v4216 = vsel %vm882, %v4205, 0
    %4218 = vmatprep.subr.mxu0 0.0
    %4219 = vmatpush1.msra.mxu0 0.0
    %4220 = vmatprep.subr.mxu0 0.0
    %4221 = vmatpush1.msra.mxu0 0.0
    %4222 = vmatprep.subr.mxu0 0.0
    %4223 = vmatpush1.msra.mxu0 0.0
    %4224 = vmatprep.subr.mxu0 0.0
    %4225 = vmatpush1.msra.mxu0 0.0
    %4226 = vmatprep.subr.mxu0 0.0
    %4227 = vmatpush1.msra.mxu0 0.0
    %4228 = vmatprep.subr.mxu0 0.0
    %4229 = vmatpush1.msra.mxu0 0.0
    %4230 = vmatprep.subr.mxu0 0.0
    %4231 = vmatpush1.msra.mxu0 0.0
    %4232 = vmatprep.subr.mxu0 0.0
    %4233 = vmatpush1.msra.mxu0 0.0
    %4234 = vmatprep.subr.mxu0 0.0
    %4235 = vmatpush1.msra.mxu0 0.0
    %4236 = vmatprep.subr.mxu0 0.0
    %4237 = vmatpush1.msra.mxu0 0.0
    %4238 = vmatprep.subr.mxu0 0.0
    %4239 = vmatpush1.msra.mxu0 0.0
    %4240 = vmatprep.subr.mxu0 0.0
    %4241 = vmatpush1.msra.mxu0 0.0
    %4242 = vmatprep.subr.mxu0 0.0
    %4243 = vmatpush1.msra.mxu0 0.0
    %4244 = vmatprep.subr.mxu0 0.0
    %4245 = vmatpush1.msra.mxu0 0.0
    %4246 = vmatprep.subr.mxu0 0.0
    %4247 = vmatpush1.msra.mxu0 %v4209
    %4248 = vmatprep.subr.mxu0 0.0
    %4249 = vmatpush1.msra.mxu0 %v4207
    %4250 = vmatprep.subr.mxu0 0.0
    %4251 = vmatpush2.msra.mxu0 0.0
    %4252 = vmatprep.subr.mxu0 0.0
    %4253 = vmatpush2.msra.mxu0 0.0
    %4254 = vmatprep.subr.mxu0 0.0
    %4255 = vmatpush2.msra.mxu0 0.0
    %4256 = vmatprep.subr.mxu0 0.0
    %4257 = vmatpush2.msra.mxu0 0.0
    %4258 = vmatprep.subr.mxu0 0.0
    %4259 = vmatpush2.msra.mxu0 0.0
    %4260 = vmatprep.subr.mxu0 0.0
    %4261 = vmatpush2.msra.mxu0 0.0
    %4262 = vmatprep.subr.mxu0 0.0
    %4263 = vmatpush2.msra.mxu0 0.0
    %4264 = vmatprep.subr.mxu0 0.0
    %4265 = vmatpush2.msra.mxu0 0.0
    %4266 = vmatprep.subr.mxu0 0.0
    %4267 = vmatpush2.msra.mxu0 0.0
    %4268 = vmatprep.subr.mxu0 0.0
    %4269 = vmatpush2.msra.mxu0 0.0
    %4270 = vmatprep.subr.mxu0 0.0
    %4271 = vmatpush2.msra.mxu0 0.0
    %4272 = vmatprep.subr.mxu0 0.0
    %4273 = vmatpush2.msra.mxu0 0.0
    %4274 = vmatprep.subr.mxu0 0.0
    %4275 = vmatpush2.msra.mxu0 0.0
    %4276 = vmatprep.subr.mxu0 0.0
    %4277 = vmatpush2.msra.mxu0 0.0
    %4278 = vmatprep.subr.mxu0 0.0
    %4279 = vmatpush2.msra.mxu0 0.0
    %4280 = vmatprep.subr.mxu0 0.0
    %4281 = vmatpush2.msra.mxu0 0.0
    %4282 = vmatprep.mubr.f32.mxu0 0.0
    %4283 = vmatmul.mubr.f32.gmra.mxu0 %v4213
    %v4284 = vpop.f32.mrf.mxu0
    %v4285 = vadd.f32 0.0, %v4284
    %v4286 = vpop.f32.mrf.mxu0
    %4287 = vmatprep.mubr.f32.mxu0 0.0
    %4288 = vmatmul.mubr.f32.gmra.mxu0 %v4216
    %v4289 = vpop.f32.mrf.mxu0
    %v4290 = vadd.f32 0.0, %v4289
    %v4291 = vpop.f32.mrf.mxu0
    %4292 = vdwg.mxu0
    %4293 = vrot.lane.b32.xlu0 %v542, 32
    %v4294 = vpop.permute.xlu0 %4293
    %4295 = vrot.lane.b32.xlu0 %v548, 32
    %v4296 = vpop.permute.xlu0 %4295
    %4297 = vrot.lane.b32.xlu0 %v2822, 32
    %v4298 = vpop.permute.xlu0 %4297
    %4299 = vrot.lane.b32.xlu0 %v2828, 32
    %v4300 = vpop.permute.xlu0 %4299
    %v4301 = vsel %vm794, %v4294, 0
    %v4303 = vsel %vm794, %v4296, 0
    %v4305 = vsel %vm794, %v4298, 0
    %v4307 = vsel %vm794, %v4300, 0
    %4309 = vmatprep.subr.mxu0 0.0
    %4310 = vmatpush1.xpose.msra.mxu0 0.0
    %4311 = vmatprep.subr.mxu0 0.0
    %4312 = vmatpush1.xpose.msra.mxu0 0.0
    %4313 = vmatprep.subr.mxu0 0.0
    %4314 = vmatpush1.xpose.msra.mxu0 0.0
    %4315 = vmatprep.subr.mxu0 0.0
    %4316 = vmatpush1.xpose.msra.mxu0 0.0
    %4317 = vmatprep.subr.mxu0 0.0
    %4318 = vmatpush1.xpose.msra.mxu0 0.0
    %4319 = vmatprep.subr.mxu0 0.0
    %4320 = vmatpush1.xpose.msra.mxu0 0.0
    %4321 = vmatprep.subr.mxu0 0.0
    %4322 = vmatpush1.xpose.msra.mxu0 0.0
    %4323 = vmatprep.subr.mxu0 0.0
    %4324 = vmatpush1.xpose.msra.mxu0 0.0
    %4325 = vmatprep.subr.mxu0 0.0
    %4326 = vmatpush1.xpose.msra.mxu0 0.0
    %4327 = vmatprep.subr.mxu0 0.0
    %4328 = vmatpush1.xpose.msra.mxu0 0.0
    %4329 = vmatprep.subr.mxu0 0.0
    %4330 = vmatpush1.xpose.msra.mxu0 0.0
    %4331 = vmatprep.subr.mxu0 0.0
    %4332 = vmatpush1.xpose.msra.mxu0 0.0
    %4333 = vmatprep.subr.mxu0 0.0
    %4334 = vmatpush1.xpose.msra.mxu0 0.0
    %4335 = vmatprep.subr.mxu0 0.0
    %4336 = vmatpush1.xpose.msra.mxu0 0.0
    %4337 = vmatprep.subr.mxu0 0.0
    %4338 = vmatpush1.xpose.msra.mxu0 %v4307
    %4339 = vmatprep.subr.mxu0 0.0
    %4340 = vmatpush1.xpose.msra.mxu0 %v4305
    %4341 = vmatprep.subr.mxu0 0.0
    %4342 = vmatpush2.xpose.msra.mxu0 0.0
    %4343 = vmatprep.subr.mxu0 0.0
    %4344 = vmatpush2.xpose.msra.mxu0 0.0
    %4345 = vmatprep.subr.mxu0 0.0
    %4346 = vmatpush2.xpose.msra.mxu0 0.0
    %4347 = vmatprep.subr.mxu0 0.0
    %4348 = vmatpush2.xpose.msra.mxu0 0.0
    %4349 = vmatprep.subr.mxu0 0.0
    %4350 = vmatpush2.xpose.msra.mxu0 0.0
    %4351 = vmatprep.subr.mxu0 0.0
    %4352 = vmatpush2.xpose.msra.mxu0 0.0
    %4353 = vmatprep.subr.mxu0 0.0
    %4354 = vmatpush2.xpose.msra.mxu0 0.0
    %4355 = vmatprep.subr.mxu0 0.0
    %4356 = vmatpush2.xpose.msra.mxu0 0.0
    %4357 = vmatprep.subr.mxu0 0.0
    %4358 = vmatpush2.xpose.msra.mxu0 0.0
    %4359 = vmatprep.subr.mxu0 0.0
    %4360 = vmatpush2.xpose.msra.mxu0 0.0
    %4361 = vmatprep.subr.mxu0 0.0
    %4362 = vmatpush2.xpose.msra.mxu0 0.0
    %4363 = vmatprep.subr.mxu0 0.0
    %4364 = vmatpush2.xpose.msra.mxu0 0.0
    %4365 = vmatprep.subr.mxu0 0.0
    %4366 = vmatpush2.xpose.msra.mxu0 0.0
    %4367 = vmatprep.subr.mxu0 0.0
    %4368 = vmatpush2.xpose.msra.mxu0 0.0
    %4369 = vmatprep.subr.mxu0 0.0
    %4370 = vmatpush2.xpose.msra.mxu0 0.0
    %4371 = vmatprep.subr.mxu0 0.0
    %4372 = vmatpush2.xpose.msra.mxu0 0.0
    %4373 = vmatprep.mubr.f32.mxu0 0.0
    %4374 = vmatmul.mubr.f32.gmra.mxu0 %v4301
    %v4375 = vpop.f32.mrf.mxu0
    %v4376 = vadd.f32 %v2907, %v4375
    %v4377 = vpop.f32.mrf.mxu0
    %4378 = vmatprep.mubr.f32.mxu0 0.0
    %4379 = vmatmul.mubr.f32.gmra.mxu0 %v4303
    %v4380 = vpop.f32.mrf.mxu0
    %v4381 = vadd.f32 %v2908, %v4380
    %v4382 = vpop.f32.mrf.mxu0
    %4383 = vdwg.mxu0
    %v4384 = vsel %vm882, %v4376, -inf
    %4385 = vmax.xlane.f32.xlu0 %v4384
    %v4386 = vpop.xlane.xlu0 %4385
    %v4387 = vsel %vm882, %v4381, -inf
    %4388 = vmax.xlane.f32.xlu0 %v4387
    %v4389 = vpop.xlane.xlu0 %4388
    %v4390 = vsub.f32 %v4376, %v4386
    %v4391 = vsub.f32 %v4381, %v4389
    %v4392 = vmul.f32 %v4390, 1.442695
    %v4393 = vpow.pop %v4392
    %v4394 = vmul.f32 %v4391, 1.442695
    %v4395 = vpow.pop %v4394
    %v4396 = vsel %vm882, %v4393, 0.0
    %4397 = vadd.xlane.f32.xlu0 %v4396
    %v4398 = vpop.xlane.xlu0 %4397
    %v4399 = vsel %vm882, %v4395, 0.0
    %4400 = vadd.xlane.f32.xlu0 %v4399
    %v4401 = vpop.xlane.xlu0 %4400
    %v4402 = vrcp.pop %v4398
    %v4403 = vmul.f32 %v4393, %v4402
    %v4404 = vrcp.pop %v4401
    %v4405 = vmul.f32 %v4395, %v4404
    %4406 = vrot.lane.b32.xlu0 %v2899, 32
    %v4407 = vpop.permute.xlu0 %4406
    %4408 = vrot.lane.b32.xlu0 %v2905, 32
    %v4409 = vpop.permute.xlu0 %4408
    %v4413 = vsel %vm882, %v4403, 0
    %v4416 = vsel %vm882, %v4405, 0
    %4418 = vmatprep.subr.mxu0 0.0
    %4419 = vmatpush1.msra.mxu0 0.0
    %4420 = vmatprep.subr.mxu0 0.0
    %4421 = vmatpush1.msra.mxu0 0.0
    %4422 = vmatprep.subr.mxu0 0.0
    %4423 = vmatpush1.msra.mxu0 0.0
    %4424 = vmatprep.subr.mxu0 0.0
    %4425 = vmatpush1.msra.mxu0 0.0
    %4426 = vmatprep.subr.mxu0 0.0
    %4427 = vmatpush1.msra.mxu0 0.0
    %4428 = vmatprep.subr.mxu0 0.0
    %4429 = vmatpush1.msra.mxu0 0.0
    %4430 = vmatprep.subr.mxu0 0.0
    %4431 = vmatpush1.msra.mxu0 0.0
    %4432 = vmatprep.subr.mxu0 0.0
    %4433 = vmatpush1.msra.mxu0 0.0
    %4434 = vmatprep.subr.mxu0 0.0
    %4435 = vmatpush1.msra.mxu0 0.0
    %4436 = vmatprep.subr.mxu0 0.0
    %4437 = vmatpush1.msra.mxu0 0.0
    %4438 = vmatprep.subr.mxu0 0.0
    %4439 = vmatpush1.msra.mxu0 0.0
    %4440 = vmatprep.subr.mxu0 0.0
    %4441 = vmatpush1.msra.mxu0 0.0
    %4442 = vmatprep.subr.mxu0 0.0
    %4443 = vmatpush1.msra.mxu0 0.0
    %4444 = vmatprep.subr.mxu0 0.0
    %4445 = vmatpush1.msra.mxu0 0.0
    %4446 = vmatprep.subr.mxu0 0.0
    %4447 = vmatpush1.msra.mxu0 %v4409
    %4448 = vmatprep.subr.mxu0 0.0
    %4449 = vmatpush1.msra.mxu0 %v4407
    %4450 = vmatprep.subr.mxu0 0.0
    %4451 = vmatpush2.msra.mxu0 0.0
    %4452 = vmatprep.subr.mxu0 0.0
    %4453 = vmatpush2.msra.mxu0 0.0
    %4454 = vmatprep.subr.mxu0 0.0
    %4455 = vmatpush2.msra.mxu0 0.0
    %4456 = vmatprep.subr.mxu0 0.0
    %4457 = vmatpush2.msra.mxu0 0.0
    %4458 = vmatprep.subr.mxu0 0.0
    %4459 = vmatpush2.msra.mxu0 0.0
    %4460 = vmatprep.subr.mxu0 0.0
    %4461 = vmatpush2.msra.mxu0 0.0
    %4462 = vmatprep.subr.mxu0 0.0
    %4463 = vmatpush2.msra.mxu0 0.0
    %4464 = vmatprep.subr.mxu0 0.0
    %4465 = vmatpush2.msra.mxu0 0.0
    %4466 = vmatprep.subr.mxu0 0.0
    %4467 = vmatpush2.msra.mxu0 0.0
    %4468 = vmatprep.subr.mxu0 0.0
    %4469 = vmatpush2.msra.mxu0 0.0
    %4470 = vmatprep.subr.mxu0 0.0
    %4471 = vmatpush2.msra.mxu0 0.0
    %4472 = vmatprep.subr.mxu0 0.0
    %4473 = vmatpush2.msra.mxu0 0.0
    %4474 = vmatprep.subr.mxu0 0.0
    %4475 = vmatpush2.msra.mxu0 0.0
    %4476 = vmatprep.subr.mxu0 0.0
    %4477 = vmatpush2.msra.mxu0 0.0
    %4478 = vmatprep.subr.mxu0 0.0
    %4479 = vmatpush2.msra.mxu0 0.0
    %4480 = vmatprep.subr.mxu0 0.0
    %4481 = vmatpush2.msra.mxu0 0.0
    %4482 = vmatprep.mubr.f32.mxu0 0.0
    %4483 = vmatmul.mubr.f32.gmra.mxu0 %v4413
    %v4484 = vpop.f32.mrf.mxu0
    %v4485 = vadd.f32 0.0, %v4484
    %v4486 = vpop.f32.mrf.mxu0
    %4487 = vmatprep.mubr.f32.mxu0 0.0
    %4488 = vmatmul.mubr.f32.gmra.mxu0 %v4416
    %v4489 = vpop.f32.mrf.mxu0
    %v4490 = vadd.f32 0.0, %v4489
    %v4491 = vpop.f32.mrf.mxu0
    %4492 = vdwg.mxu0
    %4495 = vrot.lane.b32.xlu0 %v3293, 32
    %v4496 = vpop.permute.xlu0 %4495
    %4497 = vrot.lane.b32.xlu0 %v3298, 32
    %v4498 = vpop.permute.xlu0 %4497
    %4503 = vrot.lane.b32.xlu0 %v3493, 64
    %v4504 = vpop.permute.xlu0 %4503
    %4505 = vrot.lane.b32.xlu0 %v3498, 64
    %v4506 = vpop.permute.xlu0 %4505
    %4511 = vrot.lane.b32.xlu0 %v3693, 96
    %v4512 = vpop.permute.xlu0 %4511
    %4513 = vrot.lane.b32.xlu0 %v3698, 96
    %v4514 = vpop.permute.xlu0 %4513
    %4519 = vrot.lane.b32.xlu0 %v4085, 32
    %v4520 = vpop.permute.xlu0 %4519
    %4521 = vrot.lane.b32.xlu0 %v4090, 32
    %v4522 = vpop.permute.xlu0 %4521
    %4527 = vrot.lane.b32.xlu0 %v4285, 64
    %v4528 = vpop.permute.xlu0 %4527
    %4529 = vrot.lane.b32.xlu0 %v4290, 64
    %v4530 = vpop.permute.xlu0 %4529
    %4535 = vrot.lane.b32.xlu0 %v4485, 96
    %v4536 = vpop.permute.xlu0 %4535
    %4537 = vrot.lane.b32.xlu0 %v4490, 96
    %v4538 = vpop.permute.xlu0 %4537
    %v4541 = vsel %vm794, %v3091, %v4496
    %v4542 = vsel %vm794, %v3096, %v4498
    %v4543 = vsel %vm2430, %v4541, %v4504
    %v4544 = vsel %vm2430, %v4542, %v4506
    %v4545 = vsel %vm2433, %v4543, %v4512
    %v4546 = vsel %vm2433, %v4544, %v4514
    %v4547 = vsel %vm794, %v3883, %v4520
    %v4548 = vsel %vm794, %v3888, %v4522
    %v4549 = vsel %vm2430, %v4547, %v4528
    %v4550 = vsel %vm2430, %v4548, %v4530
    %v4551 = vsel %vm2433, %v4549, %v4536
    %v4552 = vsel %vm2433, %v4550, %v4538
    %v4553 = vld [vmem:[#allocation17] sm:$0xff]
    %v4554 = vld [vmem:[#allocation17 + $0x8] sm:$0xff]
    %v4555 = vld [vmem:[#allocation17 + $0x10] sm:$0xff]
    %v4556 = vld [vmem:[#allocation17 + $0x18] sm:$0xff]
    %v4557 = vld [vmem:[#allocation17 + $0x20] sm:$0xff]
    %v4558 = vld [vmem:[#allocation17 + $0x28] sm:$0xff]
    %v4559 = vld [vmem:[#allocation17 + $0x30] sm:$0xff]
    %v4560 = vld [vmem:[#allocation17 + $0x38] sm:$0xff]
    %v4561 = vld [vmem:[#allocation17 + $0x40] sm:$0xff]
    %v4562 = vld [vmem:[#allocation17 + $0x48] sm:$0xff]
    %v4563 = vld [vmem:[#allocation17 + $0x50] sm:$0xff]
    %v4564 = vld [vmem:[#allocation17 + $0x58] sm:$0xff]
    %v4565 = vld [vmem:[#allocation17 + $0x60] sm:$0xff]
    %v4566 = vld [vmem:[#allocation17 + $0x68] sm:$0xff]
    %v4567 = vld [vmem:[#allocation17 + $0x70] sm:$0xff]
    %v4568 = vld [vmem:[#allocation17 + $0x78] sm:$0xff]
    %v4569 = vld [vmem:[#allocation17 + $0x80] sm:$0xff]
    %v4570 = vld [vmem:[#allocation17 + $0x88] sm:$0xff]
    %v4571 = vld [vmem:[#allocation17 + $0x90] sm:$0xff]
    %v4572 = vld [vmem:[#allocation17 + $0x98] sm:$0xff]
    %v4573 = vld [vmem:[#allocation17 + $0xa0] sm:$0xff]
    %v4574 = vld [vmem:[#allocation17 + $0xa8] sm:$0xff]
    %v4575 = vld [vmem:[#allocation17 + $0xb0] sm:$0xff]
    %v4576 = vld [vmem:[#allocation17 + $0xb8] sm:$0xff]
    %v4577 = vld [vmem:[#allocation17 + $0xc0] sm:$0xff]
    %v4578 = vld [vmem:[#allocation17 + $0xc8] sm:$0xff]
    %v4579 = vld [vmem:[#allocation17 + $0xd0] sm:$0xff]
    %v4580 = vld [vmem:[#allocation17 + $0xd8] sm:$0xff]
    %v4581 = vld [vmem:[#allocation17 + $0xe0] sm:$0xff]
    %v4582 = vld [vmem:[#allocation17 + $0xe8] sm:$0xff]
    %v4583 = vld [vmem:[#allocation17 + $0xf0] sm:$0xff]
    %v4584 = vld [vmem:[#allocation17 + $0xf8] sm:$0xff]
    %v4585 = vld [vmem:[#allocation17 + $0x100] sm:$0xff]
    %v4586 = vld [vmem:[#allocation17 + $0x108] sm:$0xff]
    %v4587 = vld [vmem:[#allocation17 + $0x110] sm:$0xff]
    %v4588 = vld [vmem:[#allocation17 + $0x118] sm:$0xff]
    %v4589 = vld [vmem:[#allocation17 + $0x120] sm:$0xff]
    %v4590 = vld [vmem:[#allocation17 + $0x128] sm:$0xff]
    %v4591 = vld [vmem:[#allocation17 + $0x130] sm:$0xff]
    %v4592 = vld [vmem:[#allocation17 + $0x138] sm:$0xff]
    %v4593 = vld [vmem:[#allocation17 + $0x140] sm:$0xff]
    %v4594 = vld [vmem:[#allocation17 + $0x148] sm:$0xff]
    %v4595 = vld [vmem:[#allocation17 + $0x150] sm:$0xff]
    %v4596 = vld [vmem:[#allocation17 + $0x158] sm:$0xff]
    %v4597 = vld [vmem:[#allocation17 + $0x160] sm:$0xff]
    %v4598 = vld [vmem:[#allocation17 + $0x168] sm:$0xff]
    %v4599 = vld [vmem:[#allocation17 + $0x170] sm:$0xff]
    %v4600 = vld [vmem:[#allocation17 + $0x178] sm:$0xff]
    %v4601 = vld [vmem:[#allocation17 + $0x180] sm:$0xff]
    %v4602 = vld [vmem:[#allocation17 + $0x188] sm:$0xff]
    %v4603 = vld [vmem:[#allocation17 + $0x190] sm:$0xff]
    %v4604 = vld [vmem:[#allocation17 + $0x198] sm:$0xff]
    %v4605 = vld [vmem:[#allocation17 + $0x1a0] sm:$0xff]
    %v4606 = vld [vmem:[#allocation17 + $0x1a8] sm:$0xff]
    %v4607 = vld [vmem:[#allocation17 + $0x1b0] sm:$0xff]
    %v4608 = vld [vmem:[#allocation17 + $0x1b8] sm:$0xff]
    %v4609 = vld [vmem:[#allocation17 + $0x1c0] sm:$0xff]
    %v4610 = vld [vmem:[#allocation17 + $0x1c8] sm:$0xff]
    %v4611 = vld [vmem:[#allocation17 + $0x1d0] sm:$0xff]
    %v4612 = vld [vmem:[#allocation17 + $0x1d8] sm:$0xff]
    %v4613 = vld [vmem:[#allocation17 + $0x1e0] sm:$0xff]
    %v4614 = vld [vmem:[#allocation17 + $0x1e8] sm:$0xff]
    %v4615 = vld [vmem:[#allocation17 + $0x1f0] sm:$0xff]
    %v4616 = vld [vmem:[#allocation17 + $0x1f8] sm:$0xff]
    %v4617 = vld [vmem:[%s14] sm:$0x3]
    %v4619 = vlaneseq
    %v4620 = vshrl.u32 %v4619, 7
    %v4621 = vsub.s32 0, %v4620
    %v4622 = vrot.slane %v4617, %v4621
    %v4623 = vlaneseq
    %v4624 = vshrl.u32 %v4623, 7
    %v4625 = vsub.s32 1, %v4624
    %v4626 = vrot.slane %v4617, %v4625
    %4629 = vmatprep.subr.mxu0 %v4584
    %4630 = vmatpush1.msra.mxu0 %v4583
    %4631 = vmatprep.subr.mxu0 %v4582
    %4632 = vmatpush1.msra.mxu0 %v4581
    %4633 = vmatprep.subr.mxu0 %v4580
    %4634 = vmatpush1.msra.mxu0 %v4579
    %4635 = vmatprep.subr.mxu0 %v4578
    %4636 = vmatpush1.msra.mxu0 %v4577
    %4637 = vmatprep.subr.mxu0 %v4576
    %4638 = vmatpush1.msra.mxu0 %v4575
    %4639 = vmatprep.subr.mxu0 %v4574
    %4640 = vmatpush1.msra.mxu0 %v4573
    %4641 = vmatprep.subr.mxu0 %v4572
    %4642 = vmatpush1.msra.mxu0 %v4571
    %4643 = vmatprep.subr.mxu0 %v4570
    %4644 = vmatpush1.msra.mxu0 %v4569
    %4645 = vmatprep.subr.mxu0 %v4568
    %4646 = vmatpush1.msra.mxu0 %v4567
    %4647 = vmatprep.subr.mxu0 %v4566
    %4648 = vmatpush1.msra.mxu0 %v4565
    %4649 = vmatprep.subr.mxu0 %v4564
    %4650 = vmatpush1.msra.mxu0 %v4563
    %4651 = vmatprep.subr.mxu0 %v4562
    %4652 = vmatpush1.msra.mxu0 %v4561
    %4653 = vmatprep.subr.mxu0 %v4560
    %4654 = vmatpush1.msra.mxu0 %v4559
    %4655 = vmatprep.subr.mxu0 %v4558
    %4656 = vmatpush1.msra.mxu0 %v4557
    %4657 = vmatprep.subr.mxu0 %v4556
    %4658 = vmatpush1.msra.mxu0 %v4555
    %4659 = vmatprep.subr.mxu0 %v4554
    %4660 = vmatpush1.msra.mxu0 %v4553
    %4661 = vmatprep.subr.mxu0 %v4616
    %4662 = vmatpush2.msra.mxu0 %v4615
    %4663 = vmatprep.subr.mxu0 %v4614
    %4664 = vmatpush2.msra.mxu0 %v4613
    %4665 = vmatprep.subr.mxu0 %v4612
    %4666 = vmatpush2.msra.mxu0 %v4611
    %4667 = vmatprep.subr.mxu0 %v4610
    %4668 = vmatpush2.msra.mxu0 %v4609
    %4669 = vmatprep.subr.mxu0 %v4608
    %4670 = vmatpush2.msra.mxu0 %v4607
    %4671 = vmatprep.subr.mxu0 %v4606
    %4672 = vmatpush2.msra.mxu0 %v4605
    %4673 = vmatprep.subr.mxu0 %v4604
    %4674 = vmatpush2.msra.mxu0 %v4603
    %4675 = vmatprep.subr.mxu0 %v4602
    %4676 = vmatpush2.msra.mxu0 %v4601
    %4677 = vmatprep.subr.mxu0 %v4600
    %4678 = vmatpush2.msra.mxu0 %v4599
    %4679 = vmatprep.subr.mxu0 %v4598
    %4680 = vmatpush2.msra.mxu0 %v4597
    %4681 = vmatprep.subr.mxu0 %v4596
    %4682 = vmatpush2.msra.mxu0 %v4595
    %4683 = vmatprep.subr.mxu0 %v4594
    %4684 = vmatpush2.msra.mxu0 %v4593
    %4685 = vmatprep.subr.mxu0 %v4592
    %4686 = vmatpush2.msra.mxu0 %v4591
    %4687 = vmatprep.subr.mxu0 %v4590
    %4688 = vmatpush2.msra.mxu0 %v4589
    %4689 = vmatprep.subr.mxu0 %v4588
    %4690 = vmatpush2.msra.mxu0 %v4587
    %4691 = vmatprep.subr.mxu0 %v4586
    %4692 = vmatpush2.msra.mxu0 %v4585
    %4693 = vmatprep.mubr.f32.mxu0 %v4551
    %4694 = vmatmul.mubr.f32.gmra.mxu0 %v4545
    %v4695 = vpop.f32.mrf.mxu0
    %v4696 = vadd.f32 %v4622, %v4695
    %v4697 = vpop.f32.mrf.mxu0
    %v4698 = vadd.f32 %v4626, %v4697
    %4699 = vmatprep.mubr.f32.mxu0 %v4552
    %4700 = vmatmul.mubr.f32.gmra.mxu0 %v4546
    %v4701 = vpop.f32.mrf.mxu0
    %v4702 = vadd.f32 %v4622, %v4701
    %v4703 = vpop.f32.mrf.mxu0
    %v4704 = vadd.f32 %v4626, %v4703
    %4705 = vdwg.mxu0
    %v4706 = vmax.f32 %v4696, 0.0
    %v4707 = vmax.f32 %v4698, 0.0
    %v4708 = vmax.f32 %v4702, 0.0
    %v4709 = vmax.f32 %v4704, 0.0
    %v4710 = vld [vmem:[#allocation19] sm:$0xff]
    %v4711 = vld [vmem:[#allocation19 + $0x8] sm:$0xff]
    %v4712 = vld [vmem:[#allocation19 + $0x10] sm:$0xff]
    %v4713 = vld [vmem:[#allocation19 + $0x18] sm:$0xff]
    %v4714 = vld [vmem:[#allocation19 + $0x20] sm:$0xff]
    %v4715 = vld [vmem:[#allocation19 + $0x28] sm:$0xff]
    %v4716 = vld [vmem:[#allocation19 + $0x30] sm:$0xff]
    %v4717 = vld [vmem:[#allocation19 + $0x38] sm:$0xff]
    %v4718 = vld [vmem:[#allocation19 + $0x40] sm:$0xff]
    %v4719 = vld [vmem:[#allocation19 + $0x48] sm:$0xff]
    %v4720 = vld [vmem:[#allocation19 + $0x50] sm:$0xff]
    %v4721 = vld [vmem:[#allocation19 + $0x58] sm:$0xff]
    %v4722 = vld [vmem:[#allocation19 + $0x60] sm:$0xff]
    %v4723 = vld [vmem:[#allocation19 + $0x68] sm:$0xff]
    %v4724 = vld [vmem:[#allocation19 + $0x70] sm:$0xff]
    %v4725 = vld [vmem:[#allocation19 + $0x78] sm:$0xff]
    %v4726 = vld [vmem:[#allocation19 + $0x80] sm:$0xff]
    %v4727 = vld [vmem:[#allocation19 + $0x88] sm:$0xff]
    %v4728 = vld [vmem:[#allocation19 + $0x90] sm:$0xff]
    %v4729 = vld [vmem:[#allocation19 + $0x98] sm:$0xff]
    %v4730 = vld [vmem:[#allocation19 + $0xa0] sm:$0xff]
    %v4731 = vld [vmem:[#allocation19 + $0xa8] sm:$0xff]
    %v4732 = vld [vmem:[#allocation19 + $0xb0] sm:$0xff]
    %v4733 = vld [vmem:[#allocation19 + $0xb8] sm:$0xff]
    %v4734 = vld [vmem:[#allocation19 + $0xc0] sm:$0xff]
    %v4735 = vld [vmem:[#allocation19 + $0xc8] sm:$0xff]
    %v4736 = vld [vmem:[#allocation19 + $0xd0] sm:$0xff]
    %v4737 = vld [vmem:[#allocation19 + $0xd8] sm:$0xff]
    %v4738 = vld [vmem:[#allocation19 + $0xe0] sm:$0xff]
    %v4739 = vld [vmem:[#allocation19 + $0xe8] sm:$0xff]
    %v4740 = vld [vmem:[#allocation19 + $0xf0] sm:$0xff]
    %v4741 = vld [vmem:[#allocation19 + $0xf8] sm:$0xff]
    %v4742 = vld [vmem:[#allocation19 + $0x100] sm:$0xff]
    %v4743 = vld [vmem:[#allocation19 + $0x108] sm:$0xff]
    %v4744 = vld [vmem:[#allocation19 + $0x110] sm:$0xff]
    %v4745 = vld [vmem:[#allocation19 + $0x118] sm:$0xff]
    %v4746 = vld [vmem:[#allocation19 + $0x120] sm:$0xff]
    %v4747 = vld [vmem:[#allocation19 + $0x128] sm:$0xff]
    %v4748 = vld [vmem:[#allocation19 + $0x130] sm:$0xff]
    %v4749 = vld [vmem:[#allocation19 + $0x138] sm:$0xff]
    %v4750 = vld [vmem:[#allocation19 + $0x140] sm:$0xff]
    %v4751 = vld [vmem:[#allocation19 + $0x148] sm:$0xff]
    %v4752 = vld [vmem:[#allocation19 + $0x150] sm:$0xff]
    %v4753 = vld [vmem:[#allocation19 + $0x158] sm:$0xff]
    %v4754 = vld [vmem:[#allocation19 + $0x160] sm:$0xff]
    %v4755 = vld [vmem:[#allocation19 + $0x168] sm:$0xff]
    %v4756 = vld [vmem:[#allocation19 + $0x170] sm:$0xff]
    %v4757 = vld [vmem:[#allocation19 + $0x178] sm:$0xff]
    %v4758 = vld [vmem:[#allocation19 + $0x180] sm:$0xff]
    %v4759 = vld [vmem:[#allocation19 + $0x188] sm:$0xff]
    %v4760 = vld [vmem:[#allocation19 + $0x190] sm:$0xff]
    %v4761 = vld [vmem:[#allocation19 + $0x198] sm:$0xff]
    %v4762 = vld [vmem:[#allocation19 + $0x1a0] sm:$0xff]
    %v4763 = vld [vmem:[#allocation19 + $0x1a8] sm:$0xff]
    %v4764 = vld [vmem:[#allocation19 + $0x1b0] sm:$0xff]
    %v4765 = vld [vmem:[#allocation19 + $0x1b8] sm:$0xff]
    %v4766 = vld [vmem:[#allocation19 + $0x1c0] sm:$0xff]
    %v4767 = vld [vmem:[#allocation19 + $0x1c8] sm:$0xff]
    %v4768 = vld [vmem:[#allocation19 + $0x1d0] sm:$0xff]
    %v4769 = vld [vmem:[#allocation19 + $0x1d8] sm:$0xff]
    %v4770 = vld [vmem:[#allocation19 + $0x1e0] sm:$0xff]
    %v4771 = vld [vmem:[#allocation19 + $0x1e8] sm:$0xff]
    %v4772 = vld [vmem:[#allocation19 + $0x1f0] sm:$0xff]
    %v4773 = vld [vmem:[#allocation19 + $0x1f8] sm:$0xff]
    %v4774 = vld [vmem:[#allocation20] sm:$0xff]
    %v4775 = vld [vmem:[#allocation20 + $0x8] sm:$0xff]
    %v4776 = vld [vmem:[#allocation20 + $0x10] sm:$0xff]
    %v4777 = vld [vmem:[#allocation20 + $0x18] sm:$0xff]
    %v4778 = vld [vmem:[#allocation20 + $0x20] sm:$0xff]
    %v4779 = vld [vmem:[#allocation20 + $0x28] sm:$0xff]
    %v4780 = vld [vmem:[#allocation20 + $0x30] sm:$0xff]
    %v4781 = vld [vmem:[#allocation20 + $0x38] sm:$0xff]
    %v4782 = vld [vmem:[#allocation20 + $0x40] sm:$0xff]
    %v4783 = vld [vmem:[#allocation20 + $0x48] sm:$0xff]
    %v4784 = vld [vmem:[#allocation20 + $0x50] sm:$0xff]
    %v4785 = vld [vmem:[#allocation20 + $0x58] sm:$0xff]
    %v4786 = vld [vmem:[#allocation20 + $0x60] sm:$0xff]
    %v4787 = vld [vmem:[#allocation20 + $0x68] sm:$0xff]
    %v4788 = vld [vmem:[#allocation20 + $0x70] sm:$0xff]
    %v4789 = vld [vmem:[#allocation20 + $0x78] sm:$0xff]
    %v4790 = vld [vmem:[#allocation20 + $0x80] sm:$0xff]
    %v4791 = vld [vmem:[#allocation20 + $0x88] sm:$0xff]
    %v4792 = vld [vmem:[#allocation20 + $0x90] sm:$0xff]
    %v4793 = vld [vmem:[#allocation20 + $0x98] sm:$0xff]
    %v4794 = vld [vmem:[#allocation20 + $0xa0] sm:$0xff]
    %v4795 = vld [vmem:[#allocation20 + $0xa8] sm:$0xff]
    %v4796 = vld [vmem:[#allocation20 + $0xb0] sm:$0xff]
    %v4797 = vld [vmem:[#allocation20 + $0xb8] sm:$0xff]
    %v4798 = vld [vmem:[#allocation20 + $0xc0] sm:$0xff]
    %v4799 = vld [vmem:[#allocation20 + $0xc8] sm:$0xff]
    %v4800 = vld [vmem:[#allocation20 + $0xd0] sm:$0xff]
    %v4801 = vld [vmem:[#allocation20 + $0xd8] sm:$0xff]
    %v4802 = vld [vmem:[#allocation20 + $0xe0] sm:$0xff]
    %v4803 = vld [vmem:[#allocation20 + $0xe8] sm:$0xff]
    %v4804 = vld [vmem:[#allocation20 + $0xf0] sm:$0xff]
    %v4805 = vld [vmem:[#allocation20 + $0xf8] sm:$0xff]
    %v4806 = vld [vmem:[#allocation20 + $0x100] sm:$0xff]
    %v4807 = vld [vmem:[#allocation20 + $0x108] sm:$0xff]
    %v4808 = vld [vmem:[#allocation20 + $0x110] sm:$0xff]
    %v4809 = vld [vmem:[#allocation20 + $0x118] sm:$0xff]
    %v4810 = vld [vmem:[#allocation20 + $0x120] sm:$0xff]
    %v4811 = vld [vmem:[#allocation20 + $0x128] sm:$0xff]
    %v4812 = vld [vmem:[#allocation20 + $0x130] sm:$0xff]
    %v4813 = vld [vmem:[#allocation20 + $0x138] sm:$0xff]
    %v4814 = vld [vmem:[#allocation20 + $0x140] sm:$0xff]
    %v4815 = vld [vmem:[#allocation20 + $0x148] sm:$0xff]
    %v4816 = vld [vmem:[#allocation20 + $0x150] sm:$0xff]
    %v4817 = vld [vmem:[#allocation20 + $0x158] sm:$0xff]
    %v4818 = vld [vmem:[#allocation20 + $0x160] sm:$0xff]
    %v4819 = vld [vmem:[#allocation20 + $0x168] sm:$0xff]
    %v4820 = vld [vmem:[#allocation20 + $0x170] sm:$0xff]
    %v4821 = vld [vmem:[#allocation20 + $0x178] sm:$0xff]
    %v4822 = vld [vmem:[#allocation20 + $0x180] sm:$0xff]
    %v4823 = vld [vmem:[#allocation20 + $0x188] sm:$0xff]
    %v4824 = vld [vmem:[#allocation20 + $0x190] sm:$0xff]
    %v4825 = vld [vmem:[#allocation20 + $0x198] sm:$0xff]
    %v4826 = vld [vmem:[#allocation20 + $0x1a0] sm:$0xff]
    %v4827 = vld [vmem:[#allocation20 + $0x1a8] sm:$0xff]
    %v4828 = vld [vmem:[#allocation20 + $0x1b0] sm:$0xff]
    %v4829 = vld [vmem:[#allocation20 + $0x1b8] sm:$0xff]
    %v4830 = vld [vmem:[#allocation20 + $0x1c0] sm:$0xff]
    %v4831 = vld [vmem:[#allocation20 + $0x1c8] sm:$0xff]
    %v4832 = vld [vmem:[#allocation20 + $0x1d0] sm:$0xff]
    %v4833 = vld [vmem:[#allocation20 + $0x1d8] sm:$0xff]
    %v4834 = vld [vmem:[#allocation20 + $0x1e0] sm:$0xff]
    %v4835 = vld [vmem:[#allocation20 + $0x1e8] sm:$0xff]
    %v4836 = vld [vmem:[#allocation20 + $0x1f0] sm:$0xff]
    %v4837 = vld [vmem:[#allocation20 + $0x1f8] sm:$0xff]
    %4838 = vmatprep.subr.mxu0 %v4805
    %4839 = vmatpush1.msra.mxu0 %v4804
    %4840 = vmatprep.subr.mxu0 %v4803
    %4841 = vmatpush1.msra.mxu0 %v4802
    %4842 = vmatprep.subr.mxu0 %v4801
    %4843 = vmatpush1.msra.mxu0 %v4800
    %4844 = vmatprep.subr.mxu0 %v4799
    %4845 = vmatpush1.msra.mxu0 %v4798
    %4846 = vmatprep.subr.mxu0 %v4797
    %4847 = vmatpush1.msra.mxu0 %v4796
    %4848 = vmatprep.subr.mxu0 %v4795
    %4849 = vmatpush1.msra.mxu0 %v4794
    %4850 = vmatprep.subr.mxu0 %v4793
    %4851 = vmatpush1.msra.mxu0 %v4792
    %4852 = vmatprep.subr.mxu0 %v4791
    %4853 = vmatpush1.msra.mxu0 %v4790
    %4854 = vmatprep.subr.mxu0 %v4789
    %4855 = vmatpush1.msra.mxu0 %v4788
    %4856 = vmatprep.subr.mxu0 %v4787
    %4857 = vmatpush1.msra.mxu0 %v4786
    %4858 = vmatprep.subr.mxu0 %v4785
    %4859 = vmatpush1.msra.mxu0 %v4784
    %4860 = vmatprep.subr.mxu0 %v4783
    %4861 = vmatpush1.msra.mxu0 %v4782
    %4862 = vmatprep.subr.mxu0 %v4781
    %4863 = vmatpush1.msra.mxu0 %v4780
    %4864 = vmatprep.subr.mxu0 %v4779
    %4865 = vmatpush1.msra.mxu0 %v4778
    %4866 = vmatprep.subr.mxu0 %v4777
    %4867 = vmatpush1.msra.mxu0 %v4776
    %4868 = vmatprep.subr.mxu0 %v4775
    %4869 = vmatpush1.msra.mxu0 %v4774
    %4870 = vmatprep.subr.mxu0 %v4837
    %4871 = vmatpush2.msra.mxu0 %v4836
    %4872 = vmatprep.subr.mxu0 %v4835
    %4873 = vmatpush2.msra.mxu0 %v4834
    %4874 = vmatprep.subr.mxu0 %v4833
    %4875 = vmatpush2.msra.mxu0 %v4832
    %4876 = vmatprep.subr.mxu0 %v4831
    %4877 = vmatpush2.msra.mxu0 %v4830
    %4878 = vmatprep.subr.mxu0 %v4829
    %4879 = vmatpush2.msra.mxu0 %v4828
    %4880 = vmatprep.subr.mxu0 %v4827
    %4881 = vmatpush2.msra.mxu0 %v4826
    %4882 = vmatprep.subr.mxu0 %v4825
    %4883 = vmatpush2.msra.mxu0 %v4824
    %4884 = vmatprep.subr.mxu0 %v4823
    %4885 = vmatpush2.msra.mxu0 %v4822
    %4886 = vmatprep.subr.mxu0 %v4821
    %4887 = vmatpush2.msra.mxu0 %v4820
    %4888 = vmatprep.subr.mxu0 %v4819
    %4889 = vmatpush2.msra.mxu0 %v4818
    %4890 = vmatprep.subr.mxu0 %v4817
    %4891 = vmatpush2.msra.mxu0 %v4816
    %4892 = vmatprep.subr.mxu0 %v4815
    %4893 = vmatpush2.msra.mxu0 %v4814
    %4894 = vmatprep.subr.mxu0 %v4813
    %4895 = vmatpush2.msra.mxu0 %v4812
    %4896 = vmatprep.subr.mxu0 %v4811
    %4897 = vmatpush2.msra.mxu0 %v4810
    %4898 = vmatprep.subr.mxu0 %v4809
    %4899 = vmatpush2.msra.mxu0 %v4808
    %4900 = vmatprep.subr.mxu0 %v4807
    %4901 = vmatpush2.msra.mxu0 %v4806
    %4902 = vmatprep.mubr.f32.mxu0 %v2596
    %4903 = vmatmul.mubr.f32.gmra.mxu0 %v2595
    %v4904 = vpop.f32.mrf.mxu0
    %v4905 = vadd.f32 0.0, %v4904
    %v4906 = vpop.f32.mrf.mxu0
    %v4907 = vadd.f32 0.0, %v4906
    %4908 = vmatprep.mubr.f32.mxu0 %v2598
    %4909 = vmatmul.mubr.f32.gmra.mxu0 %v2597
    %v4910 = vpop.f32.mrf.mxu0
    %v4911 = vadd.f32 0.0, %v4910
    %v4912 = vpop.f32.mrf.mxu0
    %v4913 = vadd.f32 0.0, %v4912
    %4914 = vdwg.mxu0
    %4915 = vmatprep.subr.mxu0 %v4741
    %4916 = vmatpush1.msra.mxu0 %v4740
    %4917 = vmatprep.subr.mxu0 %v4739
    %4918 = vmatpush1.msra.mxu0 %v4738
    %4919 = vmatprep.subr.mxu0 %v4737
    %4920 = vmatpush1.msra.mxu0 %v4736
    %4921 = vmatprep.subr.mxu0 %v4735
    %4922 = vmatpush1.msra.mxu0 %v4734
    %4923 = vmatprep.subr.mxu0 %v4733
    %4924 = vmatpush1.msra.mxu0 %v4732
    %4925 = vmatprep.subr.mxu0 %v4731
    %4926 = vmatpush1.msra.mxu0 %v4730
    %4927 = vmatprep.subr.mxu0 %v4729
    %4928 = vmatpush1.msra.mxu0 %v4728
    %4929 = vmatprep.subr.mxu0 %v4727
    %4930 = vmatpush1.msra.mxu0 %v4726
    %4931 = vmatprep.subr.mxu0 %v4725
    %4932 = vmatpush1.msra.mxu0 %v4724
    %4933 = vmatprep.subr.mxu0 %v4723
    %4934 = vmatpush1.msra.mxu0 %v4722
    %4935 = vmatprep.subr.mxu0 %v4721
    %4936 = vmatpush1.msra.mxu0 %v4720
    %4937 = vmatprep.subr.mxu0 %v4719
    %4938 = vmatpush1.msra.mxu0 %v4718
    %4939 = vmatprep.subr.mxu0 %v4717
    %4940 = vmatpush1.msra.mxu0 %v4716
    %4941 = vmatprep.subr.mxu0 %v4715
    %4942 = vmatpush1.msra.mxu0 %v4714
    %4943 = vmatprep.subr.mxu0 %v4713
    %4944 = vmatpush1.msra.mxu0 %v4712
    %4945 = vmatprep.subr.mxu0 %v4711
    %4946 = vmatpush1.msra.mxu0 %v4710
    %4947 = vmatprep.subr.mxu0 %v4773
    %4948 = vmatpush2.msra.mxu0 %v4772
    %4949 = vmatprep.subr.mxu0 %v4771
    %4950 = vmatpush2.msra.mxu0 %v4770
    %4951 = vmatprep.subr.mxu0 %v4769
    %4952 = vmatpush2.msra.mxu0 %v4768
    %4953 = vmatprep.subr.mxu0 %v4767
    %4954 = vmatpush2.msra.mxu0 %v4766
    %4955 = vmatprep.subr.mxu0 %v4765
    %4956 = vmatpush2.msra.mxu0 %v4764
    %4957 = vmatprep.subr.mxu0 %v4763
    %4958 = vmatpush2.msra.mxu0 %v4762
    %4959 = vmatprep.subr.mxu0 %v4761
    %4960 = vmatpush2.msra.mxu0 %v4760
    %4961 = vmatprep.subr.mxu0 %v4759
    %4962 = vmatpush2.msra.mxu0 %v4758
    %4963 = vmatprep.subr.mxu0 %v4757
    %4964 = vmatpush2.msra.mxu0 %v4756
    %4965 = vmatprep.subr.mxu0 %v4755
    %4966 = vmatpush2.msra.mxu0 %v4754
    %4967 = vmatprep.subr.mxu0 %v4753
    %4968 = vmatpush2.msra.mxu0 %v4752
    %4969 = vmatprep.subr.mxu0 %v4751
    %4970 = vmatpush2.msra.mxu0 %v4750
    %4971 = vmatprep.subr.mxu0 %v4749
    %4972 = vmatpush2.msra.mxu0 %v4748
    %4973 = vmatprep.subr.mxu0 %v4747
    %4974 = vmatpush2.msra.mxu0 %v4746
    %4975 = vmatprep.subr.mxu0 %v4745
    %4976 = vmatpush2.msra.mxu0 %v4744
    %4977 = vmatprep.subr.mxu0 %v4743
    %4978 = vmatpush2.msra.mxu0 %v4742
    %4979 = vmatprep.mubr.f32.mxu0 %v4707
    %4980 = vmatmul.mubr.f32.gmra.mxu0 %v4706
    %v4981 = vpop.f32.mrf.mxu0
    %v4982 = vadd.f32 %v4905, %v4981
    %v4983 = vpop.f32.mrf.mxu0
    %v4984 = vadd.f32 %v4907, %v4983
    %4985 = vmatprep.mubr.f32.mxu0 %v4709
    %4986 = vmatmul.mubr.f32.gmra.mxu0 %v4708
    %v4987 = vpop.f32.mrf.mxu0
    %v4988 = vadd.f32 %v4911, %v4987
    %v4989 = vpop.f32.mrf.mxu0
    %v4990 = vadd.f32 %v4913, %v4989
    %4991 = vdwg.mxu0
    %v4992 = vld [vmem:[%s17] sm:$0x3]
    %v4994 = vlaneseq
    %v4995 = vshrl.u32 %v4994, 7
    %v4996 = vsub.s32 0, %v4995
    %v4997 = vrot.slane %v4992, %v4996
    %v4998 = vlaneseq
    %v4999 = vshrl.u32 %v4998, 7
    %v5000 = vsub.s32 1, %v4999
    %v5001 = vrot.slane %v4992, %v5000
    %v5004 = vadd.f32 %v4982, %v4997
    %v5005 = vadd.f32 %v4984, %v5001
    %v5006 = vadd.f32 %v4988, %v4997
    %v5007 = vadd.f32 %v4990, %v5001
    %v5008 = vmax.f32 %v5004, 0.0
    %v5009 = vmax.f32 %v5005, 0.0
    %v5010 = vmax.f32 %v5006, 0.0
    %v5011 = vmax.f32 %v5007, 0.0
    %v5012 = vld [vmem:[#allocation22] sm:$0xff]
    %v5013 = vld [vmem:[#allocation22 + $0x8] sm:$0xff]
    %v5014 = vld [vmem:[#allocation22 + $0x10] sm:$0xff]
    %v5015 = vld [vmem:[#allocation22 + $0x18] sm:$0xff]
    %v5016 = vld [vmem:[#allocation22 + $0x20] sm:$0xff]
    %v5017 = vld [vmem:[#allocation22 + $0x28] sm:$0xff]
    %v5018 = vld [vmem:[#allocation22 + $0x30] sm:$0xff]
    %v5019 = vld [vmem:[#allocation22 + $0x38] sm:$0xff]
    %v5020 = vld [vmem:[#allocation22 + $0x40] sm:$0xff]
    %v5021 = vld [vmem:[#allocation22 + $0x48] sm:$0xff]
    %v5022 = vld [vmem:[#allocation22 + $0x50] sm:$0xff]
    %v5023 = vld [vmem:[#allocation22 + $0x58] sm:$0xff]
    %v5024 = vld [vmem:[#allocation22 + $0x60] sm:$0xff]
    %v5025 = vld [vmem:[#allocation22 + $0x68] sm:$0xff]
    %v5026 = vld [vmem:[#allocation22 + $0x70] sm:$0xff]
    %v5027 = vld [vmem:[#allocation22 + $0x78] sm:$0xff]
    %v5028 = vld [vmem:[#allocation22 + $0x80] sm:$0xff]
    %v5029 = vld [vmem:[#allocation22 + $0x88] sm:$0xff]
    %v5030 = vld [vmem:[#allocation22 + $0x90] sm:$0xff]
    %v5031 = vld [vmem:[#allocation22 + $0x98] sm:$0xff]
    %v5032 = vld [vmem:[#allocation22 + $0xa0] sm:$0xff]
    %v5033 = vld [vmem:[#allocation22 + $0xa8] sm:$0xff]
    %v5034 = vld [vmem:[#allocation22 + $0xb0] sm:$0xff]
    %v5035 = vld [vmem:[#allocation22 + $0xb8] sm:$0xff]
    %v5036 = vld [vmem:[#allocation22 + $0xc0] sm:$0xff]
    %v5037 = vld [vmem:[#allocation22 + $0xc8] sm:$0xff]
    %v5038 = vld [vmem:[#allocation22 + $0xd0] sm:$0xff]
    %v5039 = vld [vmem:[#allocation22 + $0xd8] sm:$0xff]
    %v5040 = vld [vmem:[#allocation22 + $0xe0] sm:$0xff]
    %v5041 = vld [vmem:[#allocation22 + $0xe8] sm:$0xff]
    %v5042 = vld [vmem:[#allocation22 + $0xf0] sm:$0xff]
    %v5043 = vld [vmem:[#allocation22 + $0xf8] sm:$0xff]
    %v5044 = vld [vmem:[#allocation22 + $0x100] sm:$0xff]
    %v5045 = vld [vmem:[#allocation22 + $0x108] sm:$0xff]
    %v5046 = vld [vmem:[#allocation22 + $0x110] sm:$0xff]
    %v5047 = vld [vmem:[#allocation22 + $0x118] sm:$0xff]
    %v5048 = vld [vmem:[#allocation22 + $0x120] sm:$0xff]
    %v5049 = vld [vmem:[#allocation22 + $0x128] sm:$0xff]
    %v5050 = vld [vmem:[#allocation22 + $0x130] sm:$0xff]
    %v5051 = vld [vmem:[#allocation22 + $0x138] sm:$0xff]
    %v5052 = vld [vmem:[#allocation22 + $0x140] sm:$0xff]
    %v5053 = vld [vmem:[#allocation22 + $0x148] sm:$0xff]
    %v5054 = vld [vmem:[#allocation22 + $0x150] sm:$0xff]
    %v5055 = vld [vmem:[#allocation22 + $0x158] sm:$0xff]
    %v5056 = vld [vmem:[#allocation22 + $0x160] sm:$0xff]
    %v5057 = vld [vmem:[#allocation22 + $0x168] sm:$0xff]
    %v5058 = vld [vmem:[#allocation22 + $0x170] sm:$0xff]
    %v5059 = vld [vmem:[#allocation22 + $0x178] sm:$0xff]
    %v5060 = vld [vmem:[#allocation22 + $0x180] sm:$0xff]
    %v5061 = vld [vmem:[#allocation22 + $0x188] sm:$0xff]
    %v5062 = vld [vmem:[#allocation22 + $0x190] sm:$0xff]
    %v5063 = vld [vmem:[#allocation22 + $0x198] sm:$0xff]
    %v5064 = vld [vmem:[#allocation22 + $0x1a0] sm:$0xff]
    %v5065 = vld [vmem:[#allocation22 + $0x1a8] sm:$0xff]
    %v5066 = vld [vmem:[#allocation22 + $0x1b0] sm:$0xff]
    %v5067 = vld [vmem:[#allocation22 + $0x1b8] sm:$0xff]
    %v5068 = vld [vmem:[#allocation22 + $0x1c0] sm:$0xff]
    %v5069 = vld [vmem:[#allocation22 + $0x1c8] sm:$0xff]
    %v5070 = vld [vmem:[#allocation22 + $0x1d0] sm:$0xff]
    %v5071 = vld [vmem:[#allocation22 + $0x1d8] sm:$0xff]
    %v5072 = vld [vmem:[#allocation22 + $0x1e0] sm:$0xff]
    %v5073 = vld [vmem:[#allocation22 + $0x1e8] sm:$0xff]
    %v5074 = vld [vmem:[#allocation22 + $0x1f0] sm:$0xff]
    %v5075 = vld [vmem:[#allocation22 + $0x1f8] sm:$0xff]
    %v5076 = vld [vmem:[%s19] sm:$0x3]
    %v5078 = vlaneseq
    %v5079 = vshrl.u32 %v5078, 7
    %v5080 = vsub.s32 0, %v5079
    %v5081 = vrot.slane %v5076, %v5080
    %v5082 = vlaneseq
    %v5083 = vshrl.u32 %v5082, 7
    %v5084 = vsub.s32 1, %v5083
    %v5085 = vrot.slane %v5076, %v5084
    %5088 = vmatprep.subr.mxu0 %v5043
    %5089 = vmatpush1.msra.mxu0 %v5042
    %5090 = vmatprep.subr.mxu0 %v5041
    %5091 = vmatpush1.msra.mxu0 %v5040
    %5092 = vmatprep.subr.mxu0 %v5039
    %5093 = vmatpush1.msra.mxu0 %v5038
    %5094 = vmatprep.subr.mxu0 %v5037
    %5095 = vmatpush1.msra.mxu0 %v5036
    %5096 = vmatprep.subr.mxu0 %v5035
    %5097 = vmatpush1.msra.mxu0 %v5034
    %5098 = vmatprep.subr.mxu0 %v5033
    %5099 = vmatpush1.msra.mxu0 %v5032
    %5100 = vmatprep.subr.mxu0 %v5031
    %5101 = vmatpush1.msra.mxu0 %v5030
    %5102 = vmatprep.subr.mxu0 %v5029
    %5103 = vmatpush1.msra.mxu0 %v5028
    %5104 = vmatprep.subr.mxu0 %v5027
    %5105 = vmatpush1.msra.mxu0 %v5026
    %5106 = vmatprep.subr.mxu0 %v5025
    %5107 = vmatpush1.msra.mxu0 %v5024
    %5108 = vmatprep.subr.mxu0 %v5023
    %5109 = vmatpush1.msra.mxu0 %v5022
    %5110 = vmatprep.subr.mxu0 %v5021
    %5111 = vmatpush1.msra.mxu0 %v5020
    %5112 = vmatprep.subr.mxu0 %v5019
    %5113 = vmatpush1.msra.mxu0 %v5018
    %5114 = vmatprep.subr.mxu0 %v5017
    %5115 = vmatpush1.msra.mxu0 %v5016
    %5116 = vmatprep.subr.mxu0 %v5015
    %5117 = vmatpush1.msra.mxu0 %v5014
    %5118 = vmatprep.subr.mxu0 %v5013
    %5119 = vmatpush1.msra.mxu0 %v5012
    %5120 = vmatprep.subr.mxu0 %v5075
    %5121 = vmatpush2.msra.mxu0 %v5074
    %5122 = vmatprep.subr.mxu0 %v5073
    %5123 = vmatpush2.msra.mxu0 %v5072
    %5124 = vmatprep.subr.mxu0 %v5071
    %5125 = vmatpush2.msra.mxu0 %v5070
    %5126 = vmatprep.subr.mxu0 %v5069
    %5127 = vmatpush2.msra.mxu0 %v5068
    %5128 = vmatprep.subr.mxu0 %v5067
    %5129 = vmatpush2.msra.mxu0 %v5066
    %5130 = vmatprep.subr.mxu0 %v5065
    %5131 = vmatpush2.msra.mxu0 %v5064
    %5132 = vmatprep.subr.mxu0 %v5063
    %5133 = vmatpush2.msra.mxu0 %v5062
    %5134 = vmatprep.subr.mxu0 %v5061
    %5135 = vmatpush2.msra.mxu0 %v5060
    %5136 = vmatprep.subr.mxu0 %v5059
    %5137 = vmatpush2.msra.mxu0 %v5058
    %5138 = vmatprep.subr.mxu0 %v5057
    %5139 = vmatpush2.msra.mxu0 %v5056
    %5140 = vmatprep.subr.mxu0 %v5055
    %5141 = vmatpush2.msra.mxu0 %v5054
    %5142 = vmatprep.subr.mxu0 %v5053
    %5143 = vmatpush2.msra.mxu0 %v5052
    %5144 = vmatprep.subr.mxu0 %v5051
    %5145 = vmatpush2.msra.mxu0 %v5050
    %5146 = vmatprep.subr.mxu0 %v5049
    %5147 = vmatpush2.msra.mxu0 %v5048
    %5148 = vmatprep.subr.mxu0 %v5047
    %5149 = vmatpush2.msra.mxu0 %v5046
    %5150 = vmatprep.subr.mxu0 %v5045
    %5151 = vmatpush2.msra.mxu0 %v5044
    %5152 = vmatprep.mubr.f32.mxu0 %v5009
    %5153 = vmatmul.mubr.f32.gmra.mxu0 %v5008
    %v5154 = vpop.f32.mrf.mxu0
    %v5155 = vadd.f32 %v5081, %v5154
    %v5156 = vpop.f32.mrf.mxu0
    %v5157 = vadd.f32 %v5085, %v5156
    %5158 = vmatprep.mubr.f32.mxu0 %v5011
    %5159 = vmatmul.mubr.f32.gmra.mxu0 %v5010
    %v5160 = vpop.f32.mrf.mxu0
    %v5161 = vadd.f32 %v5081, %v5160
    %v5162 = vpop.f32.mrf.mxu0
    %v5163 = vadd.f32 %v5085, %v5162
    %5164 = vdwg.mxu0
    %v5165 = vmax.f32 %v5155, 0.0
    %v5166 = vmax.f32 %v5157, 0.0
    %v5167 = vmax.f32 %v5161, 0.0
    %v5168 = vmax.f32 %v5163, 0.0
    %5169 = vst [vmem:[#allocation23] sm:$0xff] %v5165
    %5170 = vst [vmem:[#allocation23 + $0x8] sm:$0xff] %v5166
    %5171 = vst [vmem:[#allocation23 + $0x10] sm:$0xff] %v5167
    %5172 = vst [vmem:[#allocation23 + $0x18] sm:$0xff] %v5168
    // Predicated region
    $region134: #{tpu_custom_call.1} parent=1 // pred_check
      _
    $region135: #{tpu_custom_call.1} parent=1 // pred_check_branch
      %5174 = sbr.rel (0) target = $region137
    $region136: #{tpu_custom_call.1} parent=1 // pred_region
      %s5176 = ssub.s32 512, 512
      %5177 = vsyncadd [#allocation4], %s5176
      %s5178 = sshll.u32 [#allocation23], 4
      %s5179 = int_to_ptr.vmem [resolvable:$true] %s5178
      %5184 = dma.vmem_to_hbm [thread:$0]  %s5179, 512, %s20, [#allocation4], 256, 256, 16
    $region137: #{tpu_custom_call.1} parent=1 // pred_fallthru
      _
    // Predicated region
    $region138: #{tpu_custom_call.1} parent=1 // pred_check
      _
    $region139: #{tpu_custom_call.1} parent=1 // pred_check_branch
      %5186 = sbr.rel (0) target = $region141
    $region140: #{tpu_custom_call.1} parent=1 // pred_region
      %5187 = dma.done [#allocation4], 512
    $region141: #{tpu_custom_call.1} parent=1 // pred_fallthru
      _
    %5188 = vsyncpa [#allocation3], 1
    %5189 = vsyncpa [#allocation6], 1
    %5190 = vsyncpa [#allocation9], 1
    %5191 = vsyncpa [#allocation12], 1
    %5192 = vsyncpa [#allocation15], 1
    %5193 = vsyncpa [#allocation18], 1
    %5194 = vsyncpa [#allocation21], 1
    %5195 = vsyncpa [#allocation4], 1

</llo_original>
